<compile_context>
chip_gen: v5e
topology: v5e:2x2
jax: 0.10.0
libtpu: 0.0.40
codegen_flags: <defaults>
</compile_context>

<pallas_src>
import jax
import jax.numpy as jnp
from jax.experimental import pallas as pl
from jax.experimental.pallas import tpu as pltpu


def make_basic_block_kernel(H, W, FP):
    """Kernel factory; H, W, FP (front pad rows of the flat buffer) are static."""
    HW = H * W

    def conv3x3(src_ref, w_ref, mask_l, mask_r):
        # src_ref: (FLAT, C) flat row-major spatial (H zero-padded by 1 row on
        #          each side, plus FP/BP slack rows), channels on lanes.
        # w_ref:   (9, Cin, Cout) per-tap weight matrices (BN scale folded in).
        # Returns (H*W, Cout) f32.
        cout = w_ref.shape[2]
        acc = jnp.zeros((HW, cout), jnp.float32)
        for kw, dw in enumerate((-1, 0, 1)):          # column (width) offset
            part = jnp.zeros((HW, cout), jnp.float32)
            for kh, dh in enumerate((-1, 0, 1)):      # row (height) offset
                start = FP + W + dh * W + dw          # static sublane offset
                win = src_ref[pl.ds(start, HW), :].astype(jnp.float32)
                part = part + jnp.dot(win, w_ref[kh * 3 + kw],
                                      preferred_element_type=jnp.float32)
            # Width zero-padding: kill the row-wrap contributions of the
            # left/right taps at the first/last image column.
            if dw == -1:
                part = part * mask_l
            elif dw == 1:
                part = part * mask_r
            acc = acc + part
        return acc

    def kernel(xf_ref, w1_ref, b1_ref, w2_ref, b2_ref, ml_ref, mr_ref,
               out_ref, h1f_ref):
        mask_l = ml_ref[...]                          # (H*W, 1)
        mask_r = mr_ref[...]                          # (H*W, 1)

        # Residual = the unpadded input interior (aligned sublane slice).
        residual = xf_ref[pl.ds(FP + W, HW), :].astype(jnp.float32)

        # conv1 -> (folded) bn1 -> relu
        h1 = jnp.maximum(conv3x3(xf_ref, w1_ref, mask_l, mask_r) + b1_ref[...],
                         0.0)

        # Stage h1 into the flat padded scratch.  Scratch is uninitialized and
        # persists across grid steps, so zero only the halo regions (top/bottom
        # pad rows); the interior is fully overwritten every step.
        cout = h1f_ref.shape[1]
        tail = h1f_ref.shape[0] - (FP + W + HW)
        h1f_ref[pl.ds(0, FP + W), :] = jnp.zeros((FP + W, cout), jnp.float32)
        h1f_ref[pl.ds(FP + W, HW), :] = h1
        h1f_ref[pl.ds(FP + W + HW, tail), :] = jnp.zeros((tail, cout),
                                                         jnp.float32)

        # conv2 -> (folded) bn2 -> +residual -> relu
        h2 = conv3x3(h1f_ref, w2_ref, mask_l, mask_r) + b2_ref[...]
        out_ref[...] = jnp.maximum(h2 + residual, 0.0).astype(out_ref.dtype)

    return kernel


def basic_block(x, w1, bn1, w2, bn2, eps=1e-5):
    """Fused BasicBlock forward. bn* = (gamma, beta, running_mean, running_var)."""
    g1, be1, m1, v1 = bn1
    g2, be2, m2, v2 = bn2
    B, Cin, H, W = x.shape
    Cout = w1.shape[0]
    assert w1.shape == (Cout, Cin, 3, 3)
    assert w2.shape == (Cout, Cout, 3, 3)
    assert Cin == Cout, "identity residual requires inplanes == planes"

    f32 = jnp.float32
    # Fold inference-mode BatchNorm: scale goes into the conv weights,
    # only a per-channel bias remains.
    s1 = (g1 / jnp.sqrt(v1 + eps)).astype(f32)
    b1 = (be1 - m1 * s1).astype(f32).reshape(1, Cout)
    s2 = (g2 / jnp.sqrt(v2 + eps)).astype(f32)
    b2 = (be2 - m2 * s2).astype(f32).reshape(1, Cout)
    # (Cout,Cin,3,3) -> tap-major (9, Cin, Cout) matrices for the MXU dots.
    w1t = jnp.transpose(w1.astype(f32) * s1[:, None, None, None],
                        (2, 3, 1, 0)).reshape(9, Cin, Cout)
    w2t = jnp.transpose(w2.astype(f32) * s2[:, None, None, None],
                        (2, 3, 1, 0)).reshape(9, Cout, Cout)

    # Layout: NHWC, pad H by 1 zero row each side (conv padding), flatten the
    # spatial dims row-major, and add FP/BP slack rows so every shifted window
    # slice stays in-bounds.  Channels stay on the lane axis end-to-end.
    FP = BP = 8
    HW = H * W
    x_nhwc = jnp.transpose(x, (0, 2, 3, 1))
    x_hpad = jnp.pad(x_nhwc, ((0, 0), (1, 1), (0, 0), (0, 0)))
    x_flat = x_hpad.reshape(B, (H + 2) * W, Cin)
    x_flat = jnp.pad(x_flat, ((0, 0), (FP, BP), (0, 0)))
    FLAT = FP + (H + 2) * W + BP

    # Column masks implementing the width zero-padding of the 3x3 conv.
    col = jnp.arange(HW, dtype=jnp.int32) % W
    mask_l = (col != 0).astype(f32).reshape(HW, 1)
    mask_r = (col != W - 1).astype(f32).reshape(HW, 1)

    kernel = make_basic_block_kernel(H, W, FP)

    def full(shape):
        return pl.BlockSpec(shape, lambda b, _s=shape: (0,) * len(_s))

    x_spec = pl.BlockSpec((pl.Squeezed(), FLAT, Cin), lambda b: (b, 0, 0))
    out_spec = pl.BlockSpec((pl.Squeezed(), HW, Cout), lambda b: (b, 0, 0))

    flops = 2 * B * HW * 9 * (Cin * Cout + Cout * Cout)
    bytes_accessed = 4 * (x_flat.size + B * HW * Cout + w1t.size + w2t.size
                          + b1.size + b2.size + mask_l.size + mask_r.size)

    out_flat = pl.pallas_call(
        kernel,
        out_shape=jax.ShapeDtypeStruct((B, HW, Cout), x.dtype),
        grid=(B,),
        in_specs=[x_spec,
                  full((9, Cin, Cout)), full((1, Cout)),
                  full((9, Cout, Cout)), full((1, Cout)),
                  full((HW, 1)), full((HW, 1))],
        out_specs=out_spec,
        scratch_shapes=[pltpu.VMEM((FLAT, Cout), jnp.float32)],
        compiler_params=pltpu.CompilerParams(
            dimension_semantics=("parallel",)),
        cost_estimate=pl.CostEstimate(
            flops=flops, transcendentals=0, bytes_accessed=bytes_accessed),
    )(x_flat, w1t, b1, w2t, b2, mask_l, mask_r)

    return jnp.transpose(out_flat.reshape(B, H, W, Cout), (0, 3, 1, 2))


def basic_block_reference(x, w1, bn1, w2, bn2, eps=1e-5):
    # Pure-JAX transcription of the PyTorch forward (inference-mode BN).
    def conv(a, w):
        return jax.lax.conv_general_dilated(
            a, w, window_strides=(1, 1), padding=((1, 1), (1, 1)),
            dimension_numbers=("NCHW", "OIHW", "NCHW"))

    def bn(a, params):
        g, be, m, v = params
        s = g / jnp.sqrt(v + eps)
        b = be - m * s
        return a * s[None, :, None, None] + b[None, :, None, None]

    out = jax.nn.relu(bn(conv(x, w1), bn1))
    out = bn(conv(out, w2), bn2)
    return jax.nn.relu(out + x)


if __name__ == "__main__":
    key = jax.random.PRNGKey(0)
    ks = jax.random.split(key, 12)

    B, C, H, W = 2, 4, 16, 16   # inplanes = planes = 4, stride = 1, no downsample

    x = jax.random.normal(ks[0], (B, C, H, W), dtype=jnp.float32)
    w1 = jax.random.normal(ks[1], (C, C, 3, 3), dtype=jnp.float32) * 0.1
    w2 = jax.random.normal(ks[2], (C, C, 3, 3), dtype=jnp.float32) * 0.1

    bn1 = (jax.random.uniform(ks[3], (C,), minval=0.5, maxval=1.5),
           jax.random.normal(ks[4], (C,)) * 0.1,
           jax.random.normal(ks[5], (C,)) * 0.1,
           jax.random.uniform(ks[6], (C,), minval=0.5, maxval=1.5))
    bn2 = (jax.random.uniform(ks[7], (C,), minval=0.5, maxval=1.5),
           jax.random.normal(ks[8], (C,)) * 0.1,
           jax.random.normal(ks[9], (C,)) * 0.1,
           jax.random.uniform(ks[10], (C,), minval=0.5, maxval=1.5))

    out = basic_block(x, w1, bn1, w2, bn2)
    out = jax.block_until_ready(out)

    ref = basic_block_reference(x, w1, bn1, w2, bn2)
    assert out.shape == (B, C, H, W)
    # Tolerance accounts for the MXU's bf16-pass f32 matmul vs. XLA's conv
    # (genuine layout/indexing bugs would be O(1), far above this threshold).
    assert jnp.allclose(out, ref, atol=2e-2, rtol=2e-2), "Pallas BasicBlock mismatch"

    print("KERNEL_OK")
</pallas_src>

<mosaic_0001>
module attributes {stable_mosaic.version = 11 : i64} {
  func.func @kernel(%arg0: i32, %arg1: memref<1x304x4xf32, #tpu.memory_space<vmem>>, %arg2: memref<9x4x4xf32, #tpu.memory_space<vmem>>, %arg3: memref<1x4xf32, #tpu.memory_space<vmem>>, %arg4: memref<9x4x4xf32, #tpu.memory_space<vmem>>, %arg5: memref<1x4xf32, #tpu.memory_space<vmem>>, %arg6: memref<256x1xf32, #tpu.memory_space<vmem>>, %arg7: memref<256x1xf32, #tpu.memory_space<vmem>>, %arg8: memref<1x256x4xf32, #tpu.memory_space<vmem>>, %arg9: memref<304x4xf32, #tpu.memory_space<vmem>>) attributes {dimension_semantics = [#tpu.dimension_semantics<parallel>], iteration_bounds = array<i64: 2>, scalar_prefetch = 0 : i64, scratch_operands = 1 : i64, tpu.core_type = #tpu.core_type<tc>, window_params = [{transform_indices = @transform_0, window_bounds = array<i64: 1, 304, 4>}, {pipeline_mode = #tpu.pipeline_mode<synchronous>, transform_indices = @transform_1, window_bounds = array<i64: 9, 4, 4>}, {pipeline_mode = #tpu.pipeline_mode<synchronous>, transform_indices = @transform_2, window_bounds = array<i64: 1, 4>}, {pipeline_mode = #tpu.pipeline_mode<synchronous>, transform_indices = @transform_3, window_bounds = array<i64: 9, 4, 4>}, {pipeline_mode = #tpu.pipeline_mode<synchronous>, transform_indices = @transform_4, window_bounds = array<i64: 1, 4>}, {pipeline_mode = #tpu.pipeline_mode<synchronous>, transform_indices = @transform_5, window_bounds = array<i64: 256, 1>}, {pipeline_mode = #tpu.pipeline_mode<synchronous>, transform_indices = @transform_6, window_bounds = array<i64: 256, 1>}, {transform_indices = @transform_7, window_bounds = array<i64: 1, 256, 4>}]} {
    %c0 = arith.constant 0 : index
    %c0_0 = arith.constant 0 : index
    %0 = vector.load %arg6[%c0, %c0_0] : memref<256x1xf32, #tpu.memory_space<vmem>>, vector<256x1xf32>
    %c0_1 = arith.constant 0 : index
    %c0_2 = arith.constant 0 : index
    %1 = vector.load %arg7[%c0_1, %c0_2] : memref<256x1xf32, #tpu.memory_space<vmem>>, vector<256x1xf32>
    %c0_3 = arith.constant 0 : index
    %c24 = arith.constant 24 : index
    %c0_4 = arith.constant 0 : index
    %2 = vector.load %arg1[%c0_3, %c24, %c0_4] : memref<1x304x4xf32, #tpu.memory_space<vmem>>, vector<1x256x4xf32>
    %3 = vector.shape_cast %2 : vector<1x256x4xf32> to vector<256x4xf32>
    %cst = arith.constant 0.000000e+00 : f32
    %4 = vector.broadcast %cst : f32 to vector<256x4xf32>
    %cst_5 = arith.constant 0.000000e+00 : f32
    %5 = vector.broadcast %cst_5 : f32 to vector<256x4xf32>
    %c0_6 = arith.constant 0 : index
    %c7 = arith.constant 7 : index
    %c0_7 = arith.constant 0 : index
    %6 = vector.load %arg1[%c0_6, %c7, %c0_7] : memref<1x304x4xf32, #tpu.memory_space<vmem>>, vector<1x256x4xf32>
    %7 = vector.shape_cast %6 : vector<1x256x4xf32> to vector<256x4xf32>
    %c0_8 = arith.constant 0 : index
    %c0_9 = arith.constant 0 : index
    %c0_10 = arith.constant 0 : index
    %8 = vector.load %arg2[%c0_8, %c0_9, %c0_10] : memref<9x4x4xf32, #tpu.memory_space<vmem>>, vector<1x4x4xf32>
    %9 = vector.shape_cast %8 : vector<1x4x4xf32> to vector<4x4xf32>
    %cst_11 = arith.constant dense<0.000000e+00> : vector<256x4xf32>
    %10 = tpu.matmul %7, %9, %cst_11 {dimension_numbers = #tpu.dot_dimension_numbers<[1], [0], [0], [1], [0, 0, 1, 1], [], []>} : vector<256x4xf32>, vector<4x4xf32>, vector<256x4xf32> -> vector<256x4xf32>
    %11 = arith.addf %5, %10 : vector<256x4xf32>
    %c0_12 = arith.constant 0 : index
    %c23 = arith.constant 23 : index
    %c0_13 = arith.constant 0 : index
    %12 = vector.load %arg1[%c0_12, %c23, %c0_13] : memref<1x304x4xf32, #tpu.memory_space<vmem>>, vector<1x256x4xf32>
    %13 = vector.shape_cast %12 : vector<1x256x4xf32> to vector<256x4xf32>
    %c3 = arith.constant 3 : index
    %c0_14 = arith.constant 0 : index
    %c0_15 = arith.constant 0 : index
    %14 = vector.load %arg2[%c3, %c0_14, %c0_15] : memref<9x4x4xf32, #tpu.memory_space<vmem>>, vector<1x4x4xf32>
    %15 = vector.shape_cast %14 : vector<1x4x4xf32> to vector<4x4xf32>
    %cst_16 = arith.constant dense<0.000000e+00> : vector<256x4xf32>
    %16 = tpu.matmul %13, %15, %cst_16 {dimension_numbers = #tpu.dot_dimension_numbers<[1], [0], [0], [1], [0, 0, 1, 1], [], []>} : vector<256x4xf32>, vector<4x4xf32>, vector<256x4xf32> -> vector<256x4xf32>
    %17 = arith.addf %11, %16 : vector<256x4xf32>
    %c0_17 = arith.constant 0 : index
    %c39 = arith.constant 39 : index
    %c0_18 = arith.constant 0 : index
    %18 = vector.load %arg1[%c0_17, %c39, %c0_18] : memref<1x304x4xf32, #tpu.memory_space<vmem>>, vector<1x256x4xf32>
    %19 = vector.shape_cast %18 : vector<1x256x4xf32> to vector<256x4xf32>
    %c6 = arith.constant 6 : index
    %c0_19 = arith.constant 0 : index
    %c0_20 = arith.constant 0 : index
    %20 = vector.load %arg2[%c6, %c0_19, %c0_20] : memref<9x4x4xf32, #tpu.memory_space<vmem>>, vector<1x4x4xf32>
    %21 = vector.shape_cast %20 : vector<1x4x4xf32> to vector<4x4xf32>
    %cst_21 = arith.constant dense<0.000000e+00> : vector<256x4xf32>
    %22 = tpu.matmul %19, %21, %cst_21 {dimension_numbers = #tpu.dot_dimension_numbers<[1], [0], [0], [1], [0, 0, 1, 1], [], []>} : vector<256x4xf32>, vector<4x4xf32>, vector<256x4xf32> -> vector<256x4xf32>
    %23 = arith.addf %17, %22 : vector<256x4xf32>
    %24 = vector.broadcast %0 : vector<256x1xf32> to vector<256x4xf32>
    %25 = arith.mulf %23, %24 : vector<256x4xf32>
    %26 = arith.addf %4, %25 : vector<256x4xf32>
    %cst_22 = arith.constant 0.000000e+00 : f32
    %27 = vector.broadcast %cst_22 : f32 to vector<256x4xf32>
    %c0_23 = arith.constant 0 : index
    %c8 = arith.constant 8 : index
    %c0_24 = arith.constant 0 : index
    %28 = vector.load %arg1[%c0_23, %c8, %c0_24] : memref<1x304x4xf32, #tpu.memory_space<vmem>>, vector<1x256x4xf32>
    %29 = vector.shape_cast %28 : vector<1x256x4xf32> to vector<256x4xf32>
    %c1 = arith.constant 1 : index
    %c0_25 = arith.constant 0 : index
    %c0_26 = arith.constant 0 : index
    %30 = vector.load %arg2[%c1, %c0_25, %c0_26] : memref<9x4x4xf32, #tpu.memory_space<vmem>>, vector<1x4x4xf32>
    %31 = vector.shape_cast %30 : vector<1x4x4xf32> to vector<4x4xf32>
    %cst_27 = arith.constant dense<0.000000e+00> : vector<256x4xf32>
    %32 = tpu.matmul %29, %31, %cst_27 {dimension_numbers = #tpu.dot_dimension_numbers<[1], [0], [0], [1], [0, 0, 1, 1], [], []>} : vector<256x4xf32>, vector<4x4xf32>, vector<256x4xf32> -> vector<256x4xf32>
    %33 = arith.addf %27, %32 : vector<256x4xf32>
    %c0_28 = arith.constant 0 : index
    %c24_29 = arith.constant 24 : index
    %c0_30 = arith.constant 0 : index
    %34 = vector.load %arg1[%c0_28, %c24_29, %c0_30] : memref<1x304x4xf32, #tpu.memory_space<vmem>>, vector<1x256x4xf32>
    %35 = vector.shape_cast %34 : vector<1x256x4xf32> to vector<256x4xf32>
    %c4 = arith.constant 4 : index
    %c0_31 = arith.constant 0 : index
    %c0_32 = arith.constant 0 : index
    %36 = vector.load %arg2[%c4, %c0_31, %c0_32] : memref<9x4x4xf32, #tpu.memory_space<vmem>>, vector<1x4x4xf32>
    %37 = vector.shape_cast %36 : vector<1x4x4xf32> to vector<4x4xf32>
    %cst_33 = arith.constant dense<0.000000e+00> : vector<256x4xf32>
    %38 = tpu.matmul %35, %37, %cst_33 {dimension_numbers = #tpu.dot_dimension_numbers<[1], [0], [0], [1], [0, 0, 1, 1], [], []>} : vector<256x4xf32>, vector<4x4xf32>, vector<256x4xf32> -> vector<256x4xf32>
    %39 = arith.addf %33, %38 : vector<256x4xf32>
    %c0_34 = arith.constant 0 : index
    %c40 = arith.constant 40 : index
    %c0_35 = arith.constant 0 : index
    %40 = vector.load %arg1[%c0_34, %c40, %c0_35] : memref<1x304x4xf32, #tpu.memory_space<vmem>>, vector<1x256x4xf32>
    %41 = vector.shape_cast %40 : vector<1x256x4xf32> to vector<256x4xf32>
    %c7_36 = arith.constant 7 : index
    %c0_37 = arith.constant 0 : index
    %c0_38 = arith.constant 0 : index
    %42 = vector.load %arg2[%c7_36, %c0_37, %c0_38] : memref<9x4x4xf32, #tpu.memory_space<vmem>>, vector<1x4x4xf32>
    %43 = vector.shape_cast %42 : vector<1x4x4xf32> to vector<4x4xf32>
    %cst_39 = arith.constant dense<0.000000e+00> : vector<256x4xf32>
    %44 = tpu.matmul %41, %43, %cst_39 {dimension_numbers = #tpu.dot_dimension_numbers<[1], [0], [0], [1], [0, 0, 1, 1], [], []>} : vector<256x4xf32>, vector<4x4xf32>, vector<256x4xf32> -> vector<256x4xf32>
    %45 = arith.addf %39, %44 : vector<256x4xf32>
    %46 = arith.addf %26, %45 : vector<256x4xf32>
    %cst_40 = arith.constant 0.000000e+00 : f32
    %47 = vector.broadcast %cst_40 : f32 to vector<256x4xf32>
    %c0_41 = arith.constant 0 : index
    %c9 = arith.constant 9 : index
    %c0_42 = arith.constant 0 : index
    %48 = vector.load %arg1[%c0_41, %c9, %c0_42] : memref<1x304x4xf32, #tpu.memory_space<vmem>>, vector<1x256x4xf32>
    %49 = vector.shape_cast %48 : vector<1x256x4xf32> to vector<256x4xf32>
    %c2 = arith.constant 2 : index
    %c0_43 = arith.constant 0 : index
    %c0_44 = arith.constant 0 : index
    %50 = vector.load %arg2[%c2, %c0_43, %c0_44] : memref<9x4x4xf32, #tpu.memory_space<vmem>>, vector<1x4x4xf32>
    %51 = vector.shape_cast %50 : vector<1x4x4xf32> to vector<4x4xf32>
    %cst_45 = arith.constant dense<0.000000e+00> : vector<256x4xf32>
    %52 = tpu.matmul %49, %51, %cst_45 {dimension_numbers = #tpu.dot_dimension_numbers<[1], [0], [0], [1], [0, 0, 1, 1], [], []>} : vector<256x4xf32>, vector<4x4xf32>, vector<256x4xf32> -> vector<256x4xf32>
    %53 = arith.addf %47, %52 : vector<256x4xf32>
    %c0_46 = arith.constant 0 : index
    %c25 = arith.constant 25 : index
    %c0_47 = arith.constant 0 : index
    %54 = vector.load %arg1[%c0_46, %c25, %c0_47] : memref<1x304x4xf32, #tpu.memory_space<vmem>>, vector<1x256x4xf32>
    %55 = vector.shape_cast %54 : vector<1x256x4xf32> to vector<256x4xf32>
    %c5 = arith.constant 5 : index
    %c0_48 = arith.constant 0 : index
    %c0_49 = arith.constant 0 : index
    %56 = vector.load %arg2[%c5, %c0_48, %c0_49] : memref<9x4x4xf32, #tpu.memory_space<vmem>>, vector<1x4x4xf32>
    %57 = vector.shape_cast %56 : vector<1x4x4xf32> to vector<4x4xf32>
    %cst_50 = arith.constant dense<0.000000e+00> : vector<256x4xf32>
    %58 = tpu.matmul %55, %57, %cst_50 {dimension_numbers = #tpu.dot_dimension_numbers<[1], [0], [0], [1], [0, 0, 1, 1], [], []>} : vector<256x4xf32>, vector<4x4xf32>, vector<256x4xf32> -> vector<256x4xf32>
    %59 = arith.addf %53, %58 : vector<256x4xf32>
    %c0_51 = arith.constant 0 : index
    %c41 = arith.constant 41 : index
    %c0_52 = arith.constant 0 : index
    %60 = vector.load %arg1[%c0_51, %c41, %c0_52] : memref<1x304x4xf32, #tpu.memory_space<vmem>>, vector<1x256x4xf32>
    %61 = vector.shape_cast %60 : vector<1x256x4xf32> to vector<256x4xf32>
    %c8_53 = arith.constant 8 : index
    %c0_54 = arith.constant 0 : index
    %c0_55 = arith.constant 0 : index
    %62 = vector.load %arg2[%c8_53, %c0_54, %c0_55] : memref<9x4x4xf32, #tpu.memory_space<vmem>>, vector<1x4x4xf32>
    %63 = vector.shape_cast %62 : vector<1x4x4xf32> to vector<4x4xf32>
    %cst_56 = arith.constant dense<0.000000e+00> : vector<256x4xf32>
    %64 = tpu.matmul %61, %63, %cst_56 {dimension_numbers = #tpu.dot_dimension_numbers<[1], [0], [0], [1], [0, 0, 1, 1], [], []>} : vector<256x4xf32>, vector<4x4xf32>, vector<256x4xf32> -> vector<256x4xf32>
    %65 = arith.addf %59, %64 : vector<256x4xf32>
    %66 = vector.broadcast %1 : vector<256x1xf32> to vector<256x4xf32>
    %67 = arith.mulf %65, %66 : vector<256x4xf32>
    %68 = arith.addf %46, %67 : vector<256x4xf32>
    %c0_57 = arith.constant 0 : index
    %c0_58 = arith.constant 0 : index
    %69 = vector.load %arg3[%c0_57, %c0_58] : memref<1x4xf32, #tpu.memory_space<vmem>>, vector<1x4xf32>
    %70 = vector.broadcast %69 : vector<1x4xf32> to vector<256x4xf32>
    %71 = arith.addf %68, %70 : vector<256x4xf32>
    %cst_59 = arith.constant 0.000000e+00 : f32
    %72 = vector.broadcast %cst_59 : f32 to vector<256x4xf32>
    %73 = arith.maximumf %71, %72 : vector<256x4xf32>
    %cst_60 = arith.constant 0.000000e+00 : f32
    %74 = vector.broadcast %cst_60 : f32 to vector<24x4xf32>
    %c0_61 = arith.constant 0 : index
    %c0_62 = arith.constant 0 : index
    %75 = vector.load %arg9[%c0_61, %c0_62] : memref<304x4xf32, #tpu.memory_space<vmem>>, vector<24x4xf32>
    tpu.vector_store %arg9[%c0_61, %c0_62], %74 {strides = array<i32>} : memref<304x4xf32, #tpu.memory_space<vmem>>, vector<24x4xf32>,
    %c24_63 = arith.constant 24 : index
    %c0_64 = arith.constant 0 : index
    %76 = vector.load %arg9[%c24_63, %c0_64] : memref<304x4xf32, #tpu.memory_space<vmem>>, vector<256x4xf32>
    tpu.vector_store %arg9[%c24_63, %c0_64], %73 {strides = array<i32>} : memref<304x4xf32, #tpu.memory_space<vmem>>, vector<256x4xf32>,
    %cst_65 = arith.constant 0.000000e+00 : f32
    %77 = vector.broadcast %cst_65 : f32 to vector<24x4xf32>
    %c280 = arith.constant 280 : index
    %c0_66 = arith.constant 0 : index
    %78 = vector.load %arg9[%c280, %c0_66] : memref<304x4xf32, #tpu.memory_space<vmem>>, vector<24x4xf32>
    tpu.vector_store %arg9[%c280, %c0_66], %77 {strides = array<i32>} : memref<304x4xf32, #tpu.memory_space<vmem>>, vector<24x4xf32>,
    %cst_67 = arith.constant 0.000000e+00 : f32
    %79 = vector.broadcast %cst_67 : f32 to vector<256x4xf32>
    %cst_68 = arith.constant 0.000000e+00 : f32
    %80 = vector.broadcast %cst_68 : f32 to vector<256x4xf32>
    %c7_69 = arith.constant 7 : index
    %c0_70 = arith.constant 0 : index
    %81 = vector.load %arg9[%c7_69, %c0_70] : memref<304x4xf32, #tpu.memory_space<vmem>>, vector<256x4xf32>
    %c0_71 = arith.constant 0 : index
    %c0_72 = arith.constant 0 : index
    %c0_73 = arith.constant 0 : index
    %82 = vector.load %arg4[%c0_71, %c0_72, %c0_73] : memref<9x4x4xf32, #tpu.memory_space<vmem>>, vector<1x4x4xf32>
    %83 = vector.shape_cast %82 : vector<1x4x4xf32> to vector<4x4xf32>
    %cst_74 = arith.constant dense<0.000000e+00> : vector<256x4xf32>
    %84 = tpu.matmul %81, %83, %cst_74 {dimension_numbers = #tpu.dot_dimension_numbers<[1], [0], [0], [1], [0, 0, 1, 1], [], []>} : vector<256x4xf32>, vector<4x4xf32>, vector<256x4xf32> -> vector<256x4xf32>
    %85 = arith.addf %80, %84 : vector<256x4xf32>
    %c23_75 = arith.constant 23 : index
    %c0_76 = arith.constant 0 : index
    %86 = vector.load %arg9[%c23_75, %c0_76] : memref<304x4xf32, #tpu.memory_space<vmem>>, vector<256x4xf32>
    %c3_77 = arith.constant 3 : index
    %c0_78 = arith.constant 0 : index
    %c0_79 = arith.constant 0 : index
    %87 = vector.load %arg4[%c3_77, %c0_78, %c0_79] : memref<9x4x4xf32, #tpu.memory_space<vmem>>, vector<1x4x4xf32>
    %88 = vector.shape_cast %87 : vector<1x4x4xf32> to vector<4x4xf32>
    %cst_80 = arith.constant dense<0.000000e+00> : vector<256x4xf32>
    %89 = tpu.matmul %86, %88, %cst_80 {dimension_numbers = #tpu.dot_dimension_numbers<[1], [0], [0], [1], [0, 0, 1, 1], [], []>} : vector<256x4xf32>, vector<4x4xf32>, vector<256x4xf32> -> vector<256x4xf32>
    %90 = arith.addf %85, %89 : vector<256x4xf32>
    %c39_81 = arith.constant 39 : index
    %c0_82 = arith.constant 0 : index
    %91 = vector.load %arg9[%c39_81, %c0_82] : memref<304x4xf32, #tpu.memory_space<vmem>>, vector<256x4xf32>
    %c6_83 = arith.constant 6 : index
    %c0_84 = arith.constant 0 : index
    %c0_85 = arith.constant 0 : index
    %92 = vector.load %arg4[%c6_83, %c0_84, %c0_85] : memref<9x4x4xf32, #tpu.memory_space<vmem>>, vector<1x4x4xf32>
    %93 = vector.shape_cast %92 : vector<1x4x4xf32> to vector<4x4xf32>
    %cst_86 = arith.constant dense<0.000000e+00> : vector<256x4xf32>
    %94 = tpu.matmul %91, %93, %cst_86 {dimension_numbers = #tpu.dot_dimension_numbers<[1], [0], [0], [1], [0, 0, 1, 1], [], []>} : vector<256x4xf32>, vector<4x4xf32>, vector<256x4xf32> -> vector<256x4xf32>
    %95 = arith.addf %90, %94 : vector<256x4xf32>
    %96 = vector.broadcast %0 : vector<256x1xf32> to vector<256x4xf32>
    %97 = arith.mulf %95, %96 : vector<256x4xf32>
    %98 = arith.addf %79, %97 : vector<256x4xf32>
    %cst_87 = arith.constant 0.000000e+00 : f32
    %99 = vector.broadcast %cst_87 : f32 to vector<256x4xf32>
    %c8_88 = arith.constant 8 : index
    %c0_89 = arith.constant 0 : index
    %100 = vector.load %arg9[%c8_88, %c0_89] : memref<304x4xf32, #tpu.memory_space<vmem>>, vector<256x4xf32>
    %c1_90 = arith.constant 1 : index
    %c0_91 = arith.constant 0 : index
    %c0_92 = arith.constant 0 : index
    %101 = vector.load %arg4[%c1_90, %c0_91, %c0_92] : memref<9x4x4xf32, #tpu.memory_space<vmem>>, vector<1x4x4xf32>
    %102 = vector.shape_cast %101 : vector<1x4x4xf32> to vector<4x4xf32>
    %cst_93 = arith.constant dense<0.000000e+00> : vector<256x4xf32>
    %103 = tpu.matmul %100, %102, %cst_93 {dimension_numbers = #tpu.dot_dimension_numbers<[1], [0], [0], [1], [0, 0, 1, 1], [], []>} : vector<256x4xf32>, vector<4x4xf32>, vector<256x4xf32> -> vector<256x4xf32>
    %104 = arith.addf %99, %103 : vector<256x4xf32>
    %c24_94 = arith.constant 24 : index
    %c0_95 = arith.constant 0 : index
    %105 = vector.load %arg9[%c24_94, %c0_95] : memref<304x4xf32, #tpu.memory_space<vmem>>, vector<256x4xf32>
    %c4_96 = arith.constant 4 : index
    %c0_97 = arith.constant 0 : index
    %c0_98 = arith.constant 0 : index
    %106 = vector.load %arg4[%c4_96, %c0_97, %c0_98] : memref<9x4x4xf32, #tpu.memory_space<vmem>>, vector<1x4x4xf32>
    %107 = vector.shape_cast %106 : vector<1x4x4xf32> to vector<4x4xf32>
    %cst_99 = arith.constant dense<0.000000e+00> : vector<256x4xf32>
    %108 = tpu.matmul %105, %107, %cst_99 {dimension_numbers = #tpu.dot_dimension_numbers<[1], [0], [0], [1], [0, 0, 1, 1], [], []>} : vector<256x4xf32>, vector<4x4xf32>, vector<256x4xf32> -> vector<256x4xf32>
    %109 = arith.addf %104, %108 : vector<256x4xf32>
    %c40_100 = arith.constant 40 : index
    %c0_101 = arith.constant 0 : index
    %110 = vector.load %arg9[%c40_100, %c0_101] : memref<304x4xf32, #tpu.memory_space<vmem>>, vector<256x4xf32>
    %c7_102 = arith.constant 7 : index
    %c0_103 = arith.constant 0 : index
    %c0_104 = arith.constant 0 : index
    %111 = vector.load %arg4[%c7_102, %c0_103, %c0_104] : memref<9x4x4xf32, #tpu.memory_space<vmem>>, vector<1x4x4xf32>
    %112 = vector.shape_cast %111 : vector<1x4x4xf32> to vector<4x4xf32>
    %cst_105 = arith.constant dense<0.000000e+00> : vector<256x4xf32>
    %113 = tpu.matmul %110, %112, %cst_105 {dimension_numbers = #tpu.dot_dimension_numbers<[1], [0], [0], [1], [0, 0, 1, 1], [], []>} : vector<256x4xf32>, vector<4x4xf32>, vector<256x4xf32> -> vector<256x4xf32>
    %114 = arith.addf %109, %113 : vector<256x4xf32>
    %115 = arith.addf %98, %114 : vector<256x4xf32>
    %cst_106 = arith.constant 0.000000e+00 : f32
    %116 = vector.broadcast %cst_106 : f32 to vector<256x4xf32>
    %c9_107 = arith.constant 9 : index
    %c0_108 = arith.constant 0 : index
    %117 = vector.load %arg9[%c9_107, %c0_108] : memref<304x4xf32, #tpu.memory_space<vmem>>, vector<256x4xf32>
    %c2_109 = arith.constant 2 : index
    %c0_110 = arith.constant 0 : index
    %c0_111 = arith.constant 0 : index
    %118 = vector.load %arg4[%c2_109, %c0_110, %c0_111] : memref<9x4x4xf32, #tpu.memory_space<vmem>>, vector<1x4x4xf32>
    %119 = vector.shape_cast %118 : vector<1x4x4xf32> to vector<4x4xf32>
    %cst_112 = arith.constant dense<0.000000e+00> : vector<256x4xf32>
    %120 = tpu.matmul %117, %119, %cst_112 {dimension_numbers = #tpu.dot_dimension_numbers<[1], [0], [0], [1], [0, 0, 1, 1], [], []>} : vector<256x4xf32>, vector<4x4xf32>, vector<256x4xf32> -> vector<256x4xf32>
    %121 = arith.addf %116, %120 : vector<256x4xf32>
    %c25_113 = arith.constant 25 : index
    %c0_114 = arith.constant 0 : index
    %122 = vector.load %arg9[%c25_113, %c0_114] : memref<304x4xf32, #tpu.memory_space<vmem>>, vector<256x4xf32>
    %c5_115 = arith.constant 5 : index
    %c0_116 = arith.constant 0 : index
    %c0_117 = arith.constant 0 : index
    %123 = vector.load %arg4[%c5_115, %c0_116, %c0_117] : memref<9x4x4xf32, #tpu.memory_space<vmem>>, vector<1x4x4xf32>
    %124 = vector.shape_cast %123 : vector<1x4x4xf32> to vector<4x4xf32>
    %cst_118 = arith.constant dense<0.000000e+00> : vector<256x4xf32>
    %125 = tpu.matmul %122, %124, %cst_118 {dimension_numbers = #tpu.dot_dimension_numbers<[1], [0], [0], [1], [0, 0, 1, 1], [], []>} : vector<256x4xf32>, vector<4x4xf32>, vector<256x4xf32> -> vector<256x4xf32>
    %126 = arith.addf %121, %125 : vector<256x4xf32>
    %c41_119 = arith.constant 41 : index
    %c0_120 = arith.constant 0 : index
    %127 = vector.load %arg9[%c41_119, %c0_120] : memref<304x4xf32, #tpu.memory_space<vmem>>, vector<256x4xf32>
    %c8_121 = arith.constant 8 : index
    %c0_122 = arith.constant 0 : index
    %c0_123 = arith.constant 0 : index
    %128 = vector.load %arg4[%c8_121, %c0_122, %c0_123] : memref<9x4x4xf32, #tpu.memory_space<vmem>>, vector<1x4x4xf32>
    %129 = vector.shape_cast %128 : vector<1x4x4xf32> to vector<4x4xf32>
    %cst_124 = arith.constant dense<0.000000e+00> : vector<256x4xf32>
    %130 = tpu.matmul %127, %129, %cst_124 {dimension_numbers = #tpu.dot_dimension_numbers<[1], [0], [0], [1], [0, 0, 1, 1], [], []>} : vector<256x4xf32>, vector<4x4xf32>, vector<256x4xf32> -> vector<256x4xf32>
    %131 = arith.addf %126, %130 : vector<256x4xf32>
    %132 = vector.broadcast %1 : vector<256x1xf32> to vector<256x4xf32>
    %133 = arith.mulf %131, %132 : vector<256x4xf32>
    %134 = arith.addf %115, %133 : vector<256x4xf32>
    %c0_125 = arith.constant 0 : index
    %c0_126 = arith.constant 0 : index
    %135 = vector.load %arg5[%c0_125, %c0_126] : memref<1x4xf32, #tpu.memory_space<vmem>>, vector<1x4xf32>
    %136 = vector.broadcast %135 : vector<1x4xf32> to vector<256x4xf32>
    %137 = arith.addf %134, %136 : vector<256x4xf32>
    %138 = arith.addf %137, %3 : vector<256x4xf32>
    %cst_127 = arith.constant 0.000000e+00 : f32
    %139 = vector.broadcast %cst_127 : f32 to vector<256x4xf32>
    %140 = arith.maximumf %138, %139 : vector<256x4xf32>
    %c0_128 = arith.constant 0 : index
    %c0_129 = arith.constant 0 : index
    %c0_130 = arith.constant 0 : index
    %141 = vector.load %arg8[%c0_128, %c0_129, %c0_130] : memref<1x256x4xf32, #tpu.memory_space<vmem>>, vector<1x256x4xf32>
    %142 = vector.shape_cast %141 : vector<1x256x4xf32> to vector<256x4xf32>
    %143 = vector.shape_cast %140 : vector<256x4xf32> to vector<1x256x4xf32>
    tpu.vector_store %arg8[%c0_128, %c0_129, %c0_130], %143 {strides = array<i32>} : memref<1x256x4xf32, #tpu.memory_space<vmem>>, vector<1x256x4xf32>,
    return
  }
  func.func @transform_0(%arg0: i32) -> (i32, i32, i32) {
    %c0_i32 = arith.constant 0 : i32
    %c0_i32_0 = arith.constant 0 : i32
    %c0_i32_1 = arith.constant 0 : i32
    return %arg0, %c0_i32, %c0_i32_0 : i32, i32, i32
  }
  func.func @transform_1(%arg0: i32) -> (i32, i32, i32) {
    %c0_i32 = arith.constant 0 : i32
    %c0_i32_0 = arith.constant 0 : i32
    %c0_i32_1 = arith.constant 0 : i32
    %c0_i32_2 = arith.constant 0 : i32
    return %c0_i32, %c0_i32_0, %c0_i32_1 : i32, i32, i32
  }
  func.func @transform_2(%arg0: i32) -> (i32, i32) {
    %c0_i32 = arith.constant 0 : i32
    %c0_i32_0 = arith.constant 0 : i32
    %c0_i32_1 = arith.constant 0 : i32
    return %c0_i32, %c0_i32_0 : i32, i32
  }
  func.func @transform_3(%arg0: i32) -> (i32, i32, i32) {
    %c0_i32 = arith.constant 0 : i32
    %c0_i32_0 = arith.constant 0 : i32
    %c0_i32_1 = arith.constant 0 : i32
    %c0_i32_2 = arith.constant 0 : i32
    return %c0_i32, %c0_i32_0, %c0_i32_1 : i32, i32, i32
  }
  func.func @transform_4(%arg0: i32) -> (i32, i32) {
    %c0_i32 = arith.constant 0 : i32
    %c0_i32_0 = arith.constant 0 : i32
    %c0_i32_1 = arith.constant 0 : i32
    return %c0_i32, %c0_i32_0 : i32, i32
  }
  func.func @transform_5(%arg0: i32) -> (i32, i32) {
    %c0_i32 = arith.constant 0 : i32
    %c0_i32_0 = arith.constant 0 : i32
    %c0_i32_1 = arith.constant 0 : i32
    return %c0_i32, %c0_i32_0 : i32, i32
  }
  func.func @transform_6(%arg0: i32) -> (i32, i32) {
    %c0_i32 = arith.constant 0 : i32
    %c0_i32_0 = arith.constant 0 : i32
    %c0_i32_1 = arith.constant 0 : i32
    return %c0_i32, %c0_i32_0 : i32, i32
  }
  func.func @transform_7(%arg0: i32) -> (i32, i32, i32) {
    %c0_i32 = arith.constant 0 : i32
    %c0_i32_0 = arith.constant 0 : i32
    %c0_i32_1 = arith.constant 0 : i32
    return %arg0, %c0_i32, %c0_i32_0 : i32, i32, i32
  }
}

</mosaic_0001>

<llo_original>
// kernel: tpu_custom_call.1
$region0: #{tpu_custom_call.1}
  #allocation0 [shape = 'u32[]', space=smem, size = 0x4, offset = 0x4, fixed_abs, tag = 'smem constant byte address 0x4 - core index']
  #allocation1 [shape = 'u32[72,128]{1,0:T(1,128)}', space=vmem, size = 0x9000, scoped, tag = 'internal scratch']
  #allocation2 [shape = 'f32[304,4]{1,0:T(8,128)}', space=vmem, size = 0x26000, scoped, tag = 'scratch operand']
  %s0 = inlined_call_operand.vmem [shape: f32[2,304,4], index: 0, kind: input, shape index: {}]
  %s1 = inlined_call_operand.vmem [shape: f32[9,4,4], index: 1, kind: input, shape index: {}]
  %s2 = inlined_call_operand.vmem [shape: f32[1,4], index: 2, kind: input, shape index: {}]
  %s3 = inlined_call_operand.vmem [shape: f32[9,4,4], index: 3, kind: input, shape index: {}]
  %s4 = inlined_call_operand.vmem [shape: f32[1,4], index: 4, kind: input, shape index: {}]
  %s5 = inlined_call_operand.vmem [shape: f32[256,1], index: 5, kind: input, shape index: {}]
  %s6 = inlined_call_operand.vmem [shape: f32[256,1], index: 6, kind: input, shape index: {}]
  %s7 = inlined_call_operand.vmem [shape: f32[2,256,4], index: 7, kind: output, shape index: {}]
  %s8 = sld [smem:[#allocation0]]
  $region61: #{tpu_custom_call.1} parent=0
    _
  %s10 = ssub.s32 1, %s8
  %s11 = scalar_select 0, %s10, %s8
  loop: start=0, step=1, limit=4
  $region2: #{tpu_custom_call.1} parent=0 // loop_pre_header
    _
  $region3: #{tpu_custom_call.1} parent=0 // loop_header
    %s13 = sphi 0, %s17
    %p14 = scmp.ge.s32.totalorder %s13, 4
    %s23 = sphi 0, %s25
    %s26 = sphi 0, %s23
    %s27 = sphi 0, %s26
    %s43 = sphi 0, %s27
    %s47 = sphi 0, %s47
    %s49 = sphi 0, %s47
    %s50 = sphi 0, %s49
    %s64 = sphi 0, %s50
    %s68 = sphi 0, %s68
    %s70 = sphi 0, %s68
    %s71 = sphi 0, %s70
    %s85 = sphi 0, %s71
    %s89 = sphi 0, %s89
    %s91 = sphi 0, %s89
    %s92 = sphi 0, %s91
    %s106 = sphi 0, %s92
    %s110 = sphi 0, %s110
    %s112 = sphi 0, %s110
    %s113 = sphi 0, %s112
    %s127 = sphi 0, %s113
    %s131 = sphi 0, %s131
    %s133 = sphi 0, %s131
    %s134 = sphi 0, %s133
    %s148 = sphi 0, %s134
    %s152 = sphi 0, %s152
    %s154 = sphi 0, %s152
    %s155 = sphi 0, %s154
    %s169 = sphi 0, %s155
    %s175 = sphi 0, %s177
    %s178 = sphi 0, %s175
    %s179 = sphi 0, %s178
    %s195 = sphi 0, %s179
  $region4: #{tpu_custom_call.1} parent=0 // loop_header_branch
    %16 = sbr.rel (%p14) target = $region8
  $region5: #{tpu_custom_call.1} parent=0 // loop_body
    %s18 = ssub.s32 %s13, 1
    %s19 = ssub.s32 %s13, 2
    %s20 = sadd.s32 %s13, 1
    %s21 = ssub.s32 %s13, %s20
    %p22 = scmp.eq.s32.totalorder %s21, 0
    %s24 = sadd.s32 %s23, 1
    %s25 = scalar_select %p22, %s23, %s24
    %p28 = pneg %p22
    %p29 = scmp.eq.s32.totalorder %s13, 1
    %p30 = por %p28, %p29
    %p31 = scmp.ne.s32.totalorder %s23, %s26
    %p32 = scmp.eq.s32.totalorder %s13, 0
    %p33 = por %p31, %p32
    %p34 = scmp.ne.s32.totalorder %s23, %s26
    %p35 = scmp.eq.s32.totalorder %s18, 1
    %p36 = por %p34, %p35
    %p37 = scmp.ne.s32.totalorder %s26, %s27
    %p38 = scmp.eq.s32.totalorder %s18, 0
    %p39 = por %p37, %p38
    %p40 = scmp.ne.s32.totalorder %s26, %s27
    %p41 = scmp.eq.s32.totalorder %s19, 1
    %p42 = por %p40, %p41
    %p44 = scmp.ne.s32.totalorder %s27, %s43
    %p45 = scmp.eq.s32.totalorder %s19, 0
    %p46 = por %p44, %p45
    %s48 = sadd.s32 %s47, 1
    %p51 = scmp.eq.s32.totalorder %s13, 1
    %p52 = scmp.ne.s32.totalorder %s47, %s49
    %p53 = scmp.eq.s32.totalorder %s13, 0
    %p54 = por %p52, %p53
    %p55 = scmp.ne.s32.totalorder %s47, %s49
    %p56 = scmp.eq.s32.totalorder %s18, 1
    %p57 = por %p55, %p56
    %p58 = scmp.ne.s32.totalorder %s49, %s50
    %p59 = scmp.eq.s32.totalorder %s18, 0
    %p60 = por %p58, %p59
    %p61 = scmp.ne.s32.totalorder %s49, %s50
    %p62 = scmp.eq.s32.totalorder %s19, 1
    %p63 = por %p61, %p62
    %p65 = scmp.ne.s32.totalorder %s50, %s64
    %p66 = scmp.eq.s32.totalorder %s19, 0
    %p67 = por %p65, %p66
    %s69 = sadd.s32 %s68, 1
    %p72 = scmp.eq.s32.totalorder %s13, 1
    %p73 = scmp.ne.s32.totalorder %s68, %s70
    %p74 = scmp.eq.s32.totalorder %s13, 0
    %p75 = por %p73, %p74
    %p76 = scmp.ne.s32.totalorder %s68, %s70
    %p77 = scmp.eq.s32.totalorder %s18, 1
    %p78 = por %p76, %p77
    %p79 = scmp.ne.s32.totalorder %s70, %s71
    %p80 = scmp.eq.s32.totalorder %s18, 0
    %p81 = por %p79, %p80
    %p82 = scmp.ne.s32.totalorder %s70, %s71
    %p83 = scmp.eq.s32.totalorder %s19, 1
    %p84 = por %p82, %p83
    %p86 = scmp.ne.s32.totalorder %s71, %s85
    %p87 = scmp.eq.s32.totalorder %s19, 0
    %p88 = por %p86, %p87
    %s90 = sadd.s32 %s89, 1
    %p93 = scmp.eq.s32.totalorder %s13, 1
    %p94 = scmp.ne.s32.totalorder %s89, %s91
    %p95 = scmp.eq.s32.totalorder %s13, 0
    %p96 = por %p94, %p95
    %p97 = scmp.ne.s32.totalorder %s89, %s91
    %p98 = scmp.eq.s32.totalorder %s18, 1
    %p99 = por %p97, %p98
    %p100 = scmp.ne.s32.totalorder %s91, %s92
    %p101 = scmp.eq.s32.totalorder %s18, 0
    %p102 = por %p100, %p101
    %p103 = scmp.ne.s32.totalorder %s91, %s92
    %p104 = scmp.eq.s32.totalorder %s19, 1
    %p105 = por %p103, %p104
    %p107 = scmp.ne.s32.totalorder %s92, %s106
    %p108 = scmp.eq.s32.totalorder %s19, 0
    %p109 = por %p107, %p108
    %s111 = sadd.s32 %s110, 1
    %p114 = scmp.eq.s32.totalorder %s13, 1
    %p115 = scmp.ne.s32.totalorder %s110, %s112
    %p116 = scmp.eq.s32.totalorder %s13, 0
    %p117 = por %p115, %p116
    %p118 = scmp.ne.s32.totalorder %s110, %s112
    %p119 = scmp.eq.s32.totalorder %s18, 1
    %p120 = por %p118, %p119
    %p121 = scmp.ne.s32.totalorder %s112, %s113
    %p122 = scmp.eq.s32.totalorder %s18, 0
    %p123 = por %p121, %p122
    %p124 = scmp.ne.s32.totalorder %s112, %s113
    %p125 = scmp.eq.s32.totalorder %s19, 1
    %p126 = por %p124, %p125
    %p128 = scmp.ne.s32.totalorder %s113, %s127
    %p129 = scmp.eq.s32.totalorder %s19, 0
    %p130 = por %p128, %p129
    %s132 = sadd.s32 %s131, 1
    %p135 = scmp.eq.s32.totalorder %s13, 1
    %p136 = scmp.ne.s32.totalorder %s131, %s133
    %p137 = scmp.eq.s32.totalorder %s13, 0
    %p138 = por %p136, %p137
    %p139 = scmp.ne.s32.totalorder %s131, %s133
    %p140 = scmp.eq.s32.totalorder %s18, 1
    %p141 = por %p139, %p140
    %p142 = scmp.ne.s32.totalorder %s133, %s134
    %p143 = scmp.eq.s32.totalorder %s18, 0
    %p144 = por %p142, %p143
    %p145 = scmp.ne.s32.totalorder %s133, %s134
    %p146 = scmp.eq.s32.totalorder %s19, 1
    %p147 = por %p145, %p146
    %p149 = scmp.ne.s32.totalorder %s134, %s148
    %p150 = scmp.eq.s32.totalorder %s19, 0
    %p151 = por %p149, %p150
    %s153 = sadd.s32 %s152, 1
    %p156 = scmp.eq.s32.totalorder %s13, 1
    %p157 = scmp.ne.s32.totalorder %s152, %s154
    %p158 = scmp.eq.s32.totalorder %s13, 0
    %p159 = por %p157, %p158
    %p160 = scmp.ne.s32.totalorder %s152, %s154
    %p161 = scmp.eq.s32.totalorder %s18, 1
    %p162 = por %p160, %p161
    %p163 = scmp.ne.s32.totalorder %s154, %s155
    %p164 = scmp.eq.s32.totalorder %s18, 0
    %p165 = por %p163, %p164
    %p166 = scmp.ne.s32.totalorder %s154, %s155
    %p167 = scmp.eq.s32.totalorder %s19, 1
    %p168 = por %p166, %p167
    %p170 = scmp.ne.s32.totalorder %s155, %s169
    %p171 = scmp.eq.s32.totalorder %s19, 0
    %p172 = por %p170, %p171
    %s173 = ssub.s32 %s13, %s20
    %p174 = scmp.eq.s32.totalorder %s173, 0
    %s176 = sadd.s32 %s175, 1
    %s177 = scalar_select %p174, %s175, %s176
    %p180 = pneg %p174
    %p181 = scmp.eq.s32.totalorder %s13, 1
    %p182 = por %p180, %p181
    %p183 = scmp.ne.s32.totalorder %s175, %s178
    %p184 = scmp.eq.s32.totalorder %s13, 0
    %p185 = por %p183, %p184
    %p186 = scmp.ne.s32.totalorder %s175, %s178
    %p187 = scmp.eq.s32.totalorder %s18, 1
    %p188 = por %p186, %p187
    %p189 = scmp.ne.s32.totalorder %s178, %s179
    %p190 = scmp.eq.s32.totalorder %s18, 0
    %p191 = por %p189, %p190
    %p192 = scmp.ne.s32.totalorder %s178, %s179
    %p193 = scmp.eq.s32.totalorder %s19, 1
    %p194 = por %p192, %p193
    %p196 = scmp.ne.s32.totalorder %s179, %s195
    %p197 = scmp.eq.s32.totalorder %s19, 0
    %p198 = por %p196, %p197
    %p199 = scmp.le.s32.totalorder 1, %s13
    %p200 = scmp.lt.s32.totalorder %s13, 3
    %p201 = pnand %p199, %p200
    %p202 = pneg %p201
    // Predicated region
    $region9: #{tpu_custom_call.1} parent=5 // pred_check
      _
    $region10: #{tpu_custom_call.1} parent=5 // pred_check_branch
      %204 = sbr.rel (%p201) target = $region12
    $region11: #{tpu_custom_call.1} parent=5 // pred_region
      %s205 = ssub.s32 %s13, 1
      // Predicated region
      $region13: #{tpu_custom_call.1} parent=11 // pred_check
        %p206 = pneg %p60
      $region14: #{tpu_custom_call.1} parent=11 // pred_check_branch
        %208 = sbr.rel (%p206) target = $region16
      $region15: #{tpu_custom_call.1} parent=11 // pred_region
        _
      $region16: #{tpu_custom_call.1} parent=11 // pred_fallthru
        _
      // Predicated region
      $region17: #{tpu_custom_call.1} parent=11 // pred_check
        %p209 = pneg %p81
      $region18: #{tpu_custom_call.1} parent=11 // pred_check_branch
        %211 = sbr.rel (%p209) target = $region20
      $region19: #{tpu_custom_call.1} parent=11 // pred_region
        _
      $region20: #{tpu_custom_call.1} parent=11 // pred_fallthru
        _
      // Predicated region
      $region21: #{tpu_custom_call.1} parent=11 // pred_check
        %p212 = pneg %p102
      $region22: #{tpu_custom_call.1} parent=11 // pred_check_branch
        %214 = sbr.rel (%p212) target = $region24
      $region23: #{tpu_custom_call.1} parent=11 // pred_region
        _
      $region24: #{tpu_custom_call.1} parent=11 // pred_fallthru
        _
      // Predicated region
      $region25: #{tpu_custom_call.1} parent=11 // pred_check
        %p215 = pneg %p123
      $region26: #{tpu_custom_call.1} parent=11 // pred_check_branch
        %217 = sbr.rel (%p215) target = $region28
      $region27: #{tpu_custom_call.1} parent=11 // pred_region
        _
      $region28: #{tpu_custom_call.1} parent=11 // pred_fallthru
        _
      // Predicated region
      $region29: #{tpu_custom_call.1} parent=11 // pred_check
        %p218 = pneg %p144
      $region30: #{tpu_custom_call.1} parent=11 // pred_check_branch
        %220 = sbr.rel (%p218) target = $region32
      $region31: #{tpu_custom_call.1} parent=11 // pred_region
        _
      $region32: #{tpu_custom_call.1} parent=11 // pred_fallthru
        _
      // Predicated region
      $region33: #{tpu_custom_call.1} parent=11 // pred_check
        %p221 = pneg %p165
      $region34: #{tpu_custom_call.1} parent=11 // pred_check_branch
        %223 = sbr.rel (%p221) target = $region36
      $region35: #{tpu_custom_call.1} parent=11 // pred_region
        _
      $region36: #{tpu_custom_call.1} parent=11 // pred_fallthru
        _
    $region12: #{tpu_custom_call.1} parent=5 // pred_fallthru
      _
    %p224 = scmp.lt.s32.totalorder %s13, 2
    // Predicated region
    $region37: #{tpu_custom_call.1} parent=5 // pred_check
      %p225 = pneg %p224
    $region38: #{tpu_custom_call.1} parent=5 // pred_check_branch
      %227 = sbr.rel (%p225) target = $region40
    $region39: #{tpu_custom_call.1} parent=5 // pred_region
      // Predicated region
      $region41: #{tpu_custom_call.1} parent=39 // pred_check
        %p228 = pneg %p33
      $region42: #{tpu_custom_call.1} parent=39 // pred_check_branch
        %230 = sbr.rel (%p228) target = $region44
      $region43: #{tpu_custom_call.1} parent=39 // pred_region
        %p231 = scmp.lt.s32.totalorder %s13, 1
        %s232 = scalar_select %p231, %s13, 1
        %s233 = smul.addr %s232, 38
        %s234 = smul.addr %s233, 8
        %s235 = scalar_lea.vmem %s0, %s234
      $region44: #{tpu_custom_call.1} parent=39 // pred_fallthru
        _
    $region40: #{tpu_custom_call.1} parent=5 // pred_fallthru
      _
    %p236 = scmp.le.s32.totalorder 1, %s13
    %p237 = scmp.lt.s32.totalorder %s13, 3
    %p238 = pnand %p236, %p237
    %p239 = pneg %p238
    // Predicated region
    $region45: #{tpu_custom_call.1} parent=5 // pred_check
      _
    $region46: #{tpu_custom_call.1} parent=5 // pred_check_branch
      %241 = sbr.rel (%p238) target = $region48
    $region47: #{tpu_custom_call.1} parent=5 // pred_region
      %s242 = ssub.s32 %s13, 1
      %p243 = scmp.lt.s32.totalorder %s18, 1
      %s244 = scalar_select %p243, %s18, 1
      %s245 = smul.addr %s244, 38
      %s246 = smul.addr %s245, 8
      %s247 = scalar_lea.vmem %s0, %s246
      %p248 = pneg %p39
      %p249 = pneg %p36
      %p250 = pneg %p60
      %p251 = pneg %p57
      %p252 = pneg %p81
      %p253 = pneg %p78
      %p254 = pneg %p102
      %p255 = pneg %p99
      %p256 = pneg %p123
      %p257 = pneg %p120
      %p258 = pneg %p144
      %p259 = pneg %p141
      %p260 = pneg %p165
      %p261 = pneg %p162
      %p262 = pneg %p191
      %p263 = pneg %p188
      %p264 = scmp.lt.s32.totalorder %s18, 1
      %s265 = scalar_select %p264, %s18, 1
      %s266 = smul.addr %s265, 32
      %s267 = smul.addr %s266, 8
      %s268 = scalar_lea.vmem %s7, %s267
      %p269 = scmp.lt.s32.totalorder %s18, 1
      %s270 = scalar_select %p269, %s18, 1
      %s271 = smul.addr %s270, 38
      %s272 = smul.addr %s271, 8
      %s273 = scalar_lea.vmem %s0, %s272
      %p274 = scmp.lt.s32.totalorder %s18, 1
      %s275 = scalar_select %p274, %s18, 1
      %s276 = smul.addr %s275, 32
      %s277 = smul.addr %s276, 8
      %s278 = scalar_lea.vmem %s7, %s277
      %v279 = vld [vmem:[%s5] sm:$0xff]
      %v280 = vld [vmem:[%s5 + $0x8] sm:$0xff]
      %v281 = vld [vmem:[%s5 + $0x10] sm:$0xff]
      %v282 = vld [vmem:[%s5 + $0x18] sm:$0xff]
      %v283 = vld [vmem:[%s5 + $0x20] sm:$0xff]
      %v284 = vld [vmem:[%s5 + $0x28] sm:$0xff]
      %v285 = vld [vmem:[%s5 + $0x30] sm:$0xff]
      %v286 = vld [vmem:[%s5 + $0x38] sm:$0xff]
      %v287 = vld [vmem:[%s5 + $0x40] sm:$0xff]
      %v288 = vld [vmem:[%s5 + $0x48] sm:$0xff]
      %v289 = vld [vmem:[%s5 + $0x50] sm:$0xff]
      %v290 = vld [vmem:[%s5 + $0x58] sm:$0xff]
      %v291 = vld [vmem:[%s5 + $0x60] sm:$0xff]
      %v292 = vld [vmem:[%s5 + $0x68] sm:$0xff]
      %v293 = vld [vmem:[%s5 + $0x70] sm:$0xff]
      %v294 = vld [vmem:[%s5 + $0x78] sm:$0xff]
      %v295 = vld [vmem:[%s5 + $0x80] sm:$0xff]
      %v296 = vld [vmem:[%s5 + $0x88] sm:$0xff]
      %v297 = vld [vmem:[%s5 + $0x90] sm:$0xff]
      %v298 = vld [vmem:[%s5 + $0x98] sm:$0xff]
      %v299 = vld [vmem:[%s5 + $0xa0] sm:$0xff]
      %v300 = vld [vmem:[%s5 + $0xa8] sm:$0xff]
      %v301 = vld [vmem:[%s5 + $0xb0] sm:$0xff]
      %v302 = vld [vmem:[%s5 + $0xb8] sm:$0xff]
      %v303 = vld [vmem:[%s5 + $0xc0] sm:$0xff]
      %v304 = vld [vmem:[%s5 + $0xc8] sm:$0xff]
      %v305 = vld [vmem:[%s5 + $0xd0] sm:$0xff]
      %v306 = vld [vmem:[%s5 + $0xd8] sm:$0xff]
      %v307 = vld [vmem:[%s5 + $0xe0] sm:$0xff]
      %v308 = vld [vmem:[%s5 + $0xe8] sm:$0xff]
      %v309 = vld [vmem:[%s5 + $0xf0] sm:$0xff]
      %v310 = vld [vmem:[%s5 + $0xf8] sm:$0xff]
      %v311 = vld [vmem:[%s6] sm:$0xff]
      %v312 = vld [vmem:[%s6 + $0x8] sm:$0xff]
      %v313 = vld [vmem:[%s6 + $0x10] sm:$0xff]
      %v314 = vld [vmem:[%s6 + $0x18] sm:$0xff]
      %v315 = vld [vmem:[%s6 + $0x20] sm:$0xff]
      %v316 = vld [vmem:[%s6 + $0x28] sm:$0xff]
      %v317 = vld [vmem:[%s6 + $0x30] sm:$0xff]
      %v318 = vld [vmem:[%s6 + $0x38] sm:$0xff]
      %v319 = vld [vmem:[%s6 + $0x40] sm:$0xff]
      %v320 = vld [vmem:[%s6 + $0x48] sm:$0xff]
      %v321 = vld [vmem:[%s6 + $0x50] sm:$0xff]
      %v322 = vld [vmem:[%s6 + $0x58] sm:$0xff]
      %v323 = vld [vmem:[%s6 + $0x60] sm:$0xff]
      %v324 = vld [vmem:[%s6 + $0x68] sm:$0xff]
      %v325 = vld [vmem:[%s6 + $0x70] sm:$0xff]
      %v326 = vld [vmem:[%s6 + $0x78] sm:$0xff]
      %v327 = vld [vmem:[%s6 + $0x80] sm:$0xff]
      %v328 = vld [vmem:[%s6 + $0x88] sm:$0xff]
      %v329 = vld [vmem:[%s6 + $0x90] sm:$0xff]
      %v330 = vld [vmem:[%s6 + $0x98] sm:$0xff]
      %v331 = vld [vmem:[%s6 + $0xa0] sm:$0xff]
      %v332 = vld [vmem:[%s6 + $0xa8] sm:$0xff]
      %v333 = vld [vmem:[%s6 + $0xb0] sm:$0xff]
      %v334 = vld [vmem:[%s6 + $0xb8] sm:$0xff]
      %v335 = vld [vmem:[%s6 + $0xc0] sm:$0xff]
      %v336 = vld [vmem:[%s6 + $0xc8] sm:$0xff]
      %v337 = vld [vmem:[%s6 + $0xd0] sm:$0xff]
      %v338 = vld [vmem:[%s6 + $0xd8] sm:$0xff]
      %v339 = vld [vmem:[%s6 + $0xe0] sm:$0xff]
      %v340 = vld [vmem:[%s6 + $0xe8] sm:$0xff]
      %v341 = vld [vmem:[%s6 + $0xf0] sm:$0xff]
      %v342 = vld [vmem:[%s6 + $0xf8] sm:$0xff]
      %v343 = vld [vmem:[%s273 + $0x18] sm:$0xff]
      %v344 = vld [vmem:[%s273 + $0x20] sm:$0xff]
      %v345 = vld [vmem:[%s273 + $0x28] sm:$0xff]
      %v346 = vld [vmem:[%s273 + $0x30] sm:$0xff]
      %v347 = vld [vmem:[%s273 + $0x38] sm:$0xff]
      %v348 = vld [vmem:[%s273 + $0x40] sm:$0xff]
      %v349 = vld [vmem:[%s273 + $0x48] sm:$0xff]
      %v350 = vld [vmem:[%s273 + $0x50] sm:$0xff]
      %v351 = vld [vmem:[%s273 + $0x58] sm:$0xff]
      %v352 = vld [vmem:[%s273 + $0x60] sm:$0xff]
      %v353 = vld [vmem:[%s273 + $0x68] sm:$0xff]
      %v354 = vld [vmem:[%s273 + $0x70] sm:$0xff]
      %v355 = vld [vmem:[%s273 + $0x78] sm:$0xff]
      %v356 = vld [vmem:[%s273 + $0x80] sm:$0xff]
      %v357 = vld [vmem:[%s273 + $0x88] sm:$0xff]
      %v358 = vld [vmem:[%s273 + $0x90] sm:$0xff]
      %v359 = vld [vmem:[%s273 + $0x98] sm:$0xff]
      %v360 = vld [vmem:[%s273 + $0xa0] sm:$0xff]
      %v361 = vld [vmem:[%s273 + $0xa8] sm:$0xff]
      %v362 = vld [vmem:[%s273 + $0xb0] sm:$0xff]
      %v363 = vld [vmem:[%s273 + $0xb8] sm:$0xff]
      %v364 = vld [vmem:[%s273 + $0xc0] sm:$0xff]
      %v365 = vld [vmem:[%s273 + $0xc8] sm:$0xff]
      %v366 = vld [vmem:[%s273 + $0xd0] sm:$0xff]
      %v367 = vld [vmem:[%s273 + $0xd8] sm:$0xff]
      %v368 = vld [vmem:[%s273 + $0xe0] sm:$0xff]
      %v369 = vld [vmem:[%s273 + $0xe8] sm:$0xff]
      %v370 = vld [vmem:[%s273 + $0xf0] sm:$0xff]
      %v371 = vld [vmem:[%s273 + $0xf8] sm:$0xff]
      %v372 = vld [vmem:[%s273 + $0x100] sm:$0xff]
      %v373 = vld [vmem:[%s273 + $0x108] sm:$0xff]
      %v374 = vld [vmem:[%s273 + $0x110] sm:$0xff]
      %v375 = vld [vmem:[%s273 + $0x7] sm:$0xff]
      %v376 = vld [vmem:[%s273 + $0xf] sm:$0xff]
      %v377 = vld [vmem:[%s273 + $0x17] sm:$0xff]
      %v378 = vld [vmem:[%s273 + $0x1f] sm:$0xff]
      %v379 = vld [vmem:[%s273 + $0x27] sm:$0xff]
      %v380 = vld [vmem:[%s273 + $0x2f] sm:$0xff]
      %v381 = vld [vmem:[%s273 + $0x37] sm:$0xff]
      %v382 = vld [vmem:[%s273 + $0x3f] sm:$0xff]
      %v383 = vld [vmem:[%s273 + $0x47] sm:$0xff]
      %v384 = vld [vmem:[%s273 + $0x4f] sm:$0xff]
      %v385 = vld [vmem:[%s273 + $0x57] sm:$0xff]
      %v386 = vld [vmem:[%s273 + $0x5f] sm:$0xff]
      %v387 = vld [vmem:[%s273 + $0x67] sm:$0xff]
      %v388 = vld [vmem:[%s273 + $0x6f] sm:$0xff]
      %v389 = vld [vmem:[%s273 + $0x77] sm:$0xff]
      %v390 = vld [vmem:[%s273 + $0x7f] sm:$0xff]
      %v391 = vld [vmem:[%s273 + $0x87] sm:$0xff]
      %v392 = vld [vmem:[%s273 + $0x8f] sm:$0xff]
      %v393 = vld [vmem:[%s273 + $0x97] sm:$0xff]
      %v394 = vld [vmem:[%s273 + $0x9f] sm:$0xff]
      %v395 = vld [vmem:[%s273 + $0xa7] sm:$0xff]
      %v396 = vld [vmem:[%s273 + $0xaf] sm:$0xff]
      %v397 = vld [vmem:[%s273 + $0xb7] sm:$0xff]
      %v398 = vld [vmem:[%s273 + $0xbf] sm:$0xff]
      %v399 = vld [vmem:[%s273 + $0xc7] sm:$0xff]
      %v400 = vld [vmem:[%s273 + $0xcf] sm:$0xff]
      %v401 = vld [vmem:[%s273 + $0xd7] sm:$0xff]
      %v402 = vld [vmem:[%s273 + $0xdf] sm:$0xff]
      %v403 = vld [vmem:[%s273 + $0xe7] sm:$0xff]
      %v404 = vld [vmem:[%s273 + $0xef] sm:$0xff]
      %v405 = vld [vmem:[%s273 + $0xf7] sm:$0xff]
      %v406 = vld [vmem:[%s273 + $0xff] sm:$0xff]
      %v407 = vld [vmem:[%s1] sm:$0xf]
      %v408 = vld [vmem:[%s273 + $0x107] sm:$0xff]
      %v409 = vld [vmem:[%s273 + $0x10f] sm:$0xff]
      %s410 = scalar_lea.vmem %s1, 12
      %v411 = vld [vmem:[%s410] sm:$0xf]
      %vm412 = vcmask 31744
      %v414 = vsel %vm412, %v377, 0
      %v417 = vsel %vm412, %v378, 0
      %v420 = vsel %vm412, %v379, 0
      %v423 = vsel %vm412, %v380, 0
      %v426 = vsel %vm412, %v381, 0
      %v429 = vsel %vm412, %v382, 0
      %v432 = vsel %vm412, %v383, 0
      %v435 = vsel %vm412, %v384, 0
      %v438 = vsel %vm412, %v385, 0
      %v441 = vsel %vm412, %v386, 0
      %v444 = vsel %vm412, %v387, 0
      %v447 = vsel %vm412, %v388, 0
      %v450 = vsel %vm412, %v389, 0
      %v453 = vsel %vm412, %v390, 0
      %v456 = vsel %vm412, %v391, 0
      %v459 = vsel %vm412, %v392, 0
      %v462 = vsel %vm412, %v393, 0
      %v465 = vsel %vm412, %v394, 0
      %v468 = vsel %vm412, %v395, 0
      %v471 = vsel %vm412, %v396, 0
      %v474 = vsel %vm412, %v397, 0
      %v477 = vsel %vm412, %v398, 0
      %v480 = vsel %vm412, %v399, 0
      %v483 = vsel %vm412, %v400, 0
      %v486 = vsel %vm412, %v401, 0
      %v489 = vsel %vm412, %v402, 0
      %v492 = vsel %vm412, %v403, 0
      %v495 = vsel %vm412, %v404, 0
      %v498 = vsel %vm412, %v405, 0
      %v501 = vsel %vm412, %v406, 0
      %v504 = vsel %vm412, %v408, 0
      %v507 = vsel %vm412, %v409, 0
      %vm509 = vcmask 1043456
      %v511 = vsel %vm509, %v411, 0
      %513 = vmatpush.msra.mxu0 0.0
      %514 = vmatpush.msra.mxu0 0.0
      %515 = vmatpush.msra.mxu0 0.0
      %516 = vmatpush.msra.mxu0 0.0
      %517 = vmatpush.msra.mxu0 0.0
      %518 = vmatpush.msra.mxu0 0.0
      %519 = vmatpush.msra.mxu0 0.0
      %520 = vmatpush.msra.mxu0 0.0
      %521 = vmatpush.msra.mxu0 0.0
      %522 = vmatpush.msra.mxu0 0.0
      %523 = vmatpush.msra.mxu0 0.0
      %524 = vmatpush.msra.mxu0 0.0
      %525 = vmatpush.msra.mxu0 0.0
      %526 = vmatpush.msra.mxu0 0.0
      %527 = vmatpush.msra.mxu0 0.0
      %528 = vmatpush.msra.mxu0 %v511
      %529 = vmatmul.f32.gmra.mxu0 %v414
      %v530 = vpop.f32.mrf.mxu0
      %v531 = vadd.f32 0.0, %v530
      %532 = vmatmul.f32.gmra.mxu0 %v417
      %v533 = vpop.f32.mrf.mxu0
      %v534 = vadd.f32 0.0, %v533
      %535 = vmatmul.f32.gmra.mxu0 %v420
      %v536 = vpop.f32.mrf.mxu0
      %v537 = vadd.f32 0.0, %v536
      %538 = vmatmul.f32.gmra.mxu0 %v423
      %v539 = vpop.f32.mrf.mxu0
      %v540 = vadd.f32 0.0, %v539
      %541 = vmatmul.f32.gmra.mxu0 %v426
      %v542 = vpop.f32.mrf.mxu0
      %v543 = vadd.f32 0.0, %v542
      %544 = vmatmul.f32.gmra.mxu0 %v429
      %v545 = vpop.f32.mrf.mxu0
      %v546 = vadd.f32 0.0, %v545
      %547 = vmatmul.f32.gmra.mxu0 %v432
      %v548 = vpop.f32.mrf.mxu0
      %v549 = vadd.f32 0.0, %v548
      %550 = vmatmul.f32.gmra.mxu0 %v435
      %v551 = vpop.f32.mrf.mxu0
      %v552 = vadd.f32 0.0, %v551
      %553 = vmatmul.f32.gmra.mxu0 %v438
      %v554 = vpop.f32.mrf.mxu0
      %v555 = vadd.f32 0.0, %v554
      %556 = vmatmul.f32.gmra.mxu0 %v441
      %v557 = vpop.f32.mrf.mxu0
      %v558 = vadd.f32 0.0, %v557
      %559 = vmatmul.f32.gmra.mxu0 %v444
      %v560 = vpop.f32.mrf.mxu0
      %v561 = vadd.f32 0.0, %v560
      %562 = vmatmul.f32.gmra.mxu0 %v447
      %v563 = vpop.f32.mrf.mxu0
      %v564 = vadd.f32 0.0, %v563
      %565 = vmatmul.f32.gmra.mxu0 %v450
      %v566 = vpop.f32.mrf.mxu0
      %v567 = vadd.f32 0.0, %v566
      %568 = vmatmul.f32.gmra.mxu0 %v453
      %v569 = vpop.f32.mrf.mxu0
      %v570 = vadd.f32 0.0, %v569
      %571 = vmatmul.f32.gmra.mxu0 %v456
      %v572 = vpop.f32.mrf.mxu0
      %v573 = vadd.f32 0.0, %v572
      %574 = vmatmul.f32.gmra.mxu0 %v459
      %v575 = vpop.f32.mrf.mxu0
      %v576 = vadd.f32 0.0, %v575
      %577 = vmatmul.f32.gmra.mxu0 %v462
      %v578 = vpop.f32.mrf.mxu0
      %v579 = vadd.f32 0.0, %v578
      %580 = vmatmul.f32.gmra.mxu0 %v465
      %v581 = vpop.f32.mrf.mxu0
      %v582 = vadd.f32 0.0, %v581
      %583 = vmatmul.f32.gmra.mxu0 %v468
      %v584 = vpop.f32.mrf.mxu0
      %v585 = vadd.f32 0.0, %v584
      %586 = vmatmul.f32.gmra.mxu0 %v471
      %v587 = vpop.f32.mrf.mxu0
      %v588 = vadd.f32 0.0, %v587
      %589 = vmatmul.f32.gmra.mxu0 %v474
      %v590 = vpop.f32.mrf.mxu0
      %v591 = vadd.f32 0.0, %v590
      %592 = vmatmul.f32.gmra.mxu0 %v477
      %v593 = vpop.f32.mrf.mxu0
      %v594 = vadd.f32 0.0, %v593
      %595 = vmatmul.f32.gmra.mxu0 %v480
      %v596 = vpop.f32.mrf.mxu0
      %v597 = vadd.f32 0.0, %v596
      %598 = vmatmul.f32.gmra.mxu0 %v483
      %v599 = vpop.f32.mrf.mxu0
      %v600 = vadd.f32 0.0, %v599
      %601 = vmatmul.f32.gmra.mxu0 %v486
      %v602 = vpop.f32.mrf.mxu0
      %v603 = vadd.f32 0.0, %v602
      %604 = vmatmul.f32.gmra.mxu0 %v489
      %v605 = vpop.f32.mrf.mxu0
      %v606 = vadd.f32 0.0, %v605
      %607 = vmatmul.f32.gmra.mxu0 %v492
      %v608 = vpop.f32.mrf.mxu0
      %v609 = vadd.f32 0.0, %v608
      %610 = vmatmul.f32.gmra.mxu0 %v495
      %v611 = vpop.f32.mrf.mxu0
      %v612 = vadd.f32 0.0, %v611
      %613 = vmatmul.f32.gmra.mxu0 %v498
      %v614 = vpop.f32.mrf.mxu0
      %v615 = vadd.f32 0.0, %v614
      %616 = vmatmul.f32.gmra.mxu0 %v501
      %v617 = vpop.f32.mrf.mxu0
      %v618 = vadd.f32 0.0, %v617
      %619 = vmatmul.f32.gmra.mxu0 %v504
      %v620 = vpop.f32.mrf.mxu0
      %v621 = vadd.f32 0.0, %v620
      %622 = vmatmul.f32.gmra.mxu0 %v507
      %v623 = vpop.f32.mrf.mxu0
      %v624 = vadd.f32 0.0, %v623
      %625 = vdwg.mxu0
      %v627 = vsel %vm412, %v375, 0
      %v630 = vsel %vm412, %v376, 0
      %v633 = vsel %vm509, %v407, 0
      %635 = vmatpush.msra.mxu0 0.0
      %636 = vmatpush.msra.mxu0 0.0
      %637 = vmatpush.msra.mxu0 0.0
      %638 = vmatpush.msra.mxu0 0.0
      %639 = vmatpush.msra.mxu0 0.0
      %640 = vmatpush.msra.mxu0 0.0
      %641 = vmatpush.msra.mxu0 0.0
      %642 = vmatpush.msra.mxu0 0.0
      %643 = vmatpush.msra.mxu0 0.0
      %644 = vmatpush.msra.mxu0 0.0
      %645 = vmatpush.msra.mxu0 0.0
      %646 = vmatpush.msra.mxu0 0.0
      %647 = vmatpush.msra.mxu0 0.0
      %648 = vmatpush.msra.mxu0 0.0
      %649 = vmatpush.msra.mxu0 0.0
      %650 = vmatpush.msra.mxu0 %v633
      %651 = vmatmul.f32.gmra.mxu0 %v627
      %v652 = vpop.f32.mrf.mxu0
      %v653 = vadd.f32 %v531, %v652
      %654 = vmatmul.f32.gmra.mxu0 %v630
      %v655 = vpop.f32.mrf.mxu0
      %v656 = vadd.f32 %v534, %v655
      %657 = vmatmul.f32.gmra.mxu0 %v414
      %v658 = vpop.f32.mrf.mxu0
      %v659 = vadd.f32 %v537, %v658
      %660 = vmatmul.f32.gmra.mxu0 %v417
      %v661 = vpop.f32.mrf.mxu0
      %v662 = vadd.f32 %v540, %v661
      %663 = vmatmul.f32.gmra.mxu0 %v420
      %v664 = vpop.f32.mrf.mxu0
      %v665 = vadd.f32 %v543, %v664
      %666 = vmatmul.f32.gmra.mxu0 %v423
      %v667 = vpop.f32.mrf.mxu0
      %v668 = vadd.f32 %v546, %v667
      %669 = vmatmul.f32.gmra.mxu0 %v426
      %v670 = vpop.f32.mrf.mxu0
      %v671 = vadd.f32 %v549, %v670
      %672 = vmatmul.f32.gmra.mxu0 %v429
      %v673 = vpop.f32.mrf.mxu0
      %v674 = vadd.f32 %v552, %v673
      %675 = vmatmul.f32.gmra.mxu0 %v432
      %v676 = vpop.f32.mrf.mxu0
      %v677 = vadd.f32 %v555, %v676
      %678 = vmatmul.f32.gmra.mxu0 %v435
      %v679 = vpop.f32.mrf.mxu0
      %v680 = vadd.f32 %v558, %v679
      %681 = vmatmul.f32.gmra.mxu0 %v438
      %v682 = vpop.f32.mrf.mxu0
      %v683 = vadd.f32 %v561, %v682
      %684 = vmatmul.f32.gmra.mxu0 %v441
      %v685 = vpop.f32.mrf.mxu0
      %v686 = vadd.f32 %v564, %v685
      %687 = vmatmul.f32.gmra.mxu0 %v444
      %v688 = vpop.f32.mrf.mxu0
      %v689 = vadd.f32 %v567, %v688
      %690 = vmatmul.f32.gmra.mxu0 %v447
      %v691 = vpop.f32.mrf.mxu0
      %v692 = vadd.f32 %v570, %v691
      %693 = vmatmul.f32.gmra.mxu0 %v450
      %v694 = vpop.f32.mrf.mxu0
      %v695 = vadd.f32 %v573, %v694
      %696 = vmatmul.f32.gmra.mxu0 %v453
      %v697 = vpop.f32.mrf.mxu0
      %v698 = vadd.f32 %v576, %v697
      %699 = vmatmul.f32.gmra.mxu0 %v456
      %v700 = vpop.f32.mrf.mxu0
      %v701 = vadd.f32 %v579, %v700
      %702 = vmatmul.f32.gmra.mxu0 %v459
      %v703 = vpop.f32.mrf.mxu0
      %v704 = vadd.f32 %v582, %v703
      %705 = vmatmul.f32.gmra.mxu0 %v462
      %v706 = vpop.f32.mrf.mxu0
      %v707 = vadd.f32 %v585, %v706
      %708 = vmatmul.f32.gmra.mxu0 %v465
      %v709 = vpop.f32.mrf.mxu0
      %v710 = vadd.f32 %v588, %v709
      %711 = vmatmul.f32.gmra.mxu0 %v468
      %v712 = vpop.f32.mrf.mxu0
      %v713 = vadd.f32 %v591, %v712
      %714 = vmatmul.f32.gmra.mxu0 %v471
      %v715 = vpop.f32.mrf.mxu0
      %v716 = vadd.f32 %v594, %v715
      %717 = vmatmul.f32.gmra.mxu0 %v474
      %v718 = vpop.f32.mrf.mxu0
      %v719 = vadd.f32 %v597, %v718
      %720 = vmatmul.f32.gmra.mxu0 %v477
      %v721 = vpop.f32.mrf.mxu0
      %v722 = vadd.f32 %v600, %v721
      %723 = vmatmul.f32.gmra.mxu0 %v480
      %v724 = vpop.f32.mrf.mxu0
      %v725 = vadd.f32 %v603, %v724
      %726 = vmatmul.f32.gmra.mxu0 %v483
      %v727 = vpop.f32.mrf.mxu0
      %v728 = vadd.f32 %v606, %v727
      %729 = vmatmul.f32.gmra.mxu0 %v486
      %v730 = vpop.f32.mrf.mxu0
      %v731 = vadd.f32 %v609, %v730
      %732 = vmatmul.f32.gmra.mxu0 %v489
      %v733 = vpop.f32.mrf.mxu0
      %v734 = vadd.f32 %v612, %v733
      %735 = vmatmul.f32.gmra.mxu0 %v492
      %v736 = vpop.f32.mrf.mxu0
      %v737 = vadd.f32 %v615, %v736
      %738 = vmatmul.f32.gmra.mxu0 %v495
      %v739 = vpop.f32.mrf.mxu0
      %v740 = vadd.f32 %v618, %v739
      %741 = vmatmul.f32.gmra.mxu0 %v498
      %v742 = vpop.f32.mrf.mxu0
      %v743 = vadd.f32 %v621, %v742
      %744 = vmatmul.f32.gmra.mxu0 %v501
      %v745 = vpop.f32.mrf.mxu0
      %v746 = vadd.f32 %v624, %v745
      %747 = vdwg.mxu0
      %v748 = vld [vmem:[%s273 + $0x27] sm:$0xff]
      %v749 = vld [vmem:[%s273 + $0x2f] sm:$0xff]
      %v750 = vld [vmem:[%s273 + $0x37] sm:$0xff]
      %v751 = vld [vmem:[%s273 + $0x3f] sm:$0xff]
      %v752 = vld [vmem:[%s273 + $0x47] sm:$0xff]
      %v753 = vld [vmem:[%s273 + $0x4f] sm:$0xff]
      %v754 = vld [vmem:[%s273 + $0x57] sm:$0xff]
      %v755 = vld [vmem:[%s273 + $0x5f] sm:$0xff]
      %v756 = vld [vmem:[%s273 + $0x67] sm:$0xff]
      %v757 = vld [vmem:[%s273 + $0x6f] sm:$0xff]
      %v758 = vld [vmem:[%s273 + $0x77] sm:$0xff]
      %v759 = vld [vmem:[%s273 + $0x7f] sm:$0xff]
      %v760 = vld [vmem:[%s273 + $0x87] sm:$0xff]
      %v761 = vld [vmem:[%s273 + $0x8f] sm:$0xff]
      %v762 = vld [vmem:[%s273 + $0x97] sm:$0xff]
      %v763 = vld [vmem:[%s273 + $0x9f] sm:$0xff]
      %v764 = vld [vmem:[%s273 + $0xa7] sm:$0xff]
      %v765 = vld [vmem:[%s273 + $0xaf] sm:$0xff]
      %v766 = vld [vmem:[%s273 + $0xb7] sm:$0xff]
      %v767 = vld [vmem:[%s273 + $0xbf] sm:$0xff]
      %v768 = vld [vmem:[%s273 + $0xc7] sm:$0xff]
      %v769 = vld [vmem:[%s273 + $0xcf] sm:$0xff]
      %v770 = vld [vmem:[%s273 + $0xd7] sm:$0xff]
      %v771 = vld [vmem:[%s273 + $0xdf] sm:$0xff]
      %v772 = vld [vmem:[%s273 + $0xe7] sm:$0xff]
      %v773 = vld [vmem:[%s273 + $0xef] sm:$0xff]
      %v774 = vld [vmem:[%s273 + $0xf7] sm:$0xff]
      %v775 = vld [vmem:[%s273 + $0xff] sm:$0xff]
      %v776 = vld [vmem:[%s273 + $0x107] sm:$0xff]
      %v777 = vld [vmem:[%s273 + $0x10f] sm:$0xff]
      %v778 = vld [vmem:[%s273 + $0x117] sm:$0xff]
      %v779 = vld [vmem:[%s273 + $0x11f] sm:$0xff]
      %s780 = scalar_lea.vmem %s1, 24
      %v781 = vld [vmem:[%s780] sm:$0xf]
      %v783 = vsel %vm412, %v748, 0
      %v786 = vsel %vm412, %v749, 0
      %v789 = vsel %vm412, %v750, 0
      %v792 = vsel %vm412, %v751, 0
      %v795 = vsel %vm412, %v752, 0
      %v798 = vsel %vm412, %v753, 0
      %v801 = vsel %vm412, %v754, 0
      %v804 = vsel %vm412, %v755, 0
      %v807 = vsel %vm412, %v756, 0
      %v810 = vsel %vm412, %v757, 0
      %v813 = vsel %vm412, %v758, 0
      %v816 = vsel %vm412, %v759, 0
      %v819 = vsel %vm412, %v760, 0
      %v822 = vsel %vm412, %v761, 0
      %v825 = vsel %vm412, %v762, 0
      %v828 = vsel %vm412, %v763, 0
      %v831 = vsel %vm412, %v764, 0
      %v834 = vsel %vm412, %v765, 0
      %v837 = vsel %vm412, %v766, 0
      %v840 = vsel %vm412, %v767, 0
      %v843 = vsel %vm412, %v768, 0
      %v846 = vsel %vm412, %v769, 0
      %v849 = vsel %vm412, %v770, 0
      %v852 = vsel %vm412, %v771, 0
      %v855 = vsel %vm412, %v772, 0
      %v858 = vsel %vm412, %v773, 0
      %v861 = vsel %vm412, %v774, 0
      %v864 = vsel %vm412, %v775, 0
      %v867 = vsel %vm412, %v776, 0
      %v870 = vsel %vm412, %v777, 0
      %v873 = vsel %vm412, %v778, 0
      %v876 = vsel %vm412, %v779, 0
      %v879 = vsel %vm509, %v781, 0
      %881 = vmatpush.msra.mxu0 0.0
      %882 = vmatpush.msra.mxu0 0.0
      %883 = vmatpush.msra.mxu0 0.0
      %884 = vmatpush.msra.mxu0 0.0
      %885 = vmatpush.msra.mxu0 0.0
      %886 = vmatpush.msra.mxu0 0.0
      %887 = vmatpush.msra.mxu0 0.0
      %888 = vmatpush.msra.mxu0 0.0
      %889 = vmatpush.msra.mxu0 0.0
      %890 = vmatpush.msra.mxu0 0.0
      %891 = vmatpush.msra.mxu0 0.0
      %892 = vmatpush.msra.mxu0 0.0
      %893 = vmatpush.msra.mxu0 0.0
      %894 = vmatpush.msra.mxu0 0.0
      %895 = vmatpush.msra.mxu0 0.0
      %896 = vmatpush.msra.mxu0 %v879
      %897 = vmatmul.f32.gmra.mxu0 %v783
      %v898 = vpop.f32.mrf.mxu0
      %v899 = vadd.f32 0.0, %v898
      %900 = vmatmul.f32.gmra.mxu0 %v786
      %v901 = vpop.f32.mrf.mxu0
      %v902 = vadd.f32 0.0, %v901
      %903 = vmatmul.f32.gmra.mxu0 %v789
      %v904 = vpop.f32.mrf.mxu0
      %v905 = vadd.f32 0.0, %v904
      %906 = vmatmul.f32.gmra.mxu0 %v792
      %v907 = vpop.f32.mrf.mxu0
      %v908 = vadd.f32 0.0, %v907
      %909 = vmatmul.f32.gmra.mxu0 %v795
      %v910 = vpop.f32.mrf.mxu0
      %v911 = vadd.f32 0.0, %v910
      %912 = vmatmul.f32.gmra.mxu0 %v798
      %v913 = vpop.f32.mrf.mxu0
      %v914 = vadd.f32 0.0, %v913
      %915 = vmatmul.f32.gmra.mxu0 %v801
      %v916 = vpop.f32.mrf.mxu0
      %v917 = vadd.f32 0.0, %v916
      %918 = vmatmul.f32.gmra.mxu0 %v804
      %v919 = vpop.f32.mrf.mxu0
      %v920 = vadd.f32 0.0, %v919
      %921 = vmatmul.f32.gmra.mxu0 %v807
      %v922 = vpop.f32.mrf.mxu0
      %v923 = vadd.f32 0.0, %v922
      %924 = vmatmul.f32.gmra.mxu0 %v810
      %v925 = vpop.f32.mrf.mxu0
      %v926 = vadd.f32 0.0, %v925
      %927 = vmatmul.f32.gmra.mxu0 %v813
      %v928 = vpop.f32.mrf.mxu0
      %v929 = vadd.f32 0.0, %v928
      %930 = vmatmul.f32.gmra.mxu0 %v816
      %v931 = vpop.f32.mrf.mxu0
      %v932 = vadd.f32 0.0, %v931
      %933 = vmatmul.f32.gmra.mxu0 %v819
      %v934 = vpop.f32.mrf.mxu0
      %v935 = vadd.f32 0.0, %v934
      %936 = vmatmul.f32.gmra.mxu0 %v822
      %v937 = vpop.f32.mrf.mxu0
      %v938 = vadd.f32 0.0, %v937
      %939 = vmatmul.f32.gmra.mxu0 %v825
      %v940 = vpop.f32.mrf.mxu0
      %v941 = vadd.f32 0.0, %v940
      %942 = vmatmul.f32.gmra.mxu0 %v828
      %v943 = vpop.f32.mrf.mxu0
      %v944 = vadd.f32 0.0, %v943
      %945 = vmatmul.f32.gmra.mxu0 %v831
      %v946 = vpop.f32.mrf.mxu0
      %v947 = vadd.f32 0.0, %v946
      %948 = vmatmul.f32.gmra.mxu0 %v834
      %v949 = vpop.f32.mrf.mxu0
      %v950 = vadd.f32 0.0, %v949
      %951 = vmatmul.f32.gmra.mxu0 %v837
      %v952 = vpop.f32.mrf.mxu0
      %v953 = vadd.f32 0.0, %v952
      %954 = vmatmul.f32.gmra.mxu0 %v840
      %v955 = vpop.f32.mrf.mxu0
      %v956 = vadd.f32 0.0, %v955
      %957 = vmatmul.f32.gmra.mxu0 %v843
      %v958 = vpop.f32.mrf.mxu0
      %v959 = vadd.f32 0.0, %v958
      %960 = vmatmul.f32.gmra.mxu0 %v846
      %v961 = vpop.f32.mrf.mxu0
      %v962 = vadd.f32 0.0, %v961
      %963 = vmatmul.f32.gmra.mxu0 %v849
      %v964 = vpop.f32.mrf.mxu0
      %v965 = vadd.f32 0.0, %v964
      %966 = vmatmul.f32.gmra.mxu0 %v852
      %v967 = vpop.f32.mrf.mxu0
      %v968 = vadd.f32 0.0, %v967
      %969 = vmatmul.f32.gmra.mxu0 %v855
      %v970 = vpop.f32.mrf.mxu0
      %v971 = vadd.f32 0.0, %v970
      %972 = vmatmul.f32.gmra.mxu0 %v858
      %v973 = vpop.f32.mrf.mxu0
      %v974 = vadd.f32 0.0, %v973
      %975 = vmatmul.f32.gmra.mxu0 %v861
      %v976 = vpop.f32.mrf.mxu0
      %v977 = vadd.f32 0.0, %v976
      %978 = vmatmul.f32.gmra.mxu0 %v864
      %v979 = vpop.f32.mrf.mxu0
      %v980 = vadd.f32 0.0, %v979
      %981 = vmatmul.f32.gmra.mxu0 %v867
      %v982 = vpop.f32.mrf.mxu0
      %v983 = vadd.f32 0.0, %v982
      %984 = vmatmul.f32.gmra.mxu0 %v870
      %v985 = vpop.f32.mrf.mxu0
      %v986 = vadd.f32 0.0, %v985
      %987 = vmatmul.f32.gmra.mxu0 %v873
      %v988 = vpop.f32.mrf.mxu0
      %v989 = vadd.f32 0.0, %v988
      %990 = vmatmul.f32.gmra.mxu0 %v876
      %v991 = vpop.f32.mrf.mxu0
      %v992 = vadd.f32 0.0, %v991
      %993 = vdwg.mxu0
      %v994 = vadd.f32 %v653, %v899
      %v995 = vadd.f32 %v656, %v902
      %v996 = vadd.f32 %v659, %v905
      %v997 = vadd.f32 %v662, %v908
      %v998 = vadd.f32 %v665, %v911
      %v999 = vadd.f32 %v668, %v914
      %v1000 = vadd.f32 %v671, %v917
      %v1001 = vadd.f32 %v674, %v920
      %v1002 = vadd.f32 %v677, %v923
      %v1003 = vadd.f32 %v680, %v926
      %v1004 = vadd.f32 %v683, %v929
      %v1005 = vadd.f32 %v686, %v932
      %v1006 = vadd.f32 %v689, %v935
      %v1007 = vadd.f32 %v692, %v938
      %v1008 = vadd.f32 %v695, %v941
      %v1009 = vadd.f32 %v698, %v944
      %v1010 = vadd.f32 %v701, %v947
      %v1011 = vadd.f32 %v704, %v950
      %v1012 = vadd.f32 %v707, %v953
      %v1013 = vadd.f32 %v710, %v956
      %v1014 = vadd.f32 %v713, %v959
      %v1015 = vadd.f32 %v716, %v962
      %v1016 = vadd.f32 %v719, %v965
      %v1017 = vadd.f32 %v722, %v968
      %v1018 = vadd.f32 %v725, %v971
      %v1019 = vadd.f32 %v728, %v974
      %v1020 = vadd.f32 %v731, %v977
      %v1021 = vadd.f32 %v734, %v980
      %v1022 = vadd.f32 %v737, %v983
      %v1023 = vadd.f32 %v740, %v986
      %v1024 = vadd.f32 %v743, %v989
      %v1025 = vadd.f32 %v746, %v992
      %1027 = vset.pattern.permute.xlu0 0
      %1028 = vperm.xlu0 %1027, %v279
      %v1029 = vpop.permute.xlu0 %1028
      %1032 = vset.pattern.permute.xlu0 0
      %1033 = vperm.xlu0 %1032, %v280
      %v1034 = vpop.permute.xlu0 %1033
      %1037 = vset.pattern.permute.xlu0 0
      %1038 = vperm.xlu0 %1037, %v281
      %v1039 = vpop.permute.xlu0 %1038
      %1042 = vset.pattern.permute.xlu0 0
      %1043 = vperm.xlu0 %1042, %v282
      %v1044 = vpop.permute.xlu0 %1043
      %1047 = vset.pattern.permute.xlu0 0
      %1048 = vperm.xlu0 %1047, %v283
      %v1049 = vpop.permute.xlu0 %1048
      %1052 = vset.pattern.permute.xlu0 0
      %1053 = vperm.xlu0 %1052, %v284
      %v1054 = vpop.permute.xlu0 %1053
      %1057 = vset.pattern.permute.xlu0 0
      %1058 = vperm.xlu0 %1057, %v285
      %v1059 = vpop.permute.xlu0 %1058
      %1062 = vset.pattern.permute.xlu0 0
      %1063 = vperm.xlu0 %1062, %v286
      %v1064 = vpop.permute.xlu0 %1063
      %1067 = vset.pattern.permute.xlu0 0
      %1068 = vperm.xlu0 %1067, %v287
      %v1069 = vpop.permute.xlu0 %1068
      %1072 = vset.pattern.permute.xlu0 0
      %1073 = vperm.xlu0 %1072, %v288
      %v1074 = vpop.permute.xlu0 %1073
      %1077 = vset.pattern.permute.xlu0 0
      %1078 = vperm.xlu0 %1077, %v289
      %v1079 = vpop.permute.xlu0 %1078
      %1082 = vset.pattern.permute.xlu0 0
      %1083 = vperm.xlu0 %1082, %v290
      %v1084 = vpop.permute.xlu0 %1083
      %1087 = vset.pattern.permute.xlu0 0
      %1088 = vperm.xlu0 %1087, %v291
      %v1089 = vpop.permute.xlu0 %1088
      %1092 = vset.pattern.permute.xlu0 0
      %1093 = vperm.xlu0 %1092, %v292
      %v1094 = vpop.permute.xlu0 %1093
      %1097 = vset.pattern.permute.xlu0 0
      %1098 = vperm.xlu0 %1097, %v293
      %v1099 = vpop.permute.xlu0 %1098
      %1102 = vset.pattern.permute.xlu0 0
      %1103 = vperm.xlu0 %1102, %v294
      %v1104 = vpop.permute.xlu0 %1103
      %1107 = vset.pattern.permute.xlu0 0
      %1108 = vperm.xlu0 %1107, %v295
      %v1109 = vpop.permute.xlu0 %1108
      %1112 = vset.pattern.permute.xlu0 0
      %1113 = vperm.xlu0 %1112, %v296
      %v1114 = vpop.permute.xlu0 %1113
      %1117 = vset.pattern.permute.xlu0 0
      %1118 = vperm.xlu0 %1117, %v297
      %v1119 = vpop.permute.xlu0 %1118
      %1122 = vset.pattern.permute.xlu0 0
      %1123 = vperm.xlu0 %1122, %v298
      %v1124 = vpop.permute.xlu0 %1123
      %1127 = vset.pattern.permute.xlu0 0
      %1128 = vperm.xlu0 %1127, %v299
      %v1129 = vpop.permute.xlu0 %1128
      %1132 = vset.pattern.permute.xlu0 0
      %1133 = vperm.xlu0 %1132, %v300
      %v1134 = vpop.permute.xlu0 %1133
      %1137 = vset.pattern.permute.xlu0 0
      %1138 = vperm.xlu0 %1137, %v301
      %v1139 = vpop.permute.xlu0 %1138
      %1142 = vset.pattern.permute.xlu0 0
      %1143 = vperm.xlu0 %1142, %v302
      %v1144 = vpop.permute.xlu0 %1143
      %1147 = vset.pattern.permute.xlu0 0
      %1148 = vperm.xlu0 %1147, %v303
      %v1149 = vpop.permute.xlu0 %1148
      %1152 = vset.pattern.permute.xlu0 0
      %1153 = vperm.xlu0 %1152, %v304
      %v1154 = vpop.permute.xlu0 %1153
      %1157 = vset.pattern.permute.xlu0 0
      %1158 = vperm.xlu0 %1157, %v305
      %v1159 = vpop.permute.xlu0 %1158
      %1162 = vset.pattern.permute.xlu0 0
      %1163 = vperm.xlu0 %1162, %v306
      %v1164 = vpop.permute.xlu0 %1163
      %1167 = vset.pattern.permute.xlu0 0
      %1168 = vperm.xlu0 %1167, %v307
      %v1169 = vpop.permute.xlu0 %1168
      %1172 = vset.pattern.permute.xlu0 0
      %1173 = vperm.xlu0 %1172, %v308
      %v1174 = vpop.permute.xlu0 %1173
      %1177 = vset.pattern.permute.xlu0 0
      %1178 = vperm.xlu0 %1177, %v309
      %v1179 = vpop.permute.xlu0 %1178
      %1182 = vset.pattern.permute.xlu0 0
      %1183 = vperm.xlu0 %1182, %v310
      %v1184 = vpop.permute.xlu0 %1183
      %v1186 = vmul.f32 %v994, %v1029
      %v1187 = vmul.f32 %v995, %v1034
      %v1188 = vmul.f32 %v996, %v1039
      %v1189 = vmul.f32 %v997, %v1044
      %v1190 = vmul.f32 %v998, %v1049
      %v1191 = vmul.f32 %v999, %v1054
      %v1192 = vmul.f32 %v1000, %v1059
      %v1193 = vmul.f32 %v1001, %v1064
      %v1194 = vmul.f32 %v1002, %v1069
      %v1195 = vmul.f32 %v1003, %v1074
      %v1196 = vmul.f32 %v1004, %v1079
      %v1197 = vmul.f32 %v1005, %v1084
      %v1198 = vmul.f32 %v1006, %v1089
      %v1199 = vmul.f32 %v1007, %v1094
      %v1200 = vmul.f32 %v1008, %v1099
      %v1201 = vmul.f32 %v1009, %v1104
      %v1202 = vmul.f32 %v1010, %v1109
      %v1203 = vmul.f32 %v1011, %v1114
      %v1204 = vmul.f32 %v1012, %v1119
      %v1205 = vmul.f32 %v1013, %v1124
      %v1206 = vmul.f32 %v1014, %v1129
      %v1207 = vmul.f32 %v1015, %v1134
      %v1208 = vmul.f32 %v1016, %v1139
      %v1209 = vmul.f32 %v1017, %v1144
      %v1210 = vmul.f32 %v1018, %v1149
      %v1211 = vmul.f32 %v1019, %v1154
      %v1212 = vmul.f32 %v1020, %v1159
      %v1213 = vmul.f32 %v1021, %v1164
      %v1214 = vmul.f32 %v1022, %v1169
      %v1215 = vmul.f32 %v1023, %v1174
      %v1216 = vmul.f32 %v1024, %v1179
      %v1217 = vmul.f32 %v1025, %v1184
      %v1218 = vadd.f32 %v1186, 0.0
      %v1219 = vadd.f32 %v1187, 0.0
      %v1220 = vadd.f32 %v1188, 0.0
      %v1221 = vadd.f32 %v1189, 0.0
      %v1222 = vadd.f32 %v1190, 0.0
      %v1223 = vadd.f32 %v1191, 0.0
      %v1224 = vadd.f32 %v1192, 0.0
      %v1225 = vadd.f32 %v1193, 0.0
      %v1226 = vadd.f32 %v1194, 0.0
      %v1227 = vadd.f32 %v1195, 0.0
      %v1228 = vadd.f32 %v1196, 0.0
      %v1229 = vadd.f32 %v1197, 0.0
      %v1230 = vadd.f32 %v1198, 0.0
      %v1231 = vadd.f32 %v1199, 0.0
      %v1232 = vadd.f32 %v1200, 0.0
      %v1233 = vadd.f32 %v1201, 0.0
      %v1234 = vadd.f32 %v1202, 0.0
      %v1235 = vadd.f32 %v1203, 0.0
      %v1236 = vadd.f32 %v1204, 0.0
      %v1237 = vadd.f32 %v1205, 0.0
      %v1238 = vadd.f32 %v1206, 0.0
      %v1239 = vadd.f32 %v1207, 0.0
      %v1240 = vadd.f32 %v1208, 0.0
      %v1241 = vadd.f32 %v1209, 0.0
      %v1242 = vadd.f32 %v1210, 0.0
      %v1243 = vadd.f32 %v1211, 0.0
      %v1244 = vadd.f32 %v1212, 0.0
      %v1245 = vadd.f32 %v1213, 0.0
      %v1246 = vadd.f32 %v1214, 0.0
      %v1247 = vadd.f32 %v1215, 0.0
      %v1248 = vadd.f32 %v1216, 0.0
      %v1249 = vadd.f32 %v1217, 0.0
      %v1250 = vld [vmem:[%s273 + $0x8] sm:$0xff]
      %v1251 = vld [vmem:[%s273 + $0x10] sm:$0xff]
      %v1252 = vld [vmem:[%s273 + $0x18] sm:$0xff]
      %v1253 = vld [vmem:[%s273 + $0x20] sm:$0xff]
      %v1254 = vld [vmem:[%s273 + $0x28] sm:$0xff]
      %v1255 = vld [vmem:[%s273 + $0x30] sm:$0xff]
      %v1256 = vld [vmem:[%s273 + $0x38] sm:$0xff]
      %v1257 = vld [vmem:[%s273 + $0x40] sm:$0xff]
      %v1258 = vld [vmem:[%s273 + $0x48] sm:$0xff]
      %v1259 = vld [vmem:[%s273 + $0x50] sm:$0xff]
      %v1260 = vld [vmem:[%s273 + $0x58] sm:$0xff]
      %v1261 = vld [vmem:[%s273 + $0x60] sm:$0xff]
      %v1262 = vld [vmem:[%s273 + $0x68] sm:$0xff]
      %v1263 = vld [vmem:[%s273 + $0x70] sm:$0xff]
      %v1264 = vld [vmem:[%s273 + $0x78] sm:$0xff]
      %v1265 = vld [vmem:[%s273 + $0x80] sm:$0xff]
      %v1266 = vld [vmem:[%s273 + $0x88] sm:$0xff]
      %v1267 = vld [vmem:[%s273 + $0x90] sm:$0xff]
      %v1268 = vld [vmem:[%s273 + $0x98] sm:$0xff]
      %v1269 = vld [vmem:[%s273 + $0xa0] sm:$0xff]
      %v1270 = vld [vmem:[%s273 + $0xa8] sm:$0xff]
      %v1271 = vld [vmem:[%s273 + $0xb0] sm:$0xff]
      %v1272 = vld [vmem:[%s273 + $0xb8] sm:$0xff]
      %v1273 = vld [vmem:[%s273 + $0xc0] sm:$0xff]
      %v1274 = vld [vmem:[%s273 + $0xc8] sm:$0xff]
      %v1275 = vld [vmem:[%s273 + $0xd0] sm:$0xff]
      %v1276 = vld [vmem:[%s273 + $0xd8] sm:$0xff]
      %v1277 = vld [vmem:[%s273 + $0xe0] sm:$0xff]
      %v1278 = vld [vmem:[%s273 + $0xe8] sm:$0xff]
      %v1279 = vld [vmem:[%s273 + $0xf0] sm:$0xff]
      %v1280 = vld [vmem:[%s273 + $0xf8] sm:$0xff]
      %v1281 = vld [vmem:[%s273 + $0x100] sm:$0xff]
      %s1282 = scalar_lea.vmem %s1, 4
      %v1283 = vld [vmem:[%s1282] sm:$0xf]
      %s1284 = scalar_lea.vmem %s1, 16
      %v1285 = vld [vmem:[%s1284] sm:$0xf]
      %v1287 = vsel %vm412, %v343, 0
      %v1290 = vsel %vm412, %v344, 0
      %v1293 = vsel %vm412, %v345, 0
      %v1296 = vsel %vm412, %v346, 0
      %v1299 = vsel %vm412, %v347, 0
      %v1302 = vsel %vm412, %v348, 0
      %v1305 = vsel %vm412, %v349, 0
      %v1308 = vsel %vm412, %v350, 0
      %v1311 = vsel %vm412, %v351, 0
      %v1314 = vsel %vm412, %v352, 0
      %v1317 = vsel %vm412, %v353, 0
      %v1320 = vsel %vm412, %v354, 0
      %v1323 = vsel %vm412, %v355, 0
      %v1326 = vsel %vm412, %v356, 0
      %v1329 = vsel %vm412, %v357, 0
      %v1332 = vsel %vm412, %v358, 0
      %v1335 = vsel %vm412, %v359, 0
      %v1338 = vsel %vm412, %v360, 0
      %v1341 = vsel %vm412, %v361, 0
      %v1344 = vsel %vm412, %v362, 0
      %v1347 = vsel %vm412, %v363, 0
      %v1350 = vsel %vm412, %v364, 0
      %v1353 = vsel %vm412, %v365, 0
      %v1356 = vsel %vm412, %v366, 0
      %v1359 = vsel %vm412, %v367, 0
      %v1362 = vsel %vm412, %v368, 0
      %v1365 = vsel %vm412, %v369, 0
      %v1368 = vsel %vm412, %v370, 0
      %v1371 = vsel %vm412, %v371, 0
      %v1374 = vsel %vm412, %v372, 0
      %v1377 = vsel %vm412, %v373, 0
      %v1380 = vsel %vm412, %v374, 0
      %v1383 = vsel %vm509, %v1285, 0
      %1385 = vmatpush.msra.mxu0 0.0
      %1386 = vmatpush.msra.mxu0 0.0
      %1387 = vmatpush.msra.mxu0 0.0
      %1388 = vmatpush.msra.mxu0 0.0
      %1389 = vmatpush.msra.mxu0 0.0
      %1390 = vmatpush.msra.mxu0 0.0
      %1391 = vmatpush.msra.mxu0 0.0
      %1392 = vmatpush.msra.mxu0 0.0
      %1393 = vmatpush.msra.mxu0 0.0
      %1394 = vmatpush.msra.mxu0 0.0
      %1395 = vmatpush.msra.mxu0 0.0
      %1396 = vmatpush.msra.mxu0 0.0
      %1397 = vmatpush.msra.mxu0 0.0
      %1398 = vmatpush.msra.mxu0 0.0
      %1399 = vmatpush.msra.mxu0 0.0
      %1400 = vmatpush.msra.mxu0 %v1383
      %1401 = vmatmul.f32.gmra.mxu0 %v1287
      %v1402 = vpop.f32.mrf.mxu0
      %v1403 = vadd.f32 0.0, %v1402
      %1404 = vmatmul.f32.gmra.mxu0 %v1290
      %v1405 = vpop.f32.mrf.mxu0
      %v1406 = vadd.f32 0.0, %v1405
      %1407 = vmatmul.f32.gmra.mxu0 %v1293
      %v1408 = vpop.f32.mrf.mxu0
      %v1409 = vadd.f32 0.0, %v1408
      %1410 = vmatmul.f32.gmra.mxu0 %v1296
      %v1411 = vpop.f32.mrf.mxu0
      %v1412 = vadd.f32 0.0, %v1411
      %1413 = vmatmul.f32.gmra.mxu0 %v1299
      %v1414 = vpop.f32.mrf.mxu0
      %v1415 = vadd.f32 0.0, %v1414
      %1416 = vmatmul.f32.gmra.mxu0 %v1302
      %v1417 = vpop.f32.mrf.mxu0
      %v1418 = vadd.f32 0.0, %v1417
      %1419 = vmatmul.f32.gmra.mxu0 %v1305
      %v1420 = vpop.f32.mrf.mxu0
      %v1421 = vadd.f32 0.0, %v1420
      %1422 = vmatmul.f32.gmra.mxu0 %v1308
      %v1423 = vpop.f32.mrf.mxu0
      %v1424 = vadd.f32 0.0, %v1423
      %1425 = vmatmul.f32.gmra.mxu0 %v1311
      %v1426 = vpop.f32.mrf.mxu0
      %v1427 = vadd.f32 0.0, %v1426
      %1428 = vmatmul.f32.gmra.mxu0 %v1314
      %v1429 = vpop.f32.mrf.mxu0
      %v1430 = vadd.f32 0.0, %v1429
      %1431 = vmatmul.f32.gmra.mxu0 %v1317
      %v1432 = vpop.f32.mrf.mxu0
      %v1433 = vadd.f32 0.0, %v1432
      %1434 = vmatmul.f32.gmra.mxu0 %v1320
      %v1435 = vpop.f32.mrf.mxu0
      %v1436 = vadd.f32 0.0, %v1435
      %1437 = vmatmul.f32.gmra.mxu0 %v1323
      %v1438 = vpop.f32.mrf.mxu0
      %v1439 = vadd.f32 0.0, %v1438
      %1440 = vmatmul.f32.gmra.mxu0 %v1326
      %v1441 = vpop.f32.mrf.mxu0
      %v1442 = vadd.f32 0.0, %v1441
      %1443 = vmatmul.f32.gmra.mxu0 %v1329
      %v1444 = vpop.f32.mrf.mxu0
      %v1445 = vadd.f32 0.0, %v1444
      %1446 = vmatmul.f32.gmra.mxu0 %v1332
      %v1447 = vpop.f32.mrf.mxu0
      %v1448 = vadd.f32 0.0, %v1447
      %1449 = vmatmul.f32.gmra.mxu0 %v1335
      %v1450 = vpop.f32.mrf.mxu0
      %v1451 = vadd.f32 0.0, %v1450
      %1452 = vmatmul.f32.gmra.mxu0 %v1338
      %v1453 = vpop.f32.mrf.mxu0
      %v1454 = vadd.f32 0.0, %v1453
      %1455 = vmatmul.f32.gmra.mxu0 %v1341
      %v1456 = vpop.f32.mrf.mxu0
      %v1457 = vadd.f32 0.0, %v1456
      %1458 = vmatmul.f32.gmra.mxu0 %v1344
      %v1459 = vpop.f32.mrf.mxu0
      %v1460 = vadd.f32 0.0, %v1459
      %1461 = vmatmul.f32.gmra.mxu0 %v1347
      %v1462 = vpop.f32.mrf.mxu0
      %v1463 = vadd.f32 0.0, %v1462
      %1464 = vmatmul.f32.gmra.mxu0 %v1350
      %v1465 = vpop.f32.mrf.mxu0
      %v1466 = vadd.f32 0.0, %v1465
      %1467 = vmatmul.f32.gmra.mxu0 %v1353
      %v1468 = vpop.f32.mrf.mxu0
      %v1469 = vadd.f32 0.0, %v1468
      %1470 = vmatmul.f32.gmra.mxu0 %v1356
      %v1471 = vpop.f32.mrf.mxu0
      %v1472 = vadd.f32 0.0, %v1471
      %1473 = vmatmul.f32.gmra.mxu0 %v1359
      %v1474 = vpop.f32.mrf.mxu0
      %v1475 = vadd.f32 0.0, %v1474
      %1476 = vmatmul.f32.gmra.mxu0 %v1362
      %v1477 = vpop.f32.mrf.mxu0
      %v1478 = vadd.f32 0.0, %v1477
      %1479 = vmatmul.f32.gmra.mxu0 %v1365
      %v1480 = vpop.f32.mrf.mxu0
      %v1481 = vadd.f32 0.0, %v1480
      %1482 = vmatmul.f32.gmra.mxu0 %v1368
      %v1483 = vpop.f32.mrf.mxu0
      %v1484 = vadd.f32 0.0, %v1483
      %1485 = vmatmul.f32.gmra.mxu0 %v1371
      %v1486 = vpop.f32.mrf.mxu0
      %v1487 = vadd.f32 0.0, %v1486
      %1488 = vmatmul.f32.gmra.mxu0 %v1374
      %v1489 = vpop.f32.mrf.mxu0
      %v1490 = vadd.f32 0.0, %v1489
      %1491 = vmatmul.f32.gmra.mxu0 %v1377
      %v1492 = vpop.f32.mrf.mxu0
      %v1493 = vadd.f32 0.0, %v1492
      %1494 = vmatmul.f32.gmra.mxu0 %v1380
      %v1495 = vpop.f32.mrf.mxu0
      %v1496 = vadd.f32 0.0, %v1495
      %1497 = vdwg.mxu0
      %v1499 = vsel %vm412, %v1250, 0
      %v1502 = vsel %vm412, %v1251, 0
      %v1505 = vsel %vm412, %v1252, 0
      %v1508 = vsel %vm412, %v1253, 0
      %v1511 = vsel %vm412, %v1254, 0
      %v1514 = vsel %vm412, %v1255, 0
      %v1517 = vsel %vm412, %v1256, 0
      %v1520 = vsel %vm412, %v1257, 0
      %v1523 = vsel %vm412, %v1258, 0
      %v1526 = vsel %vm412, %v1259, 0
      %v1529 = vsel %vm412, %v1260, 0
      %v1532 = vsel %vm412, %v1261, 0
      %v1535 = vsel %vm412, %v1262, 0
      %v1538 = vsel %vm412, %v1263, 0
      %v1541 = vsel %vm412, %v1264, 0
      %v1544 = vsel %vm412, %v1265, 0
      %v1547 = vsel %vm412, %v1266, 0
      %v1550 = vsel %vm412, %v1267, 0
      %v1553 = vsel %vm412, %v1268, 0
      %v1556 = vsel %vm412, %v1269, 0
      %v1559 = vsel %vm412, %v1270, 0
      %v1562 = vsel %vm412, %v1271, 0
      %v1565 = vsel %vm412, %v1272, 0
      %v1568 = vsel %vm412, %v1273, 0
      %v1571 = vsel %vm412, %v1274, 0
      %v1574 = vsel %vm412, %v1275, 0
      %v1577 = vsel %vm412, %v1276, 0
      %v1580 = vsel %vm412, %v1277, 0
      %v1583 = vsel %vm412, %v1278, 0
      %v1586 = vsel %vm412, %v1279, 0
      %v1589 = vsel %vm412, %v1280, 0
      %v1592 = vsel %vm412, %v1281, 0
      %v1595 = vsel %vm509, %v1283, 0
      %1597 = vmatpush.msra.mxu0 0.0
      %1598 = vmatpush.msra.mxu0 0.0
      %1599 = vmatpush.msra.mxu0 0.0
      %1600 = vmatpush.msra.mxu0 0.0
      %1601 = vmatpush.msra.mxu0 0.0
      %1602 = vmatpush.msra.mxu0 0.0
      %1603 = vmatpush.msra.mxu0 0.0
      %1604 = vmatpush.msra.mxu0 0.0
      %1605 = vmatpush.msra.mxu0 0.0
      %1606 = vmatpush.msra.mxu0 0.0
      %1607 = vmatpush.msra.mxu0 0.0
      %1608 = vmatpush.msra.mxu0 0.0
      %1609 = vmatpush.msra.mxu0 0.0
      %1610 = vmatpush.msra.mxu0 0.0
      %1611 = vmatpush.msra.mxu0 0.0
      %1612 = vmatpush.msra.mxu0 %v1595
      %1613 = vmatmul.f32.gmra.mxu0 %v1499
      %v1614 = vpop.f32.mrf.mxu0
      %v1615 = vadd.f32 %v1403, %v1614
      %1616 = vmatmul.f32.gmra.mxu0 %v1502
      %v1617 = vpop.f32.mrf.mxu0
      %v1618 = vadd.f32 %v1406, %v1617
      %1619 = vmatmul.f32.gmra.mxu0 %v1505
      %v1620 = vpop.f32.mrf.mxu0
      %v1621 = vadd.f32 %v1409, %v1620
      %1622 = vmatmul.f32.gmra.mxu0 %v1508
      %v1623 = vpop.f32.mrf.mxu0
      %v1624 = vadd.f32 %v1412, %v1623
      %1625 = vmatmul.f32.gmra.mxu0 %v1511
      %v1626 = vpop.f32.mrf.mxu0
      %v1627 = vadd.f32 %v1415, %v1626
      %1628 = vmatmul.f32.gmra.mxu0 %v1514
      %v1629 = vpop.f32.mrf.mxu0
      %v1630 = vadd.f32 %v1418, %v1629
      %1631 = vmatmul.f32.gmra.mxu0 %v1517
      %v1632 = vpop.f32.mrf.mxu0
      %v1633 = vadd.f32 %v1421, %v1632
      %1634 = vmatmul.f32.gmra.mxu0 %v1520
      %v1635 = vpop.f32.mrf.mxu0
      %v1636 = vadd.f32 %v1424, %v1635
      %1637 = vmatmul.f32.gmra.mxu0 %v1523
      %v1638 = vpop.f32.mrf.mxu0
      %v1639 = vadd.f32 %v1427, %v1638
      %1640 = vmatmul.f32.gmra.mxu0 %v1526
      %v1641 = vpop.f32.mrf.mxu0
      %v1642 = vadd.f32 %v1430, %v1641
      %1643 = vmatmul.f32.gmra.mxu0 %v1529
      %v1644 = vpop.f32.mrf.mxu0
      %v1645 = vadd.f32 %v1433, %v1644
      %1646 = vmatmul.f32.gmra.mxu0 %v1532
      %v1647 = vpop.f32.mrf.mxu0
      %v1648 = vadd.f32 %v1436, %v1647
      %1649 = vmatmul.f32.gmra.mxu0 %v1535
      %v1650 = vpop.f32.mrf.mxu0
      %v1651 = vadd.f32 %v1439, %v1650
      %1652 = vmatmul.f32.gmra.mxu0 %v1538
      %v1653 = vpop.f32.mrf.mxu0
      %v1654 = vadd.f32 %v1442, %v1653
      %1655 = vmatmul.f32.gmra.mxu0 %v1541
      %v1656 = vpop.f32.mrf.mxu0
      %v1657 = vadd.f32 %v1445, %v1656
      %1658 = vmatmul.f32.gmra.mxu0 %v1544
      %v1659 = vpop.f32.mrf.mxu0
      %v1660 = vadd.f32 %v1448, %v1659
      %1661 = vmatmul.f32.gmra.mxu0 %v1547
      %v1662 = vpop.f32.mrf.mxu0
      %v1663 = vadd.f32 %v1451, %v1662
      %1664 = vmatmul.f32.gmra.mxu0 %v1550
      %v1665 = vpop.f32.mrf.mxu0
      %v1666 = vadd.f32 %v1454, %v1665
      %1667 = vmatmul.f32.gmra.mxu0 %v1553
      %v1668 = vpop.f32.mrf.mxu0
      %v1669 = vadd.f32 %v1457, %v1668
      %1670 = vmatmul.f32.gmra.mxu0 %v1556
      %v1671 = vpop.f32.mrf.mxu0
      %v1672 = vadd.f32 %v1460, %v1671
      %1673 = vmatmul.f32.gmra.mxu0 %v1559
      %v1674 = vpop.f32.mrf.mxu0
      %v1675 = vadd.f32 %v1463, %v1674
      %1676 = vmatmul.f32.gmra.mxu0 %v1562
      %v1677 = vpop.f32.mrf.mxu0
      %v1678 = vadd.f32 %v1466, %v1677
      %1679 = vmatmul.f32.gmra.mxu0 %v1565
      %v1680 = vpop.f32.mrf.mxu0
      %v1681 = vadd.f32 %v1469, %v1680
      %1682 = vmatmul.f32.gmra.mxu0 %v1568
      %v1683 = vpop.f32.mrf.mxu0
      %v1684 = vadd.f32 %v1472, %v1683
      %1685 = vmatmul.f32.gmra.mxu0 %v1571
      %v1686 = vpop.f32.mrf.mxu0
      %v1687 = vadd.f32 %v1475, %v1686
      %1688 = vmatmul.f32.gmra.mxu0 %v1574
      %v1689 = vpop.f32.mrf.mxu0
      %v1690 = vadd.f32 %v1478, %v1689
      %1691 = vmatmul.f32.gmra.mxu0 %v1577
      %v1692 = vpop.f32.mrf.mxu0
      %v1693 = vadd.f32 %v1481, %v1692
      %1694 = vmatmul.f32.gmra.mxu0 %v1580
      %v1695 = vpop.f32.mrf.mxu0
      %v1696 = vadd.f32 %v1484, %v1695
      %1697 = vmatmul.f32.gmra.mxu0 %v1583
      %v1698 = vpop.f32.mrf.mxu0
      %v1699 = vadd.f32 %v1487, %v1698
      %1700 = vmatmul.f32.gmra.mxu0 %v1586
      %v1701 = vpop.f32.mrf.mxu0
      %v1702 = vadd.f32 %v1490, %v1701
      %1703 = vmatmul.f32.gmra.mxu0 %v1589
      %v1704 = vpop.f32.mrf.mxu0
      %v1705 = vadd.f32 %v1493, %v1704
      %1706 = vmatmul.f32.gmra.mxu0 %v1592
      %v1707 = vpop.f32.mrf.mxu0
      %v1708 = vadd.f32 %v1496, %v1707
      %1709 = vdwg.mxu0
      %v1710 = vld [vmem:[%s273 + $0x28] sm:$0xff]
      %v1711 = vld [vmem:[%s273 + $0x30] sm:$0xff]
      %v1712 = vld [vmem:[%s273 + $0x38] sm:$0xff]
      %v1713 = vld [vmem:[%s273 + $0x40] sm:$0xff]
      %v1714 = vld [vmem:[%s273 + $0x48] sm:$0xff]
      %v1715 = vld [vmem:[%s273 + $0x50] sm:$0xff]
      %v1716 = vld [vmem:[%s273 + $0x58] sm:$0xff]
      %v1717 = vld [vmem:[%s273 + $0x60] sm:$0xff]
      %v1718 = vld [vmem:[%s273 + $0x68] sm:$0xff]
      %v1719 = vld [vmem:[%s273 + $0x70] sm:$0xff]
      %v1720 = vld [vmem:[%s273 + $0x78] sm:$0xff]
      %v1721 = vld [vmem:[%s273 + $0x80] sm:$0xff]
      %v1722 = vld [vmem:[%s273 + $0x88] sm:$0xff]
      %v1723 = vld [vmem:[%s273 + $0x90] sm:$0xff]
      %v1724 = vld [vmem:[%s273 + $0x98] sm:$0xff]
      %v1725 = vld [vmem:[%s273 + $0xa0] sm:$0xff]
      %v1726 = vld [vmem:[%s273 + $0xa8] sm:$0xff]
      %v1727 = vld [vmem:[%s273 + $0xb0] sm:$0xff]
      %v1728 = vld [vmem:[%s273 + $0xb8] sm:$0xff]
      %v1729 = vld [vmem:[%s273 + $0xc0] sm:$0xff]
      %v1730 = vld [vmem:[%s273 + $0xc8] sm:$0xff]
      %v1731 = vld [vmem:[%s273 + $0xd0] sm:$0xff]
      %v1732 = vld [vmem:[%s273 + $0xd8] sm:$0xff]
      %v1733 = vld [vmem:[%s273 + $0xe0] sm:$0xff]
      %v1734 = vld [vmem:[%s273 + $0xe8] sm:$0xff]
      %v1735 = vld [vmem:[%s273 + $0xf0] sm:$0xff]
      %v1736 = vld [vmem:[%s273 + $0xf8] sm:$0xff]
      %v1737 = vld [vmem:[%s273 + $0x100] sm:$0xff]
      %v1738 = vld [vmem:[%s273 + $0x108] sm:$0xff]
      %v1739 = vld [vmem:[%s273 + $0x110] sm:$0xff]
      %v1740 = vld [vmem:[%s273 + $0x118] sm:$0xff]
      %v1741 = vld [vmem:[%s273 + $0x120] sm:$0xff]
      %s1742 = scalar_lea.vmem %s1, 28
      %v1743 = vld [vmem:[%s1742] sm:$0xf]
      %v1745 = vsel %vm412, %v1710, 0
      %v1748 = vsel %vm412, %v1711, 0
      %v1751 = vsel %vm412, %v1712, 0
      %v1754 = vsel %vm412, %v1713, 0
      %v1757 = vsel %vm412, %v1714, 0
      %v1760 = vsel %vm412, %v1715, 0
      %v1763 = vsel %vm412, %v1716, 0
      %v1766 = vsel %vm412, %v1717, 0
      %v1769 = vsel %vm412, %v1718, 0
      %v1772 = vsel %vm412, %v1719, 0
      %v1775 = vsel %vm412, %v1720, 0
      %v1778 = vsel %vm412, %v1721, 0
      %v1781 = vsel %vm412, %v1722, 0
      %v1784 = vsel %vm412, %v1723, 0
      %v1787 = vsel %vm412, %v1724, 0
      %v1790 = vsel %vm412, %v1725, 0
      %v1793 = vsel %vm412, %v1726, 0
      %v1796 = vsel %vm412, %v1727, 0
      %v1799 = vsel %vm412, %v1728, 0
      %v1802 = vsel %vm412, %v1729, 0
      %v1805 = vsel %vm412, %v1730, 0
      %v1808 = vsel %vm412, %v1731, 0
      %v1811 = vsel %vm412, %v1732, 0
      %v1814 = vsel %vm412, %v1733, 0
      %v1817 = vsel %vm412, %v1734, 0
      %v1820 = vsel %vm412, %v1735, 0
      %v1823 = vsel %vm412, %v1736, 0
      %v1826 = vsel %vm412, %v1737, 0
      %v1829 = vsel %vm412, %v1738, 0
      %v1832 = vsel %vm412, %v1739, 0
      %v1835 = vsel %vm412, %v1740, 0
      %v1838 = vsel %vm412, %v1741, 0
      %v1841 = vsel %vm509, %v1743, 0
      %1843 = vmatpush.msra.mxu0 0.0
      %1844 = vmatpush.msra.mxu0 0.0
      %1845 = vmatpush.msra.mxu0 0.0
      %1846 = vmatpush.msra.mxu0 0.0
      %1847 = vmatpush.msra.mxu0 0.0
      %1848 = vmatpush.msra.mxu0 0.0
      %1849 = vmatpush.msra.mxu0 0.0
      %1850 = vmatpush.msra.mxu0 0.0
      %1851 = vmatpush.msra.mxu0 0.0
      %1852 = vmatpush.msra.mxu0 0.0
      %1853 = vmatpush.msra.mxu0 0.0
      %1854 = vmatpush.msra.mxu0 0.0
      %1855 = vmatpush.msra.mxu0 0.0
      %1856 = vmatpush.msra.mxu0 0.0
      %1857 = vmatpush.msra.mxu0 0.0
      %1858 = vmatpush.msra.mxu0 %v1841
      %1859 = vmatmul.f32.gmra.mxu0 %v1745
      %v1860 = vpop.f32.mrf.mxu0
      %v1861 = vadd.f32 0.0, %v1860
      %1862 = vmatmul.f32.gmra.mxu0 %v1748
      %v1863 = vpop.f32.mrf.mxu0
      %v1864 = vadd.f32 0.0, %v1863
      %1865 = vmatmul.f32.gmra.mxu0 %v1751
      %v1866 = vpop.f32.mrf.mxu0
      %v1867 = vadd.f32 0.0, %v1866
      %1868 = vmatmul.f32.gmra.mxu0 %v1754
      %v1869 = vpop.f32.mrf.mxu0
      %v1870 = vadd.f32 0.0, %v1869
      %1871 = vmatmul.f32.gmra.mxu0 %v1757
      %v1872 = vpop.f32.mrf.mxu0
      %v1873 = vadd.f32 0.0, %v1872
      %1874 = vmatmul.f32.gmra.mxu0 %v1760
      %v1875 = vpop.f32.mrf.mxu0
      %v1876 = vadd.f32 0.0, %v1875
      %1877 = vmatmul.f32.gmra.mxu0 %v1763
      %v1878 = vpop.f32.mrf.mxu0
      %v1879 = vadd.f32 0.0, %v1878
      %1880 = vmatmul.f32.gmra.mxu0 %v1766
      %v1881 = vpop.f32.mrf.mxu0
      %v1882 = vadd.f32 0.0, %v1881
      %1883 = vmatmul.f32.gmra.mxu0 %v1769
      %v1884 = vpop.f32.mrf.mxu0
      %v1885 = vadd.f32 0.0, %v1884
      %1886 = vmatmul.f32.gmra.mxu0 %v1772
      %v1887 = vpop.f32.mrf.mxu0
      %v1888 = vadd.f32 0.0, %v1887
      %1889 = vmatmul.f32.gmra.mxu0 %v1775
      %v1890 = vpop.f32.mrf.mxu0
      %v1891 = vadd.f32 0.0, %v1890
      %1892 = vmatmul.f32.gmra.mxu0 %v1778
      %v1893 = vpop.f32.mrf.mxu0
      %v1894 = vadd.f32 0.0, %v1893
      %1895 = vmatmul.f32.gmra.mxu0 %v1781
      %v1896 = vpop.f32.mrf.mxu0
      %v1897 = vadd.f32 0.0, %v1896
      %1898 = vmatmul.f32.gmra.mxu0 %v1784
      %v1899 = vpop.f32.mrf.mxu0
      %v1900 = vadd.f32 0.0, %v1899
      %1901 = vmatmul.f32.gmra.mxu0 %v1787
      %v1902 = vpop.f32.mrf.mxu0
      %v1903 = vadd.f32 0.0, %v1902
      %1904 = vmatmul.f32.gmra.mxu0 %v1790
      %v1905 = vpop.f32.mrf.mxu0
      %v1906 = vadd.f32 0.0, %v1905
      %1907 = vmatmul.f32.gmra.mxu0 %v1793
      %v1908 = vpop.f32.mrf.mxu0
      %v1909 = vadd.f32 0.0, %v1908
      %1910 = vmatmul.f32.gmra.mxu0 %v1796
      %v1911 = vpop.f32.mrf.mxu0
      %v1912 = vadd.f32 0.0, %v1911
      %1913 = vmatmul.f32.gmra.mxu0 %v1799
      %v1914 = vpop.f32.mrf.mxu0
      %v1915 = vadd.f32 0.0, %v1914
      %1916 = vmatmul.f32.gmra.mxu0 %v1802
      %v1917 = vpop.f32.mrf.mxu0
      %v1918 = vadd.f32 0.0, %v1917
      %1919 = vmatmul.f32.gmra.mxu0 %v1805
      %v1920 = vpop.f32.mrf.mxu0
      %v1921 = vadd.f32 0.0, %v1920
      %1922 = vmatmul.f32.gmra.mxu0 %v1808
      %v1923 = vpop.f32.mrf.mxu0
      %v1924 = vadd.f32 0.0, %v1923
      %1925 = vmatmul.f32.gmra.mxu0 %v1811
      %v1926 = vpop.f32.mrf.mxu0
      %v1927 = vadd.f32 0.0, %v1926
      %1928 = vmatmul.f32.gmra.mxu0 %v1814
      %v1929 = vpop.f32.mrf.mxu0
      %v1930 = vadd.f32 0.0, %v1929
      %1931 = vmatmul.f32.gmra.mxu0 %v1817
      %v1932 = vpop.f32.mrf.mxu0
      %v1933 = vadd.f32 0.0, %v1932
      %1934 = vmatmul.f32.gmra.mxu0 %v1820
      %v1935 = vpop.f32.mrf.mxu0
      %v1936 = vadd.f32 0.0, %v1935
      %1937 = vmatmul.f32.gmra.mxu0 %v1823
      %v1938 = vpop.f32.mrf.mxu0
      %v1939 = vadd.f32 0.0, %v1938
      %1940 = vmatmul.f32.gmra.mxu0 %v1826
      %v1941 = vpop.f32.mrf.mxu0
      %v1942 = vadd.f32 0.0, %v1941
      %1943 = vmatmul.f32.gmra.mxu0 %v1829
      %v1944 = vpop.f32.mrf.mxu0
      %v1945 = vadd.f32 0.0, %v1944
      %1946 = vmatmul.f32.gmra.mxu0 %v1832
      %v1947 = vpop.f32.mrf.mxu0
      %v1948 = vadd.f32 0.0, %v1947
      %1949 = vmatmul.f32.gmra.mxu0 %v1835
      %v1950 = vpop.f32.mrf.mxu0
      %v1951 = vadd.f32 0.0, %v1950
      %1952 = vmatmul.f32.gmra.mxu0 %v1838
      %v1953 = vpop.f32.mrf.mxu0
      %v1954 = vadd.f32 0.0, %v1953
      %1955 = vdwg.mxu0
      %v1956 = vadd.f32 %v1615, %v1861
      %v1957 = vadd.f32 %v1618, %v1864
      %v1958 = vadd.f32 %v1621, %v1867
      %v1959 = vadd.f32 %v1624, %v1870
      %v1960 = vadd.f32 %v1627, %v1873
      %v1961 = vadd.f32 %v1630, %v1876
      %v1962 = vadd.f32 %v1633, %v1879
      %v1963 = vadd.f32 %v1636, %v1882
      %v1964 = vadd.f32 %v1639, %v1885
      %v1965 = vadd.f32 %v1642, %v1888
      %v1966 = vadd.f32 %v1645, %v1891
      %v1967 = vadd.f32 %v1648, %v1894
      %v1968 = vadd.f32 %v1651, %v1897
      %v1969 = vadd.f32 %v1654, %v1900
      %v1970 = vadd.f32 %v1657, %v1903
      %v1971 = vadd.f32 %v1660, %v1906
      %v1972 = vadd.f32 %v1663, %v1909
      %v1973 = vadd.f32 %v1666, %v1912
      %v1974 = vadd.f32 %v1669, %v1915
      %v1975 = vadd.f32 %v1672, %v1918
      %v1976 = vadd.f32 %v1675, %v1921
      %v1977 = vadd.f32 %v1678, %v1924
      %v1978 = vadd.f32 %v1681, %v1927
      %v1979 = vadd.f32 %v1684, %v1930
      %v1980 = vadd.f32 %v1687, %v1933
      %v1981 = vadd.f32 %v1690, %v1936
      %v1982 = vadd.f32 %v1693, %v1939
      %v1983 = vadd.f32 %v1696, %v1942
      %v1984 = vadd.f32 %v1699, %v1945
      %v1985 = vadd.f32 %v1702, %v1948
      %v1986 = vadd.f32 %v1705, %v1951
      %v1987 = vadd.f32 %v1708, %v1954
      %v1988 = vadd.f32 %v1218, %v1956
      %v1989 = vadd.f32 %v1219, %v1957
      %v1990 = vadd.f32 %v1220, %v1958
      %v1991 = vadd.f32 %v1221, %v1959
      %v1992 = vadd.f32 %v1222, %v1960
      %v1993 = vadd.f32 %v1223, %v1961
      %v1994 = vadd.f32 %v1224, %v1962
      %v1995 = vadd.f32 %v1225, %v1963
      %v1996 = vadd.f32 %v1226, %v1964
      %v1997 = vadd.f32 %v1227, %v1965
      %v1998 = vadd.f32 %v1228, %v1966
      %v1999 = vadd.f32 %v1229, %v1967
      %v2000 = vadd.f32 %v1230, %v1968
      %v2001 = vadd.f32 %v1231, %v1969
      %v2002 = vadd.f32 %v1232, %v1970
      %v2003 = vadd.f32 %v1233, %v1971
      %v2004 = vadd.f32 %v1234, %v1972
      %v2005 = vadd.f32 %v1235, %v1973
      %v2006 = vadd.f32 %v1236, %v1974
      %v2007 = vadd.f32 %v1237, %v1975
      %v2008 = vadd.f32 %v1238, %v1976
      %v2009 = vadd.f32 %v1239, %v1977
      %v2010 = vadd.f32 %v1240, %v1978
      %v2011 = vadd.f32 %v1241, %v1979
      %v2012 = vadd.f32 %v1242, %v1980
      %v2013 = vadd.f32 %v1243, %v1981
      %v2014 = vadd.f32 %v1244, %v1982
      %v2015 = vadd.f32 %v1245, %v1983
      %v2016 = vadd.f32 %v1246, %v1984
      %v2017 = vadd.f32 %v1247, %v1985
      %v2018 = vadd.f32 %v1248, %v1986
      %v2019 = vadd.f32 %v1249, %v1987
      %v2020 = vld [vmem:[%s273 + $0x9] sm:$0xff]
      %v2021 = vld [vmem:[%s273 + $0x11] sm:$0xff]
      %v2022 = vld [vmem:[%s273 + $0x19] sm:$0xff]
      %v2023 = vld [vmem:[%s273 + $0x21] sm:$0xff]
      %v2024 = vld [vmem:[%s273 + $0x29] sm:$0xff]
      %v2025 = vld [vmem:[%s273 + $0x31] sm:$0xff]
      %v2026 = vld [vmem:[%s273 + $0x39] sm:$0xff]
      %v2027 = vld [vmem:[%s273 + $0x41] sm:$0xff]
      %v2028 = vld [vmem:[%s273 + $0x49] sm:$0xff]
      %v2029 = vld [vmem:[%s273 + $0x51] sm:$0xff]
      %v2030 = vld [vmem:[%s273 + $0x59] sm:$0xff]
      %v2031 = vld [vmem:[%s273 + $0x61] sm:$0xff]
      %v2032 = vld [vmem:[%s273 + $0x69] sm:$0xff]
      %v2033 = vld [vmem:[%s273 + $0x71] sm:$0xff]
      %v2034 = vld [vmem:[%s273 + $0x79] sm:$0xff]
      %v2035 = vld [vmem:[%s273 + $0x81] sm:$0xff]
      %v2036 = vld [vmem:[%s273 + $0x89] sm:$0xff]
      %v2037 = vld [vmem:[%s273 + $0x91] sm:$0xff]
      %v2038 = vld [vmem:[%s273 + $0x99] sm:$0xff]
      %v2039 = vld [vmem:[%s273 + $0xa1] sm:$0xff]
      %v2040 = vld [vmem:[%s273 + $0xa9] sm:$0xff]
      %v2041 = vld [vmem:[%s273 + $0xb1] sm:$0xff]
      %v2042 = vld [vmem:[%s273 + $0xb9] sm:$0xff]
      %v2043 = vld [vmem:[%s273 + $0xc1] sm:$0xff]
      %v2044 = vld [vmem:[%s273 + $0xc9] sm:$0xff]
      %v2045 = vld [vmem:[%s273 + $0xd1] sm:$0xff]
      %v2046 = vld [vmem:[%s273 + $0xd9] sm:$0xff]
      %v2047 = vld [vmem:[%s273 + $0xe1] sm:$0xff]
      %v2048 = vld [vmem:[%s273 + $0xe9] sm:$0xff]
      %v2049 = vld [vmem:[%s273 + $0xf1] sm:$0xff]
      %v2050 = vld [vmem:[%s273 + $0xf9] sm:$0xff]
      %v2051 = vld [vmem:[%s273 + $0x101] sm:$0xff]
      %s2052 = scalar_lea.vmem %s1, 8
      %v2053 = vld [vmem:[%s2052] sm:$0xf]
      %v2054 = vld [vmem:[%s273 + $0x109] sm:$0xff]
      %v2055 = vld [vmem:[%s273 + $0x111] sm:$0xff]
      %s2056 = scalar_lea.vmem %s1, 20
      %v2057 = vld [vmem:[%s2056] sm:$0xf]
      %v2059 = vsel %vm412, %v2022, 0
      %v2062 = vsel %vm412, %v2023, 0
      %v2065 = vsel %vm412, %v2024, 0
      %v2068 = vsel %vm412, %v2025, 0
      %v2071 = vsel %vm412, %v2026, 0
      %v2074 = vsel %vm412, %v2027, 0
      %v2077 = vsel %vm412, %v2028, 0
      %v2080 = vsel %vm412, %v2029, 0
      %v2083 = vsel %vm412, %v2030, 0
      %v2086 = vsel %vm412, %v2031, 0
      %v2089 = vsel %vm412, %v2032, 0
      %v2092 = vsel %vm412, %v2033, 0
      %v2095 = vsel %vm412, %v2034, 0
      %v2098 = vsel %vm412, %v2035, 0
      %v2101 = vsel %vm412, %v2036, 0
      %v2104 = vsel %vm412, %v2037, 0
      %v2107 = vsel %vm412, %v2038, 0
      %v2110 = vsel %vm412, %v2039, 0
      %v2113 = vsel %vm412, %v2040, 0
      %v2116 = vsel %vm412, %v2041, 0
      %v2119 = vsel %vm412, %v2042, 0
      %v2122 = vsel %vm412, %v2043, 0
      %v2125 = vsel %vm412, %v2044, 0
      %v2128 = vsel %vm412, %v2045, 0
      %v2131 = vsel %vm412, %v2046, 0
      %v2134 = vsel %vm412, %v2047, 0
      %v2137 = vsel %vm412, %v2048, 0
      %v2140 = vsel %vm412, %v2049, 0
      %v2143 = vsel %vm412, %v2050, 0
      %v2146 = vsel %vm412, %v2051, 0
      %v2149 = vsel %vm412, %v2054, 0
      %v2152 = vsel %vm412, %v2055, 0
      %v2155 = vsel %vm509, %v2057, 0
      %2157 = vmatpush.msra.mxu0 0.0
      %2158 = vmatpush.msra.mxu0 0.0
      %2159 = vmatpush.msra.mxu0 0.0
      %2160 = vmatpush.msra.mxu0 0.0
      %2161 = vmatpush.msra.mxu0 0.0
      %2162 = vmatpush.msra.mxu0 0.0
      %2163 = vmatpush.msra.mxu0 0.0
      %2164 = vmatpush.msra.mxu0 0.0
      %2165 = vmatpush.msra.mxu0 0.0
      %2166 = vmatpush.msra.mxu0 0.0
      %2167 = vmatpush.msra.mxu0 0.0
      %2168 = vmatpush.msra.mxu0 0.0
      %2169 = vmatpush.msra.mxu0 0.0
      %2170 = vmatpush.msra.mxu0 0.0
      %2171 = vmatpush.msra.mxu0 0.0
      %2172 = vmatpush.msra.mxu0 %v2155
      %2173 = vmatmul.f32.gmra.mxu0 %v2059
      %v2174 = vpop.f32.mrf.mxu0
      %v2175 = vadd.f32 0.0, %v2174
      %2176 = vmatmul.f32.gmra.mxu0 %v2062
      %v2177 = vpop.f32.mrf.mxu0
      %v2178 = vadd.f32 0.0, %v2177
      %2179 = vmatmul.f32.gmra.mxu0 %v2065
      %v2180 = vpop.f32.mrf.mxu0
      %v2181 = vadd.f32 0.0, %v2180
      %2182 = vmatmul.f32.gmra.mxu0 %v2068
      %v2183 = vpop.f32.mrf.mxu0
      %v2184 = vadd.f32 0.0, %v2183
      %2185 = vmatmul.f32.gmra.mxu0 %v2071
      %v2186 = vpop.f32.mrf.mxu0
      %v2187 = vadd.f32 0.0, %v2186
      %2188 = vmatmul.f32.gmra.mxu0 %v2074
      %v2189 = vpop.f32.mrf.mxu0
      %v2190 = vadd.f32 0.0, %v2189
      %2191 = vmatmul.f32.gmra.mxu0 %v2077
      %v2192 = vpop.f32.mrf.mxu0
      %v2193 = vadd.f32 0.0, %v2192
      %2194 = vmatmul.f32.gmra.mxu0 %v2080
      %v2195 = vpop.f32.mrf.mxu0
      %v2196 = vadd.f32 0.0, %v2195
      %2197 = vmatmul.f32.gmra.mxu0 %v2083
      %v2198 = vpop.f32.mrf.mxu0
      %v2199 = vadd.f32 0.0, %v2198
      %2200 = vmatmul.f32.gmra.mxu0 %v2086
      %v2201 = vpop.f32.mrf.mxu0
      %v2202 = vadd.f32 0.0, %v2201
      %2203 = vmatmul.f32.gmra.mxu0 %v2089
      %v2204 = vpop.f32.mrf.mxu0
      %v2205 = vadd.f32 0.0, %v2204
      %2206 = vmatmul.f32.gmra.mxu0 %v2092
      %v2207 = vpop.f32.mrf.mxu0
      %v2208 = vadd.f32 0.0, %v2207
      %2209 = vmatmul.f32.gmra.mxu0 %v2095
      %v2210 = vpop.f32.mrf.mxu0
      %v2211 = vadd.f32 0.0, %v2210
      %2212 = vmatmul.f32.gmra.mxu0 %v2098
      %v2213 = vpop.f32.mrf.mxu0
      %v2214 = vadd.f32 0.0, %v2213
      %2215 = vmatmul.f32.gmra.mxu0 %v2101
      %v2216 = vpop.f32.mrf.mxu0
      %v2217 = vadd.f32 0.0, %v2216
      %2218 = vmatmul.f32.gmra.mxu0 %v2104
      %v2219 = vpop.f32.mrf.mxu0
      %v2220 = vadd.f32 0.0, %v2219
      %2221 = vmatmul.f32.gmra.mxu0 %v2107
      %v2222 = vpop.f32.mrf.mxu0
      %v2223 = vadd.f32 0.0, %v2222
      %2224 = vmatmul.f32.gmra.mxu0 %v2110
      %v2225 = vpop.f32.mrf.mxu0
      %v2226 = vadd.f32 0.0, %v2225
      %2227 = vmatmul.f32.gmra.mxu0 %v2113
      %v2228 = vpop.f32.mrf.mxu0
      %v2229 = vadd.f32 0.0, %v2228
      %2230 = vmatmul.f32.gmra.mxu0 %v2116
      %v2231 = vpop.f32.mrf.mxu0
      %v2232 = vadd.f32 0.0, %v2231
      %2233 = vmatmul.f32.gmra.mxu0 %v2119
      %v2234 = vpop.f32.mrf.mxu0
      %v2235 = vadd.f32 0.0, %v2234
      %2236 = vmatmul.f32.gmra.mxu0 %v2122
      %v2237 = vpop.f32.mrf.mxu0
      %v2238 = vadd.f32 0.0, %v2237
      %2239 = vmatmul.f32.gmra.mxu0 %v2125
      %v2240 = vpop.f32.mrf.mxu0
      %v2241 = vadd.f32 0.0, %v2240
      %2242 = vmatmul.f32.gmra.mxu0 %v2128
      %v2243 = vpop.f32.mrf.mxu0
      %v2244 = vadd.f32 0.0, %v2243
      %2245 = vmatmul.f32.gmra.mxu0 %v2131
      %v2246 = vpop.f32.mrf.mxu0
      %v2247 = vadd.f32 0.0, %v2246
      %2248 = vmatmul.f32.gmra.mxu0 %v2134
      %v2249 = vpop.f32.mrf.mxu0
      %v2250 = vadd.f32 0.0, %v2249
      %2251 = vmatmul.f32.gmra.mxu0 %v2137
      %v2252 = vpop.f32.mrf.mxu0
      %v2253 = vadd.f32 0.0, %v2252
      %2254 = vmatmul.f32.gmra.mxu0 %v2140
      %v2255 = vpop.f32.mrf.mxu0
      %v2256 = vadd.f32 0.0, %v2255
      %2257 = vmatmul.f32.gmra.mxu0 %v2143
      %v2258 = vpop.f32.mrf.mxu0
      %v2259 = vadd.f32 0.0, %v2258
      %2260 = vmatmul.f32.gmra.mxu0 %v2146
      %v2261 = vpop.f32.mrf.mxu0
      %v2262 = vadd.f32 0.0, %v2261
      %2263 = vmatmul.f32.gmra.mxu0 %v2149
      %v2264 = vpop.f32.mrf.mxu0
      %v2265 = vadd.f32 0.0, %v2264
      %2266 = vmatmul.f32.gmra.mxu0 %v2152
      %v2267 = vpop.f32.mrf.mxu0
      %v2268 = vadd.f32 0.0, %v2267
      %2269 = vdwg.mxu0
      %v2271 = vsel %vm412, %v2020, 0
      %v2274 = vsel %vm412, %v2021, 0
      %v2277 = vsel %vm509, %v2053, 0
      %2279 = vmatpush.msra.mxu0 0.0
      %2280 = vmatpush.msra.mxu0 0.0
      %2281 = vmatpush.msra.mxu0 0.0
      %2282 = vmatpush.msra.mxu0 0.0
      %2283 = vmatpush.msra.mxu0 0.0
      %2284 = vmatpush.msra.mxu0 0.0
      %2285 = vmatpush.msra.mxu0 0.0
      %2286 = vmatpush.msra.mxu0 0.0
      %2287 = vmatpush.msra.mxu0 0.0
      %2288 = vmatpush.msra.mxu0 0.0
      %2289 = vmatpush.msra.mxu0 0.0
      %2290 = vmatpush.msra.mxu0 0.0
      %2291 = vmatpush.msra.mxu0 0.0
      %2292 = vmatpush.msra.mxu0 0.0
      %2293 = vmatpush.msra.mxu0 0.0
      %2294 = vmatpush.msra.mxu0 %v2277
      %2295 = vmatmul.f32.gmra.mxu0 %v2271
      %v2296 = vpop.f32.mrf.mxu0
      %v2297 = vadd.f32 %v2175, %v2296
      %2298 = vmatmul.f32.gmra.mxu0 %v2274
      %v2299 = vpop.f32.mrf.mxu0
      %v2300 = vadd.f32 %v2178, %v2299
      %2301 = vmatmul.f32.gmra.mxu0 %v2059
      %v2302 = vpop.f32.mrf.mxu0
      %v2303 = vadd.f32 %v2181, %v2302
      %2304 = vmatmul.f32.gmra.mxu0 %v2062
      %v2305 = vpop.f32.mrf.mxu0
      %v2306 = vadd.f32 %v2184, %v2305
      %2307 = vmatmul.f32.gmra.mxu0 %v2065
      %v2308 = vpop.f32.mrf.mxu0
      %v2309 = vadd.f32 %v2187, %v2308
      %2310 = vmatmul.f32.gmra.mxu0 %v2068
      %v2311 = vpop.f32.mrf.mxu0
      %v2312 = vadd.f32 %v2190, %v2311
      %2313 = vmatmul.f32.gmra.mxu0 %v2071
      %v2314 = vpop.f32.mrf.mxu0
      %v2315 = vadd.f32 %v2193, %v2314
      %2316 = vmatmul.f32.gmra.mxu0 %v2074
      %v2317 = vpop.f32.mrf.mxu0
      %v2318 = vadd.f32 %v2196, %v2317
      %2319 = vmatmul.f32.gmra.mxu0 %v2077
      %v2320 = vpop.f32.mrf.mxu0
      %v2321 = vadd.f32 %v2199, %v2320
      %2322 = vmatmul.f32.gmra.mxu0 %v2080
      %v2323 = vpop.f32.mrf.mxu0
      %v2324 = vadd.f32 %v2202, %v2323
      %2325 = vmatmul.f32.gmra.mxu0 %v2083
      %v2326 = vpop.f32.mrf.mxu0
      %v2327 = vadd.f32 %v2205, %v2326
      %2328 = vmatmul.f32.gmra.mxu0 %v2086
      %v2329 = vpop.f32.mrf.mxu0
      %v2330 = vadd.f32 %v2208, %v2329
      %2331 = vmatmul.f32.gmra.mxu0 %v2089
      %v2332 = vpop.f32.mrf.mxu0
      %v2333 = vadd.f32 %v2211, %v2332
      %2334 = vmatmul.f32.gmra.mxu0 %v2092
      %v2335 = vpop.f32.mrf.mxu0
      %v2336 = vadd.f32 %v2214, %v2335
      %2337 = vmatmul.f32.gmra.mxu0 %v2095
      %v2338 = vpop.f32.mrf.mxu0
      %v2339 = vadd.f32 %v2217, %v2338
      %2340 = vmatmul.f32.gmra.mxu0 %v2098
      %v2341 = vpop.f32.mrf.mxu0
      %v2342 = vadd.f32 %v2220, %v2341
      %2343 = vmatmul.f32.gmra.mxu0 %v2101
      %v2344 = vpop.f32.mrf.mxu0
      %v2345 = vadd.f32 %v2223, %v2344
      %2346 = vmatmul.f32.gmra.mxu0 %v2104
      %v2347 = vpop.f32.mrf.mxu0
      %v2348 = vadd.f32 %v2226, %v2347
      %2349 = vmatmul.f32.gmra.mxu0 %v2107
      %v2350 = vpop.f32.mrf.mxu0
      %v2351 = vadd.f32 %v2229, %v2350
      %2352 = vmatmul.f32.gmra.mxu0 %v2110
      %v2353 = vpop.f32.mrf.mxu0
      %v2354 = vadd.f32 %v2232, %v2353
      %2355 = vmatmul.f32.gmra.mxu0 %v2113
      %v2356 = vpop.f32.mrf.mxu0
      %v2357 = vadd.f32 %v2235, %v2356
      %2358 = vmatmul.f32.gmra.mxu0 %v2116
      %v2359 = vpop.f32.mrf.mxu0
      %v2360 = vadd.f32 %v2238, %v2359
      %2361 = vmatmul.f32.gmra.mxu0 %v2119
      %v2362 = vpop.f32.mrf.mxu0
      %v2363 = vadd.f32 %v2241, %v2362
      %2364 = vmatmul.f32.gmra.mxu0 %v2122
      %v2365 = vpop.f32.mrf.mxu0
      %v2366 = vadd.f32 %v2244, %v2365
      %2367 = vmatmul.f32.gmra.mxu0 %v2125
      %v2368 = vpop.f32.mrf.mxu0
      %v2369 = vadd.f32 %v2247, %v2368
      %2370 = vmatmul.f32.gmra.mxu0 %v2128
      %v2371 = vpop.f32.mrf.mxu0
      %v2372 = vadd.f32 %v2250, %v2371
      %2373 = vmatmul.f32.gmra.mxu0 %v2131
      %v2374 = vpop.f32.mrf.mxu0
      %v2375 = vadd.f32 %v2253, %v2374
      %2376 = vmatmul.f32.gmra.mxu0 %v2134
      %v2377 = vpop.f32.mrf.mxu0
      %v2378 = vadd.f32 %v2256, %v2377
      %2379 = vmatmul.f32.gmra.mxu0 %v2137
      %v2380 = vpop.f32.mrf.mxu0
      %v2381 = vadd.f32 %v2259, %v2380
      %2382 = vmatmul.f32.gmra.mxu0 %v2140
      %v2383 = vpop.f32.mrf.mxu0
      %v2384 = vadd.f32 %v2262, %v2383
      %2385 = vmatmul.f32.gmra.mxu0 %v2143
      %v2386 = vpop.f32.mrf.mxu0
      %v2387 = vadd.f32 %v2265, %v2386
      %2388 = vmatmul.f32.gmra.mxu0 %v2146
      %v2389 = vpop.f32.mrf.mxu0
      %v2390 = vadd.f32 %v2268, %v2389
      %2391 = vdwg.mxu0
      %v2392 = vld [vmem:[%s273 + $0x29] sm:$0xff]
      %v2393 = vld [vmem:[%s273 + $0x31] sm:$0xff]
      %v2394 = vld [vmem:[%s273 + $0x39] sm:$0xff]
      %v2395 = vld [vmem:[%s273 + $0x41] sm:$0xff]
      %v2396 = vld [vmem:[%s273 + $0x49] sm:$0xff]
      %v2397 = vld [vmem:[%s273 + $0x51] sm:$0xff]
      %v2398 = vld [vmem:[%s273 + $0x59] sm:$0xff]
      %v2399 = vld [vmem:[%s273 + $0x61] sm:$0xff]
      %v2400 = vld [vmem:[%s273 + $0x69] sm:$0xff]
      %v2401 = vld [vmem:[%s273 + $0x71] sm:$0xff]
      %v2402 = vld [vmem:[%s273 + $0x79] sm:$0xff]
      %v2403 = vld [vmem:[%s273 + $0x81] sm:$0xff]
      %v2404 = vld [vmem:[%s273 + $0x89] sm:$0xff]
      %v2405 = vld [vmem:[%s273 + $0x91] sm:$0xff]
      %v2406 = vld [vmem:[%s273 + $0x99] sm:$0xff]
      %v2407 = vld [vmem:[%s273 + $0xa1] sm:$0xff]
      %v2408 = vld [vmem:[%s273 + $0xa9] sm:$0xff]
      %v2409 = vld [vmem:[%s273 + $0xb1] sm:$0xff]
      %v2410 = vld [vmem:[%s273 + $0xb9] sm:$0xff]
      %v2411 = vld [vmem:[%s273 + $0xc1] sm:$0xff]
      %v2412 = vld [vmem:[%s273 + $0xc9] sm:$0xff]
      %v2413 = vld [vmem:[%s273 + $0xd1] sm:$0xff]
      %v2414 = vld [vmem:[%s273 + $0xd9] sm:$0xff]
      %v2415 = vld [vmem:[%s273 + $0xe1] sm:$0xff]
      %v2416 = vld [vmem:[%s273 + $0xe9] sm:$0xff]
      %v2417 = vld [vmem:[%s273 + $0xf1] sm:$0xff]
      %v2418 = vld [vmem:[%s273 + $0xf9] sm:$0xff]
      %v2419 = vld [vmem:[%s273 + $0x101] sm:$0xff]
      %v2420 = vld [vmem:[%s273 + $0x109] sm:$0xff]
      %v2421 = vld [vmem:[%s273 + $0x111] sm:$0xff]
      %v2422 = vld [vmem:[%s273 + $0x119] sm:$0xff]
      %v2423 = vld [vmem:[%s273 + $0x121] sm:$0xff]
      %s2424 = scalar_lea.vmem %s1, 32
      %v2425 = vld [vmem:[%s2424] sm:$0xf]
      %v2427 = vsel %vm412, %v2392, 0
      %v2430 = vsel %vm412, %v2393, 0
      %v2433 = vsel %vm412, %v2394, 0
      %v2436 = vsel %vm412, %v2395, 0
      %v2439 = vsel %vm412, %v2396, 0
      %v2442 = vsel %vm412, %v2397, 0
      %v2445 = vsel %vm412, %v2398, 0
      %v2448 = vsel %vm412, %v2399, 0
      %v2451 = vsel %vm412, %v2400, 0
      %v2454 = vsel %vm412, %v2401, 0
      %v2457 = vsel %vm412, %v2402, 0
      %v2460 = vsel %vm412, %v2403, 0
      %v2463 = vsel %vm412, %v2404, 0
      %v2466 = vsel %vm412, %v2405, 0
      %v2469 = vsel %vm412, %v2406, 0
      %v2472 = vsel %vm412, %v2407, 0
      %v2475 = vsel %vm412, %v2408, 0
      %v2478 = vsel %vm412, %v2409, 0
      %v2481 = vsel %vm412, %v2410, 0
      %v2484 = vsel %vm412, %v2411, 0
      %v2487 = vsel %vm412, %v2412, 0
      %v2490 = vsel %vm412, %v2413, 0
      %v2493 = vsel %vm412, %v2414, 0
      %v2496 = vsel %vm412, %v2415, 0
      %v2499 = vsel %vm412, %v2416, 0
      %v2502 = vsel %vm412, %v2417, 0
      %v2505 = vsel %vm412, %v2418, 0
      %v2508 = vsel %vm412, %v2419, 0
      %v2511 = vsel %vm412, %v2420, 0
      %v2514 = vsel %vm412, %v2421, 0
      %v2517 = vsel %vm412, %v2422, 0
      %v2520 = vsel %vm412, %v2423, 0
      %v2523 = vsel %vm509, %v2425, 0
      %2525 = vmatpush.msra.mxu0 0.0
      %2526 = vmatpush.msra.mxu0 0.0
      %2527 = vmatpush.msra.mxu0 0.0
      %2528 = vmatpush.msra.mxu0 0.0
      %2529 = vmatpush.msra.mxu0 0.0
      %2530 = vmatpush.msra.mxu0 0.0
      %2531 = vmatpush.msra.mxu0 0.0
      %2532 = vmatpush.msra.mxu0 0.0
      %2533 = vmatpush.msra.mxu0 0.0
      %2534 = vmatpush.msra.mxu0 0.0
      %2535 = vmatpush.msra.mxu0 0.0
      %2536 = vmatpush.msra.mxu0 0.0
      %2537 = vmatpush.msra.mxu0 0.0
      %2538 = vmatpush.msra.mxu0 0.0
      %2539 = vmatpush.msra.mxu0 0.0
      %2540 = vmatpush.msra.mxu0 %v2523
      %2541 = vmatmul.f32.gmra.mxu0 %v2427
      %v2542 = vpop.f32.mrf.mxu0
      %v2543 = vadd.f32 0.0, %v2542
      %2544 = vmatmul.f32.gmra.mxu0 %v2430
      %v2545 = vpop.f32.mrf.mxu0
      %v2546 = vadd.f32 0.0, %v2545
      %2547 = vmatmul.f32.gmra.mxu0 %v2433
      %v2548 = vpop.f32.mrf.mxu0
      %v2549 = vadd.f32 0.0, %v2548
      %2550 = vmatmul.f32.gmra.mxu0 %v2436
      %v2551 = vpop.f32.mrf.mxu0
      %v2552 = vadd.f32 0.0, %v2551
      %2553 = vmatmul.f32.gmra.mxu0 %v2439
      %v2554 = vpop.f32.mrf.mxu0
      %v2555 = vadd.f32 0.0, %v2554
      %2556 = vmatmul.f32.gmra.mxu0 %v2442
      %v2557 = vpop.f32.mrf.mxu0
      %v2558 = vadd.f32 0.0, %v2557
      %2559 = vmatmul.f32.gmra.mxu0 %v2445
      %v2560 = vpop.f32.mrf.mxu0
      %v2561 = vadd.f32 0.0, %v2560
      %2562 = vmatmul.f32.gmra.mxu0 %v2448
      %v2563 = vpop.f32.mrf.mxu0
      %v2564 = vadd.f32 0.0, %v2563
      %2565 = vmatmul.f32.gmra.mxu0 %v2451
      %v2566 = vpop.f32.mrf.mxu0
      %v2567 = vadd.f32 0.0, %v2566
      %2568 = vmatmul.f32.gmra.mxu0 %v2454
      %v2569 = vpop.f32.mrf.mxu0
      %v2570 = vadd.f32 0.0, %v2569
      %2571 = vmatmul.f32.gmra.mxu0 %v2457
      %v2572 = vpop.f32.mrf.mxu0
      %v2573 = vadd.f32 0.0, %v2572
      %2574 = vmatmul.f32.gmra.mxu0 %v2460
      %v2575 = vpop.f32.mrf.mxu0
      %v2576 = vadd.f32 0.0, %v2575
      %2577 = vmatmul.f32.gmra.mxu0 %v2463
      %v2578 = vpop.f32.mrf.mxu0
      %v2579 = vadd.f32 0.0, %v2578
      %2580 = vmatmul.f32.gmra.mxu0 %v2466
      %v2581 = vpop.f32.mrf.mxu0
      %v2582 = vadd.f32 0.0, %v2581
      %2583 = vmatmul.f32.gmra.mxu0 %v2469
      %v2584 = vpop.f32.mrf.mxu0
      %v2585 = vadd.f32 0.0, %v2584
      %2586 = vmatmul.f32.gmra.mxu0 %v2472
      %v2587 = vpop.f32.mrf.mxu0
      %v2588 = vadd.f32 0.0, %v2587
      %2589 = vmatmul.f32.gmra.mxu0 %v2475
      %v2590 = vpop.f32.mrf.mxu0
      %v2591 = vadd.f32 0.0, %v2590
      %2592 = vmatmul.f32.gmra.mxu0 %v2478
      %v2593 = vpop.f32.mrf.mxu0
      %v2594 = vadd.f32 0.0, %v2593
      %2595 = vmatmul.f32.gmra.mxu0 %v2481
      %v2596 = vpop.f32.mrf.mxu0
      %v2597 = vadd.f32 0.0, %v2596
      %2598 = vmatmul.f32.gmra.mxu0 %v2484
      %v2599 = vpop.f32.mrf.mxu0
      %v2600 = vadd.f32 0.0, %v2599
      %2601 = vmatmul.f32.gmra.mxu0 %v2487
      %v2602 = vpop.f32.mrf.mxu0
      %v2603 = vadd.f32 0.0, %v2602
      %2604 = vmatmul.f32.gmra.mxu0 %v2490
      %v2605 = vpop.f32.mrf.mxu0
      %v2606 = vadd.f32 0.0, %v2605
      %2607 = vmatmul.f32.gmra.mxu0 %v2493
      %v2608 = vpop.f32.mrf.mxu0
      %v2609 = vadd.f32 0.0, %v2608
      %2610 = vmatmul.f32.gmra.mxu0 %v2496
      %v2611 = vpop.f32.mrf.mxu0
      %v2612 = vadd.f32 0.0, %v2611
      %2613 = vmatmul.f32.gmra.mxu0 %v2499
      %v2614 = vpop.f32.mrf.mxu0
      %v2615 = vadd.f32 0.0, %v2614
      %2616 = vmatmul.f32.gmra.mxu0 %v2502
      %v2617 = vpop.f32.mrf.mxu0
      %v2618 = vadd.f32 0.0, %v2617
      %2619 = vmatmul.f32.gmra.mxu0 %v2505
      %v2620 = vpop.f32.mrf.mxu0
      %v2621 = vadd.f32 0.0, %v2620
      %2622 = vmatmul.f32.gmra.mxu0 %v2508
      %v2623 = vpop.f32.mrf.mxu0
      %v2624 = vadd.f32 0.0, %v2623
      %2625 = vmatmul.f32.gmra.mxu0 %v2511
      %v2626 = vpop.f32.mrf.mxu0
      %v2627 = vadd.f32 0.0, %v2626
      %2628 = vmatmul.f32.gmra.mxu0 %v2514
      %v2629 = vpop.f32.mrf.mxu0
      %v2630 = vadd.f32 0.0, %v2629
      %2631 = vmatmul.f32.gmra.mxu0 %v2517
      %v2632 = vpop.f32.mrf.mxu0
      %v2633 = vadd.f32 0.0, %v2632
      %2634 = vmatmul.f32.gmra.mxu0 %v2520
      %v2635 = vpop.f32.mrf.mxu0
      %v2636 = vadd.f32 0.0, %v2635
      %2637 = vdwg.mxu0
      %v2638 = vadd.f32 %v2297, %v2543
      %v2639 = vadd.f32 %v2300, %v2546
      %v2640 = vadd.f32 %v2303, %v2549
      %v2641 = vadd.f32 %v2306, %v2552
      %v2642 = vadd.f32 %v2309, %v2555
      %v2643 = vadd.f32 %v2312, %v2558
      %v2644 = vadd.f32 %v2315, %v2561
      %v2645 = vadd.f32 %v2318, %v2564
      %v2646 = vadd.f32 %v2321, %v2567
      %v2647 = vadd.f32 %v2324, %v2570
      %v2648 = vadd.f32 %v2327, %v2573
      %v2649 = vadd.f32 %v2330, %v2576
      %v2650 = vadd.f32 %v2333, %v2579
      %v2651 = vadd.f32 %v2336, %v2582
      %v2652 = vadd.f32 %v2339, %v2585
      %v2653 = vadd.f32 %v2342, %v2588
      %v2654 = vadd.f32 %v2345, %v2591
      %v2655 = vadd.f32 %v2348, %v2594
      %v2656 = vadd.f32 %v2351, %v2597
      %v2657 = vadd.f32 %v2354, %v2600
      %v2658 = vadd.f32 %v2357, %v2603
      %v2659 = vadd.f32 %v2360, %v2606
      %v2660 = vadd.f32 %v2363, %v2609
      %v2661 = vadd.f32 %v2366, %v2612
      %v2662 = vadd.f32 %v2369, %v2615
      %v2663 = vadd.f32 %v2372, %v2618
      %v2664 = vadd.f32 %v2375, %v2621
      %v2665 = vadd.f32 %v2378, %v2624
      %v2666 = vadd.f32 %v2381, %v2627
      %v2667 = vadd.f32 %v2384, %v2630
      %v2668 = vadd.f32 %v2387, %v2633
      %v2669 = vadd.f32 %v2390, %v2636
      %2671 = vset.pattern.permute.xlu0 0
      %2672 = vperm.xlu0 %2671, %v311
      %v2673 = vpop.permute.xlu0 %2672
      %2676 = vset.pattern.permute.xlu0 0
      %2677 = vperm.xlu0 %2676, %v312
      %v2678 = vpop.permute.xlu0 %2677
      %2681 = vset.pattern.permute.xlu0 0
      %2682 = vperm.xlu0 %2681, %v313
      %v2683 = vpop.permute.xlu0 %2682
      %2686 = vset.pattern.permute.xlu0 0
      %2687 = vperm.xlu0 %2686, %v314
      %v2688 = vpop.permute.xlu0 %2687
      %2691 = vset.pattern.permute.xlu0 0
      %2692 = vperm.xlu0 %2691, %v315
      %v2693 = vpop.permute.xlu0 %2692
      %2696 = vset.pattern.permute.xlu0 0
      %2697 = vperm.xlu0 %2696, %v316
      %v2698 = vpop.permute.xlu0 %2697
      %2701 = vset.pattern.permute.xlu0 0
      %2702 = vperm.xlu0 %2701, %v317
      %v2703 = vpop.permute.xlu0 %2702
      %2706 = vset.pattern.permute.xlu0 0
      %2707 = vperm.xlu0 %2706, %v318
      %v2708 = vpop.permute.xlu0 %2707
      %2711 = vset.pattern.permute.xlu0 0
      %2712 = vperm.xlu0 %2711, %v319
      %v2713 = vpop.permute.xlu0 %2712
      %2716 = vset.pattern.permute.xlu0 0
      %2717 = vperm.xlu0 %2716, %v320
      %v2718 = vpop.permute.xlu0 %2717
      %2721 = vset.pattern.permute.xlu0 0
      %2722 = vperm.xlu0 %2721, %v321
      %v2723 = vpop.permute.xlu0 %2722
      %2726 = vset.pattern.permute.xlu0 0
      %2727 = vperm.xlu0 %2726, %v322
      %v2728 = vpop.permute.xlu0 %2727
      %2731 = vset.pattern.permute.xlu0 0
      %2732 = vperm.xlu0 %2731, %v323
      %v2733 = vpop.permute.xlu0 %2732
      %2736 = vset.pattern.permute.xlu0 0
      %2737 = vperm.xlu0 %2736, %v324
      %v2738 = vpop.permute.xlu0 %2737
      %2741 = vset.pattern.permute.xlu0 0
      %2742 = vperm.xlu0 %2741, %v325
      %v2743 = vpop.permute.xlu0 %2742
      %2746 = vset.pattern.permute.xlu0 0
      %2747 = vperm.xlu0 %2746, %v326
      %v2748 = vpop.permute.xlu0 %2747
      %2751 = vset.pattern.permute.xlu0 0
      %2752 = vperm.xlu0 %2751, %v327
      %v2753 = vpop.permute.xlu0 %2752
      %2756 = vset.pattern.permute.xlu0 0
      %2757 = vperm.xlu0 %2756, %v328
      %v2758 = vpop.permute.xlu0 %2757
      %2761 = vset.pattern.permute.xlu0 0
      %2762 = vperm.xlu0 %2761, %v329
      %v2763 = vpop.permute.xlu0 %2762
      %2766 = vset.pattern.permute.xlu0 0
      %2767 = vperm.xlu0 %2766, %v330
      %v2768 = vpop.permute.xlu0 %2767
      %2771 = vset.pattern.permute.xlu0 0
      %2772 = vperm.xlu0 %2771, %v331
      %v2773 = vpop.permute.xlu0 %2772
      %2776 = vset.pattern.permute.xlu0 0
      %2777 = vperm.xlu0 %2776, %v332
      %v2778 = vpop.permute.xlu0 %2777
      %2781 = vset.pattern.permute.xlu0 0
      %2782 = vperm.xlu0 %2781, %v333
      %v2783 = vpop.permute.xlu0 %2782
      %2786 = vset.pattern.permute.xlu0 0
      %2787 = vperm.xlu0 %2786, %v334
      %v2788 = vpop.permute.xlu0 %2787
      %2791 = vset.pattern.permute.xlu0 0
      %2792 = vperm.xlu0 %2791, %v335
      %v2793 = vpop.permute.xlu0 %2792
      %2796 = vset.pattern.permute.xlu0 0
      %2797 = vperm.xlu0 %2796, %v336
      %v2798 = vpop.permute.xlu0 %2797
      %2801 = vset.pattern.permute.xlu0 0
      %2802 = vperm.xlu0 %2801, %v337
      %v2803 = vpop.permute.xlu0 %2802
      %2806 = vset.pattern.permute.xlu0 0
      %2807 = vperm.xlu0 %2806, %v338
      %v2808 = vpop.permute.xlu0 %2807
      %2811 = vset.pattern.permute.xlu0 0
      %2812 = vperm.xlu0 %2811, %v339
      %v2813 = vpop.permute.xlu0 %2812
      %2816 = vset.pattern.permute.xlu0 0
      %2817 = vperm.xlu0 %2816, %v340
      %v2818 = vpop.permute.xlu0 %2817
      %2821 = vset.pattern.permute.xlu0 0
      %2822 = vperm.xlu0 %2821, %v341
      %v2823 = vpop.permute.xlu0 %2822
      %2826 = vset.pattern.permute.xlu0 0
      %2827 = vperm.xlu0 %2826, %v342
      %v2828 = vpop.permute.xlu0 %2827
      %v2830 = vmul.f32 %v2638, %v2673
      %v2831 = vmul.f32 %v2639, %v2678
      %v2832 = vmul.f32 %v2640, %v2683
      %v2833 = vmul.f32 %v2641, %v2688
      %v2834 = vmul.f32 %v2642, %v2693
      %v2835 = vmul.f32 %v2643, %v2698
      %v2836 = vmul.f32 %v2644, %v2703
      %v2837 = vmul.f32 %v2645, %v2708
      %v2838 = vmul.f32 %v2646, %v2713
      %v2839 = vmul.f32 %v2647, %v2718
      %v2840 = vmul.f32 %v2648, %v2723
      %v2841 = vmul.f32 %v2649, %v2728
      %v2842 = vmul.f32 %v2650, %v2733
      %v2843 = vmul.f32 %v2651, %v2738
      %v2844 = vmul.f32 %v2652, %v2743
      %v2845 = vmul.f32 %v2653, %v2748
      %v2846 = vmul.f32 %v2654, %v2753
      %v2847 = vmul.f32 %v2655, %v2758
      %v2848 = vmul.f32 %v2656, %v2763
      %v2849 = vmul.f32 %v2657, %v2768
      %v2850 = vmul.f32 %v2658, %v2773
      %v2851 = vmul.f32 %v2659, %v2778
      %v2852 = vmul.f32 %v2660, %v2783
      %v2853 = vmul.f32 %v2661, %v2788
      %v2854 = vmul.f32 %v2662, %v2793
      %v2855 = vmul.f32 %v2663, %v2798
      %v2856 = vmul.f32 %v2664, %v2803
      %v2857 = vmul.f32 %v2665, %v2808
      %v2858 = vmul.f32 %v2666, %v2813
      %v2859 = vmul.f32 %v2667, %v2818
      %v2860 = vmul.f32 %v2668, %v2823
      %v2861 = vmul.f32 %v2669, %v2828
      %v2862 = vadd.f32 %v1988, %v2830
      %v2863 = vadd.f32 %v1989, %v2831
      %v2864 = vadd.f32 %v1990, %v2832
      %v2865 = vadd.f32 %v1991, %v2833
      %v2866 = vadd.f32 %v1992, %v2834
      %v2867 = vadd.f32 %v1993, %v2835
      %v2868 = vadd.f32 %v1994, %v2836
      %v2869 = vadd.f32 %v1995, %v2837
      %v2870 = vadd.f32 %v1996, %v2838
      %v2871 = vadd.f32 %v1997, %v2839
      %v2872 = vadd.f32 %v1998, %v2840
      %v2873 = vadd.f32 %v1999, %v2841
      %v2874 = vadd.f32 %v2000, %v2842
      %v2875 = vadd.f32 %v2001, %v2843
      %v2876 = vadd.f32 %v2002, %v2844
      %v2877 = vadd.f32 %v2003, %v2845
      %v2878 = vadd.f32 %v2004, %v2846
      %v2879 = vadd.f32 %v2005, %v2847
      %v2880 = vadd.f32 %v2006, %v2848
      %v2881 = vadd.f32 %v2007, %v2849
      %v2882 = vadd.f32 %v2008, %v2850
      %v2883 = vadd.f32 %v2009, %v2851
      %v2884 = vadd.f32 %v2010, %v2852
      %v2885 = vadd.f32 %v2011, %v2853
      %v2886 = vadd.f32 %v2012, %v2854
      %v2887 = vadd.f32 %v2013, %v2855
      %v2888 = vadd.f32 %v2014, %v2856
      %v2889 = vadd.f32 %v2015, %v2857
      %v2890 = vadd.f32 %v2016, %v2858
      %v2891 = vadd.f32 %v2017, %v2859
      %v2892 = vadd.f32 %v2018, %v2860
      %v2893 = vadd.f32 %v2019, %v2861
      %v2894 = vld [vmem:[%s2] sm:$0x1]
      %v2896 = vperm.slane %v2894, 0
      %v2898 = vadd.f32 %v2862, %v2896
      %v2899 = vadd.f32 %v2863, %v2896
      %v2900 = vadd.f32 %v2864, %v2896
      %v2901 = vadd.f32 %v2865, %v2896
      %v2902 = vadd.f32 %v2866, %v2896
      %v2903 = vadd.f32 %v2867, %v2896
      %v2904 = vadd.f32 %v2868, %v2896
      %v2905 = vadd.f32 %v2869, %v2896
      %v2906 = vadd.f32 %v2870, %v2896
      %v2907 = vadd.f32 %v2871, %v2896
      %v2908 = vadd.f32 %v2872, %v2896
      %v2909 = vadd.f32 %v2873, %v2896
      %v2910 = vadd.f32 %v2874, %v2896
      %v2911 = vadd.f32 %v2875, %v2896
      %v2912 = vadd.f32 %v2876, %v2896
      %v2913 = vadd.f32 %v2877, %v2896
      %v2914 = vadd.f32 %v2878, %v2896
      %v2915 = vadd.f32 %v2879, %v2896
      %v2916 = vadd.f32 %v2880, %v2896
      %v2917 = vadd.f32 %v2881, %v2896
      %v2918 = vadd.f32 %v2882, %v2896
      %v2919 = vadd.f32 %v2883, %v2896
      %v2920 = vadd.f32 %v2884, %v2896
      %v2921 = vadd.f32 %v2885, %v2896
      %v2922 = vadd.f32 %v2886, %v2896
      %v2923 = vadd.f32 %v2887, %v2896
      %v2924 = vadd.f32 %v2888, %v2896
      %v2925 = vadd.f32 %v2889, %v2896
      %v2926 = vadd.f32 %v2890, %v2896
      %v2927 = vadd.f32 %v2891, %v2896
      %v2928 = vadd.f32 %v2892, %v2896
      %v2929 = vadd.f32 %v2893, %v2896
      %v2930 = vmax.f32 %v2898, 0.0
      %v2931 = vmax.f32 %v2899, 0.0
      %v2932 = vmax.f32 %v2900, 0.0
      %v2933 = vmax.f32 %v2901, 0.0
      %v2934 = vmax.f32 %v2902, 0.0
      %v2935 = vmax.f32 %v2903, 0.0
      %v2936 = vmax.f32 %v2904, 0.0
      %v2937 = vmax.f32 %v2905, 0.0
      %v2938 = vmax.f32 %v2906, 0.0
      %v2939 = vmax.f32 %v2907, 0.0
      %v2940 = vmax.f32 %v2908, 0.0
      %v2941 = vmax.f32 %v2909, 0.0
      %v2942 = vmax.f32 %v2910, 0.0
      %v2943 = vmax.f32 %v2911, 0.0
      %v2944 = vmax.f32 %v2912, 0.0
      %v2945 = vmax.f32 %v2913, 0.0
      %v2946 = vmax.f32 %v2914, 0.0
      %v2947 = vmax.f32 %v2915, 0.0
      %v2948 = vmax.f32 %v2916, 0.0
      %v2949 = vmax.f32 %v2917, 0.0
      %v2950 = vmax.f32 %v2918, 0.0
      %v2951 = vmax.f32 %v2919, 0.0
      %v2952 = vmax.f32 %v2920, 0.0
      %v2953 = vmax.f32 %v2921, 0.0
      %v2954 = vmax.f32 %v2922, 0.0
      %v2955 = vmax.f32 %v2923, 0.0
      %v2956 = vmax.f32 %v2924, 0.0
      %v2957 = vmax.f32 %v2925, 0.0
      %v2958 = vmax.f32 %v2926, 0.0
      %v2959 = vmax.f32 %v2927, 0.0
      %v2960 = vmax.f32 %v2928, 0.0
      %v2961 = vmax.f32 %v2929, 0.0
      %2962 = vst.msk [vmem:[#allocation2] sm:$0xff] %vm412, 0.0
      %2963 = vst.msk [vmem:[#allocation2 + $0x8] sm:$0xff] %vm412, 0.0
      %2964 = vst.msk [vmem:[#allocation2 + $0x10] sm:$0xff] %vm412, 0.0
      %2965 = vst.msk [vmem:[#allocation2 + $0x18] sm:$0xff] %vm412, %v2930
      %2966 = vst.msk [vmem:[#allocation2 + $0x20] sm:$0xff] %vm412, %v2931
      %2967 = vst.msk [vmem:[#allocation2 + $0x28] sm:$0xff] %vm412, %v2932
      %2968 = vst.msk [vmem:[#allocation2 + $0x30] sm:$0xff] %vm412, %v2933
      %2969 = vst.msk [vmem:[#allocation2 + $0x38] sm:$0xff] %vm412, %v2934
      %2970 = vst.msk [vmem:[#allocation2 + $0x40] sm:$0xff] %vm412, %v2935
      %2971 = vst.msk [vmem:[#allocation2 + $0x48] sm:$0xff] %vm412, %v2936
      %2972 = vst.msk [vmem:[#allocation2 + $0x50] sm:$0xff] %vm412, %v2937
      %2973 = vst.msk [vmem:[#allocation2 + $0x58] sm:$0xff] %vm412, %v2938
      %2974 = vst.msk [vmem:[#allocation2 + $0x60] sm:$0xff] %vm412, %v2939
      %2975 = vst.msk [vmem:[#allocation2 + $0x68] sm:$0xff] %vm412, %v2940
      %2976 = vst.msk [vmem:[#allocation2 + $0x70] sm:$0xff] %vm412, %v2941
      %2977 = vst.msk [vmem:[#allocation2 + $0x78] sm:$0xff] %vm412, %v2942
      %2978 = vst.msk [vmem:[#allocation2 + $0x80] sm:$0xff] %vm412, %v2943
      %2979 = vst.msk [vmem:[#allocation2 + $0x88] sm:$0xff] %vm412, %v2944
      %2980 = vst.msk [vmem:[#allocation2 + $0x90] sm:$0xff] %vm412, %v2945
      %2981 = vst.msk [vmem:[#allocation2 + $0x98] sm:$0xff] %vm412, %v2946
      %2982 = vst.msk [vmem:[#allocation2 + $0xa0] sm:$0xff] %vm412, %v2947
      %2983 = vst.msk [vmem:[#allocation2 + $0xa8] sm:$0xff] %vm412, %v2948
      %2984 = vst.msk [vmem:[#allocation2 + $0xb0] sm:$0xff] %vm412, %v2949
      %2985 = vst.msk [vmem:[#allocation2 + $0xb8] sm:$0xff] %vm412, %v2950
      %2986 = vst.msk [vmem:[#allocation2 + $0xc0] sm:$0xff] %vm412, %v2951
      %2987 = vst.msk [vmem:[#allocation2 + $0xc8] sm:$0xff] %vm412, %v2952
      %2988 = vst.msk [vmem:[#allocation2 + $0xd0] sm:$0xff] %vm412, %v2953
      %2989 = vst.msk [vmem:[#allocation2 + $0xd8] sm:$0xff] %vm412, %v2954
      %2990 = vst.msk [vmem:[#allocation2 + $0xe0] sm:$0xff] %vm412, %v2955
      %2991 = vst.msk [vmem:[#allocation2 + $0xe8] sm:$0xff] %vm412, %v2956
      %2992 = vst.msk [vmem:[#allocation2 + $0xf0] sm:$0xff] %vm412, %v2957
      %2993 = vst.msk [vmem:[#allocation2 + $0xf8] sm:$0xff] %vm412, %v2958
      %2994 = vst.msk [vmem:[#allocation2 + $0x100] sm:$0xff] %vm412, %v2959
      %2995 = vst.msk [vmem:[#allocation2 + $0x108] sm:$0xff] %vm412, %v2960
      %2996 = vst.msk [vmem:[#allocation2 + $0x110] sm:$0xff] %vm412, %v2961
      %2997 = vst.msk [vmem:[#allocation2 + $0x118] sm:$0xff] %vm412, 0.0
      %2998 = vst.msk [vmem:[#allocation2 + $0x120] sm:$0xff] %vm412, 0.0
      %2999 = vst.msk [vmem:[#allocation2 + $0x128] sm:$0xff] %vm412, 0.0
      %v3000 = vld [vmem:[#allocation2 + $0x7] sm:$0xff]
      %v3001 = vld [vmem:[#allocation2 + $0xf] sm:$0xff]
      %v3002 = vld [vmem:[#allocation2 + $0x17] sm:$0xff]
      %v3003 = vld [vmem:[#allocation2 + $0x1f] sm:$0xff]
      %v3004 = vld [vmem:[#allocation2 + $0x27] sm:$0xff]
      %v3005 = vld [vmem:[#allocation2 + $0x2f] sm:$0xff]
      %v3006 = vld [vmem:[#allocation2 + $0x37] sm:$0xff]
      %v3007 = vld [vmem:[#allocation2 + $0x3f] sm:$0xff]
      %v3008 = vld [vmem:[#allocation2 + $0x47] sm:$0xff]
      %v3009 = vld [vmem:[#allocation2 + $0x4f] sm:$0xff]
      %v3010 = vld [vmem:[#allocation2 + $0x57] sm:$0xff]
      %v3011 = vld [vmem:[#allocation2 + $0x5f] sm:$0xff]
      %v3012 = vld [vmem:[#allocation2 + $0x67] sm:$0xff]
      %v3013 = vld [vmem:[#allocation2 + $0x6f] sm:$0xff]
      %v3014 = vld [vmem:[#allocation2 + $0x77] sm:$0xff]
      %v3015 = vld [vmem:[#allocation2 + $0x7f] sm:$0xff]
      %v3016 = vld [vmem:[#allocation2 + $0x87] sm:$0xff]
      %v3017 = vld [vmem:[#allocation2 + $0x8f] sm:$0xff]
      %v3018 = vld [vmem:[#allocation2 + $0x97] sm:$0xff]
      %v3019 = vld [vmem:[#allocation2 + $0x9f] sm:$0xff]
      %v3020 = vld [vmem:[#allocation2 + $0xa7] sm:$0xff]
      %v3021 = vld [vmem:[#allocation2 + $0xaf] sm:$0xff]
      %v3022 = vld [vmem:[#allocation2 + $0xb7] sm:$0xff]
      %v3023 = vld [vmem:[#allocation2 + $0xbf] sm:$0xff]
      %v3024 = vld [vmem:[#allocation2 + $0xc7] sm:$0xff]
      %v3025 = vld [vmem:[#allocation2 + $0xcf] sm:$0xff]
      %v3026 = vld [vmem:[#allocation2 + $0xd7] sm:$0xff]
      %v3027 = vld [vmem:[#allocation2 + $0xdf] sm:$0xff]
      %v3028 = vld [vmem:[#allocation2 + $0xe7] sm:$0xff]
      %v3029 = vld [vmem:[#allocation2 + $0xef] sm:$0xff]
      %v3030 = vld [vmem:[#allocation2 + $0xf7] sm:$0xff]
      %v3031 = vld [vmem:[#allocation2 + $0xff] sm:$0xff]
      %v3032 = vld [vmem:[%s3] sm:$0xf]
      %v3033 = vld [vmem:[#allocation2 + $0x107] sm:$0xff]
      %v3034 = vld [vmem:[#allocation2 + $0x10f] sm:$0xff]
      %s3035 = scalar_lea.vmem %s3, 12
      %v3036 = vld [vmem:[%s3035] sm:$0xf]
      %v3038 = vsel %vm412, %v3002, 0
      %v3041 = vsel %vm412, %v3003, 0
      %v3044 = vsel %vm412, %v3004, 0
      %v3047 = vsel %vm412, %v3005, 0
      %v3050 = vsel %vm412, %v3006, 0
      %v3053 = vsel %vm412, %v3007, 0
      %v3056 = vsel %vm412, %v3008, 0
      %v3059 = vsel %vm412, %v3009, 0
      %v3062 = vsel %vm412, %v3010, 0
      %v3065 = vsel %vm412, %v3011, 0
      %v3068 = vsel %vm412, %v3012, 0
      %v3071 = vsel %vm412, %v3013, 0
      %v3074 = vsel %vm412, %v3014, 0
      %v3077 = vsel %vm412, %v3015, 0
      %v3080 = vsel %vm412, %v3016, 0
      %v3083 = vsel %vm412, %v3017, 0
      %v3086 = vsel %vm412, %v3018, 0
      %v3089 = vsel %vm412, %v3019, 0
      %v3092 = vsel %vm412, %v3020, 0
      %v3095 = vsel %vm412, %v3021, 0
      %v3098 = vsel %vm412, %v3022, 0
      %v3101 = vsel %vm412, %v3023, 0
      %v3104 = vsel %vm412, %v3024, 0
      %v3107 = vsel %vm412, %v3025, 0
      %v3110 = vsel %vm412, %v3026, 0
      %v3113 = vsel %vm412, %v3027, 0
      %v3116 = vsel %vm412, %v3028, 0
      %v3119 = vsel %vm412, %v3029, 0
      %v3122 = vsel %vm412, %v3030, 0
      %v3125 = vsel %vm412, %v3031, 0
      %v3128 = vsel %vm412, %v3033, 0
      %v3131 = vsel %vm412, %v3034, 0
      %v3134 = vsel %vm509, %v3036, 0
      %3136 = vmatpush.msra.mxu0 0.0
      %3137 = vmatpush.msra.mxu0 0.0
      %3138 = vmatpush.msra.mxu0 0.0
      %3139 = vmatpush.msra.mxu0 0.0
      %3140 = vmatpush.msra.mxu0 0.0
      %3141 = vmatpush.msra.mxu0 0.0
      %3142 = vmatpush.msra.mxu0 0.0
      %3143 = vmatpush.msra.mxu0 0.0
      %3144 = vmatpush.msra.mxu0 0.0
      %3145 = vmatpush.msra.mxu0 0.0
      %3146 = vmatpush.msra.mxu0 0.0
      %3147 = vmatpush.msra.mxu0 0.0
      %3148 = vmatpush.msra.mxu0 0.0
      %3149 = vmatpush.msra.mxu0 0.0
      %3150 = vmatpush.msra.mxu0 0.0
      %3151 = vmatpush.msra.mxu0 %v3134
      %3152 = vmatmul.f32.gmra.mxu0 %v3038
      %v3153 = vpop.f32.mrf.mxu0
      %v3154 = vadd.f32 0.0, %v3153
      %3155 = vmatmul.f32.gmra.mxu0 %v3041
      %v3156 = vpop.f32.mrf.mxu0
      %v3157 = vadd.f32 0.0, %v3156
      %3158 = vmatmul.f32.gmra.mxu0 %v3044
      %v3159 = vpop.f32.mrf.mxu0
      %v3160 = vadd.f32 0.0, %v3159
      %3161 = vmatmul.f32.gmra.mxu0 %v3047
      %v3162 = vpop.f32.mrf.mxu0
      %v3163 = vadd.f32 0.0, %v3162
      %3164 = vmatmul.f32.gmra.mxu0 %v3050
      %v3165 = vpop.f32.mrf.mxu0
      %v3166 = vadd.f32 0.0, %v3165
      %3167 = vmatmul.f32.gmra.mxu0 %v3053
      %v3168 = vpop.f32.mrf.mxu0
      %v3169 = vadd.f32 0.0, %v3168
      %3170 = vmatmul.f32.gmra.mxu0 %v3056
      %v3171 = vpop.f32.mrf.mxu0
      %v3172 = vadd.f32 0.0, %v3171
      %3173 = vmatmul.f32.gmra.mxu0 %v3059
      %v3174 = vpop.f32.mrf.mxu0
      %v3175 = vadd.f32 0.0, %v3174
      %3176 = vmatmul.f32.gmra.mxu0 %v3062
      %v3177 = vpop.f32.mrf.mxu0
      %v3178 = vadd.f32 0.0, %v3177
      %3179 = vmatmul.f32.gmra.mxu0 %v3065
      %v3180 = vpop.f32.mrf.mxu0
      %v3181 = vadd.f32 0.0, %v3180
      %3182 = vmatmul.f32.gmra.mxu0 %v3068
      %v3183 = vpop.f32.mrf.mxu0
      %v3184 = vadd.f32 0.0, %v3183
      %3185 = vmatmul.f32.gmra.mxu0 %v3071
      %v3186 = vpop.f32.mrf.mxu0
      %v3187 = vadd.f32 0.0, %v3186
      %3188 = vmatmul.f32.gmra.mxu0 %v3074
      %v3189 = vpop.f32.mrf.mxu0
      %v3190 = vadd.f32 0.0, %v3189
      %3191 = vmatmul.f32.gmra.mxu0 %v3077
      %v3192 = vpop.f32.mrf.mxu0
      %v3193 = vadd.f32 0.0, %v3192
      %3194 = vmatmul.f32.gmra.mxu0 %v3080
      %v3195 = vpop.f32.mrf.mxu0
      %v3196 = vadd.f32 0.0, %v3195
      %3197 = vmatmul.f32.gmra.mxu0 %v3083
      %v3198 = vpop.f32.mrf.mxu0
      %v3199 = vadd.f32 0.0, %v3198
      %3200 = vmatmul.f32.gmra.mxu0 %v3086
      %v3201 = vpop.f32.mrf.mxu0
      %v3202 = vadd.f32 0.0, %v3201
      %3203 = vmatmul.f32.gmra.mxu0 %v3089
      %v3204 = vpop.f32.mrf.mxu0
      %v3205 = vadd.f32 0.0, %v3204
      %3206 = vmatmul.f32.gmra.mxu0 %v3092
      %v3207 = vpop.f32.mrf.mxu0
      %v3208 = vadd.f32 0.0, %v3207
      %3209 = vmatmul.f32.gmra.mxu0 %v3095
      %v3210 = vpop.f32.mrf.mxu0
      %v3211 = vadd.f32 0.0, %v3210
      %3212 = vmatmul.f32.gmra.mxu0 %v3098
      %v3213 = vpop.f32.mrf.mxu0
      %v3214 = vadd.f32 0.0, %v3213
      %3215 = vmatmul.f32.gmra.mxu0 %v3101
      %v3216 = vpop.f32.mrf.mxu0
      %v3217 = vadd.f32 0.0, %v3216
      %3218 = vmatmul.f32.gmra.mxu0 %v3104
      %v3219 = vpop.f32.mrf.mxu0
      %v3220 = vadd.f32 0.0, %v3219
      %3221 = vmatmul.f32.gmra.mxu0 %v3107
      %v3222 = vpop.f32.mrf.mxu0
      %v3223 = vadd.f32 0.0, %v3222
      %3224 = vmatmul.f32.gmra.mxu0 %v3110
      %v3225 = vpop.f32.mrf.mxu0
      %v3226 = vadd.f32 0.0, %v3225
      %3227 = vmatmul.f32.gmra.mxu0 %v3113
      %v3228 = vpop.f32.mrf.mxu0
      %v3229 = vadd.f32 0.0, %v3228
      %3230 = vmatmul.f32.gmra.mxu0 %v3116
      %v3231 = vpop.f32.mrf.mxu0
      %v3232 = vadd.f32 0.0, %v3231
      %3233 = vmatmul.f32.gmra.mxu0 %v3119
      %v3234 = vpop.f32.mrf.mxu0
      %v3235 = vadd.f32 0.0, %v3234
      %3236 = vmatmul.f32.gmra.mxu0 %v3122
      %v3237 = vpop.f32.mrf.mxu0
      %v3238 = vadd.f32 0.0, %v3237
      %3239 = vmatmul.f32.gmra.mxu0 %v3125
      %v3240 = vpop.f32.mrf.mxu0
      %v3241 = vadd.f32 0.0, %v3240
      %3242 = vmatmul.f32.gmra.mxu0 %v3128
      %v3243 = vpop.f32.mrf.mxu0
      %v3244 = vadd.f32 0.0, %v3243
      %3245 = vmatmul.f32.gmra.mxu0 %v3131
      %v3246 = vpop.f32.mrf.mxu0
      %v3247 = vadd.f32 0.0, %v3246
      %3248 = vdwg.mxu0
      %v3250 = vsel %vm412, %v3000, 0
      %v3253 = vsel %vm412, %v3001, 0
      %v3256 = vsel %vm509, %v3032, 0
      %3258 = vmatpush.msra.mxu0 0.0
      %3259 = vmatpush.msra.mxu0 0.0
      %3260 = vmatpush.msra.mxu0 0.0
      %3261 = vmatpush.msra.mxu0 0.0
      %3262 = vmatpush.msra.mxu0 0.0
      %3263 = vmatpush.msra.mxu0 0.0
      %3264 = vmatpush.msra.mxu0 0.0
      %3265 = vmatpush.msra.mxu0 0.0
      %3266 = vmatpush.msra.mxu0 0.0
      %3267 = vmatpush.msra.mxu0 0.0
      %3268 = vmatpush.msra.mxu0 0.0
      %3269 = vmatpush.msra.mxu0 0.0
      %3270 = vmatpush.msra.mxu0 0.0
      %3271 = vmatpush.msra.mxu0 0.0
      %3272 = vmatpush.msra.mxu0 0.0
      %3273 = vmatpush.msra.mxu0 %v3256
      %3274 = vmatmul.f32.gmra.mxu0 %v3250
      %v3275 = vpop.f32.mrf.mxu0
      %v3276 = vadd.f32 %v3154, %v3275
      %3277 = vmatmul.f32.gmra.mxu0 %v3253
      %v3278 = vpop.f32.mrf.mxu0
      %v3279 = vadd.f32 %v3157, %v3278
      %3280 = vmatmul.f32.gmra.mxu0 %v3038
      %v3281 = vpop.f32.mrf.mxu0
      %v3282 = vadd.f32 %v3160, %v3281
      %3283 = vmatmul.f32.gmra.mxu0 %v3041
      %v3284 = vpop.f32.mrf.mxu0
      %v3285 = vadd.f32 %v3163, %v3284
      %3286 = vmatmul.f32.gmra.mxu0 %v3044
      %v3287 = vpop.f32.mrf.mxu0
      %v3288 = vadd.f32 %v3166, %v3287
      %3289 = vmatmul.f32.gmra.mxu0 %v3047
      %v3290 = vpop.f32.mrf.mxu0
      %v3291 = vadd.f32 %v3169, %v3290
      %3292 = vmatmul.f32.gmra.mxu0 %v3050
      %v3293 = vpop.f32.mrf.mxu0
      %v3294 = vadd.f32 %v3172, %v3293
      %3295 = vmatmul.f32.gmra.mxu0 %v3053
      %v3296 = vpop.f32.mrf.mxu0
      %v3297 = vadd.f32 %v3175, %v3296
      %3298 = vmatmul.f32.gmra.mxu0 %v3056
      %v3299 = vpop.f32.mrf.mxu0
      %v3300 = vadd.f32 %v3178, %v3299
      %3301 = vmatmul.f32.gmra.mxu0 %v3059
      %v3302 = vpop.f32.mrf.mxu0
      %v3303 = vadd.f32 %v3181, %v3302
      %3304 = vmatmul.f32.gmra.mxu0 %v3062
      %v3305 = vpop.f32.mrf.mxu0
      %v3306 = vadd.f32 %v3184, %v3305
      %3307 = vmatmul.f32.gmra.mxu0 %v3065
      %v3308 = vpop.f32.mrf.mxu0
      %v3309 = vadd.f32 %v3187, %v3308
      %3310 = vmatmul.f32.gmra.mxu0 %v3068
      %v3311 = vpop.f32.mrf.mxu0
      %v3312 = vadd.f32 %v3190, %v3311
      %3313 = vmatmul.f32.gmra.mxu0 %v3071
      %v3314 = vpop.f32.mrf.mxu0
      %v3315 = vadd.f32 %v3193, %v3314
      %3316 = vmatmul.f32.gmra.mxu0 %v3074
      %v3317 = vpop.f32.mrf.mxu0
      %v3318 = vadd.f32 %v3196, %v3317
      %3319 = vmatmul.f32.gmra.mxu0 %v3077
      %v3320 = vpop.f32.mrf.mxu0
      %v3321 = vadd.f32 %v3199, %v3320
      %3322 = vmatmul.f32.gmra.mxu0 %v3080
      %v3323 = vpop.f32.mrf.mxu0
      %v3324 = vadd.f32 %v3202, %v3323
      %3325 = vmatmul.f32.gmra.mxu0 %v3083
      %v3326 = vpop.f32.mrf.mxu0
      %v3327 = vadd.f32 %v3205, %v3326
      %3328 = vmatmul.f32.gmra.mxu0 %v3086
      %v3329 = vpop.f32.mrf.mxu0
      %v3330 = vadd.f32 %v3208, %v3329
      %3331 = vmatmul.f32.gmra.mxu0 %v3089
      %v3332 = vpop.f32.mrf.mxu0
      %v3333 = vadd.f32 %v3211, %v3332
      %3334 = vmatmul.f32.gmra.mxu0 %v3092
      %v3335 = vpop.f32.mrf.mxu0
      %v3336 = vadd.f32 %v3214, %v3335
      %3337 = vmatmul.f32.gmra.mxu0 %v3095
      %v3338 = vpop.f32.mrf.mxu0
      %v3339 = vadd.f32 %v3217, %v3338
      %3340 = vmatmul.f32.gmra.mxu0 %v3098
      %v3341 = vpop.f32.mrf.mxu0
      %v3342 = vadd.f32 %v3220, %v3341
      %3343 = vmatmul.f32.gmra.mxu0 %v3101
      %v3344 = vpop.f32.mrf.mxu0
      %v3345 = vadd.f32 %v3223, %v3344
      %3346 = vmatmul.f32.gmra.mxu0 %v3104
      %v3347 = vpop.f32.mrf.mxu0
      %v3348 = vadd.f32 %v3226, %v3347
      %3349 = vmatmul.f32.gmra.mxu0 %v3107
      %v3350 = vpop.f32.mrf.mxu0
      %v3351 = vadd.f32 %v3229, %v3350
      %3352 = vmatmul.f32.gmra.mxu0 %v3110
      %v3353 = vpop.f32.mrf.mxu0
      %v3354 = vadd.f32 %v3232, %v3353
      %3355 = vmatmul.f32.gmra.mxu0 %v3113
      %v3356 = vpop.f32.mrf.mxu0
      %v3357 = vadd.f32 %v3235, %v3356
      %3358 = vmatmul.f32.gmra.mxu0 %v3116
      %v3359 = vpop.f32.mrf.mxu0
      %v3360 = vadd.f32 %v3238, %v3359
      %3361 = vmatmul.f32.gmra.mxu0 %v3119
      %v3362 = vpop.f32.mrf.mxu0
      %v3363 = vadd.f32 %v3241, %v3362
      %3364 = vmatmul.f32.gmra.mxu0 %v3122
      %v3365 = vpop.f32.mrf.mxu0
      %v3366 = vadd.f32 %v3244, %v3365
      %3367 = vmatmul.f32.gmra.mxu0 %v3125
      %v3368 = vpop.f32.mrf.mxu0
      %v3369 = vadd.f32 %v3247, %v3368
      %3370 = vdwg.mxu0
      %v3371 = vld [vmem:[#allocation2 + $0x27] sm:$0xff]
      %v3372 = vld [vmem:[#allocation2 + $0x2f] sm:$0xff]
      %v3373 = vld [vmem:[#allocation2 + $0x37] sm:$0xff]
      %v3374 = vld [vmem:[#allocation2 + $0x3f] sm:$0xff]
      %v3375 = vld [vmem:[#allocation2 + $0x47] sm:$0xff]
      %v3376 = vld [vmem:[#allocation2 + $0x4f] sm:$0xff]
      %v3377 = vld [vmem:[#allocation2 + $0x57] sm:$0xff]
      %v3378 = vld [vmem:[#allocation2 + $0x5f] sm:$0xff]
      %v3379 = vld [vmem:[#allocation2 + $0x67] sm:$0xff]
      %v3380 = vld [vmem:[#allocation2 + $0x6f] sm:$0xff]
      %v3381 = vld [vmem:[#allocation2 + $0x77] sm:$0xff]
      %v3382 = vld [vmem:[#allocation2 + $0x7f] sm:$0xff]
      %v3383 = vld [vmem:[#allocation2 + $0x87] sm:$0xff]
      %v3384 = vld [vmem:[#allocation2 + $0x8f] sm:$0xff]
      %v3385 = vld [vmem:[#allocation2 + $0x97] sm:$0xff]
      %v3386 = vld [vmem:[#allocation2 + $0x9f] sm:$0xff]
      %v3387 = vld [vmem:[#allocation2 + $0xa7] sm:$0xff]
      %v3388 = vld [vmem:[#allocation2 + $0xaf] sm:$0xff]
      %v3389 = vld [vmem:[#allocation2 + $0xb7] sm:$0xff]
      %v3390 = vld [vmem:[#allocation2 + $0xbf] sm:$0xff]
      %v3391 = vld [vmem:[#allocation2 + $0xc7] sm:$0xff]
      %v3392 = vld [vmem:[#allocation2 + $0xcf] sm:$0xff]
      %v3393 = vld [vmem:[#allocation2 + $0xd7] sm:$0xff]
      %v3394 = vld [vmem:[#allocation2 + $0xdf] sm:$0xff]
      %v3395 = vld [vmem:[#allocation2 + $0xe7] sm:$0xff]
      %v3396 = vld [vmem:[#allocation2 + $0xef] sm:$0xff]
      %v3397 = vld [vmem:[#allocation2 + $0xf7] sm:$0xff]
      %v3398 = vld [vmem:[#allocation2 + $0xff] sm:$0xff]
      %v3399 = vld [vmem:[#allocation2 + $0x107] sm:$0xff]
      %v3400 = vld [vmem:[#allocation2 + $0x10f] sm:$0xff]
      %v3401 = vld [vmem:[#allocation2 + $0x117] sm:$0xff]
      %v3402 = vld [vmem:[#allocation2 + $0x11f] sm:$0xff]
      %s3403 = scalar_lea.vmem %s3, 24
      %v3404 = vld [vmem:[%s3403] sm:$0xf]
      %v3406 = vsel %vm412, %v3371, 0
      %v3409 = vsel %vm412, %v3372, 0
      %v3412 = vsel %vm412, %v3373, 0
      %v3415 = vsel %vm412, %v3374, 0
      %v3418 = vsel %vm412, %v3375, 0
      %v3421 = vsel %vm412, %v3376, 0
      %v3424 = vsel %vm412, %v3377, 0
      %v3427 = vsel %vm412, %v3378, 0
      %v3430 = vsel %vm412, %v3379, 0
      %v3433 = vsel %vm412, %v3380, 0
      %v3436 = vsel %vm412, %v3381, 0
      %v3439 = vsel %vm412, %v3382, 0
      %v3442 = vsel %vm412, %v3383, 0
      %v3445 = vsel %vm412, %v3384, 0
      %v3448 = vsel %vm412, %v3385, 0
      %v3451 = vsel %vm412, %v3386, 0
      %v3454 = vsel %vm412, %v3387, 0
      %v3457 = vsel %vm412, %v3388, 0
      %v3460 = vsel %vm412, %v3389, 0
      %v3463 = vsel %vm412, %v3390, 0
      %v3466 = vsel %vm412, %v3391, 0
      %v3469 = vsel %vm412, %v3392, 0
      %v3472 = vsel %vm412, %v3393, 0
      %v3475 = vsel %vm412, %v3394, 0
      %v3478 = vsel %vm412, %v3395, 0
      %v3481 = vsel %vm412, %v3396, 0
      %v3484 = vsel %vm412, %v3397, 0
      %v3487 = vsel %vm412, %v3398, 0
      %v3490 = vsel %vm412, %v3399, 0
      %v3493 = vsel %vm412, %v3400, 0
      %v3496 = vsel %vm412, %v3401, 0
      %v3499 = vsel %vm412, %v3402, 0
      %v3502 = vsel %vm509, %v3404, 0
      %3504 = vmatpush.msra.mxu0 0.0
      %3505 = vmatpush.msra.mxu0 0.0
      %3506 = vmatpush.msra.mxu0 0.0
      %3507 = vmatpush.msra.mxu0 0.0
      %3508 = vmatpush.msra.mxu0 0.0
      %3509 = vmatpush.msra.mxu0 0.0
      %3510 = vmatpush.msra.mxu0 0.0
      %3511 = vmatpush.msra.mxu0 0.0
      %3512 = vmatpush.msra.mxu0 0.0
      %3513 = vmatpush.msra.mxu0 0.0
      %3514 = vmatpush.msra.mxu0 0.0
      %3515 = vmatpush.msra.mxu0 0.0
      %3516 = vmatpush.msra.mxu0 0.0
      %3517 = vmatpush.msra.mxu0 0.0
      %3518 = vmatpush.msra.mxu0 0.0
      %3519 = vmatpush.msra.mxu0 %v3502
      %3520 = vmatmul.f32.gmra.mxu0 %v3406
      %v3521 = vpop.f32.mrf.mxu0
      %v3522 = vadd.f32 0.0, %v3521
      %3523 = vmatmul.f32.gmra.mxu0 %v3409
      %v3524 = vpop.f32.mrf.mxu0
      %v3525 = vadd.f32 0.0, %v3524
      %3526 = vmatmul.f32.gmra.mxu0 %v3412
      %v3527 = vpop.f32.mrf.mxu0
      %v3528 = vadd.f32 0.0, %v3527
      %3529 = vmatmul.f32.gmra.mxu0 %v3415
      %v3530 = vpop.f32.mrf.mxu0
      %v3531 = vadd.f32 0.0, %v3530
      %3532 = vmatmul.f32.gmra.mxu0 %v3418
      %v3533 = vpop.f32.mrf.mxu0
      %v3534 = vadd.f32 0.0, %v3533
      %3535 = vmatmul.f32.gmra.mxu0 %v3421
      %v3536 = vpop.f32.mrf.mxu0
      %v3537 = vadd.f32 0.0, %v3536
      %3538 = vmatmul.f32.gmra.mxu0 %v3424
      %v3539 = vpop.f32.mrf.mxu0
      %v3540 = vadd.f32 0.0, %v3539
      %3541 = vmatmul.f32.gmra.mxu0 %v3427
      %v3542 = vpop.f32.mrf.mxu0
      %v3543 = vadd.f32 0.0, %v3542
      %3544 = vmatmul.f32.gmra.mxu0 %v3430
      %v3545 = vpop.f32.mrf.mxu0
      %v3546 = vadd.f32 0.0, %v3545
      %3547 = vmatmul.f32.gmra.mxu0 %v3433
      %v3548 = vpop.f32.mrf.mxu0
      %v3549 = vadd.f32 0.0, %v3548
      %3550 = vmatmul.f32.gmra.mxu0 %v3436
      %v3551 = vpop.f32.mrf.mxu0
      %v3552 = vadd.f32 0.0, %v3551
      %3553 = vmatmul.f32.gmra.mxu0 %v3439
      %v3554 = vpop.f32.mrf.mxu0
      %v3555 = vadd.f32 0.0, %v3554
      %3556 = vmatmul.f32.gmra.mxu0 %v3442
      %v3557 = vpop.f32.mrf.mxu0
      %v3558 = vadd.f32 0.0, %v3557
      %3559 = vmatmul.f32.gmra.mxu0 %v3445
      %v3560 = vpop.f32.mrf.mxu0
      %v3561 = vadd.f32 0.0, %v3560
      %3562 = vmatmul.f32.gmra.mxu0 %v3448
      %v3563 = vpop.f32.mrf.mxu0
      %v3564 = vadd.f32 0.0, %v3563
      %3565 = vmatmul.f32.gmra.mxu0 %v3451
      %v3566 = vpop.f32.mrf.mxu0
      %v3567 = vadd.f32 0.0, %v3566
      %3568 = vmatmul.f32.gmra.mxu0 %v3454
      %v3569 = vpop.f32.mrf.mxu0
      %v3570 = vadd.f32 0.0, %v3569
      %3571 = vmatmul.f32.gmra.mxu0 %v3457
      %v3572 = vpop.f32.mrf.mxu0
      %v3573 = vadd.f32 0.0, %v3572
      %3574 = vmatmul.f32.gmra.mxu0 %v3460
      %v3575 = vpop.f32.mrf.mxu0
      %v3576 = vadd.f32 0.0, %v3575
      %3577 = vmatmul.f32.gmra.mxu0 %v3463
      %v3578 = vpop.f32.mrf.mxu0
      %v3579 = vadd.f32 0.0, %v3578
      %3580 = vmatmul.f32.gmra.mxu0 %v3466
      %v3581 = vpop.f32.mrf.mxu0
      %v3582 = vadd.f32 0.0, %v3581
      %3583 = vmatmul.f32.gmra.mxu0 %v3469
      %v3584 = vpop.f32.mrf.mxu0
      %v3585 = vadd.f32 0.0, %v3584
      %3586 = vmatmul.f32.gmra.mxu0 %v3472
      %v3587 = vpop.f32.mrf.mxu0
      %v3588 = vadd.f32 0.0, %v3587
      %3589 = vmatmul.f32.gmra.mxu0 %v3475
      %v3590 = vpop.f32.mrf.mxu0
      %v3591 = vadd.f32 0.0, %v3590
      %3592 = vmatmul.f32.gmra.mxu0 %v3478
      %v3593 = vpop.f32.mrf.mxu0
      %v3594 = vadd.f32 0.0, %v3593
      %3595 = vmatmul.f32.gmra.mxu0 %v3481
      %v3596 = vpop.f32.mrf.mxu0
      %v3597 = vadd.f32 0.0, %v3596
      %3598 = vmatmul.f32.gmra.mxu0 %v3484
      %v3599 = vpop.f32.mrf.mxu0
      %v3600 = vadd.f32 0.0, %v3599
      %3601 = vmatmul.f32.gmra.mxu0 %v3487
      %v3602 = vpop.f32.mrf.mxu0
      %v3603 = vadd.f32 0.0, %v3602
      %3604 = vmatmul.f32.gmra.mxu0 %v3490
      %v3605 = vpop.f32.mrf.mxu0
      %v3606 = vadd.f32 0.0, %v3605
      %3607 = vmatmul.f32.gmra.mxu0 %v3493
      %v3608 = vpop.f32.mrf.mxu0
      %v3609 = vadd.f32 0.0, %v3608
      %3610 = vmatmul.f32.gmra.mxu0 %v3496
      %v3611 = vpop.f32.mrf.mxu0
      %v3612 = vadd.f32 0.0, %v3611
      %3613 = vmatmul.f32.gmra.mxu0 %v3499
      %v3614 = vpop.f32.mrf.mxu0
      %v3615 = vadd.f32 0.0, %v3614
      %3616 = vdwg.mxu0
      %v3617 = vadd.f32 %v3276, %v3522
      %v3618 = vadd.f32 %v3279, %v3525
      %v3619 = vadd.f32 %v3282, %v3528
      %v3620 = vadd.f32 %v3285, %v3531
      %v3621 = vadd.f32 %v3288, %v3534
      %v3622 = vadd.f32 %v3291, %v3537
      %v3623 = vadd.f32 %v3294, %v3540
      %v3624 = vadd.f32 %v3297, %v3543
      %v3625 = vadd.f32 %v3300, %v3546
      %v3626 = vadd.f32 %v3303, %v3549
      %v3627 = vadd.f32 %v3306, %v3552
      %v3628 = vadd.f32 %v3309, %v3555
      %v3629 = vadd.f32 %v3312, %v3558
      %v3630 = vadd.f32 %v3315, %v3561
      %v3631 = vadd.f32 %v3318, %v3564
      %v3632 = vadd.f32 %v3321, %v3567
      %v3633 = vadd.f32 %v3324, %v3570
      %v3634 = vadd.f32 %v3327, %v3573
      %v3635 = vadd.f32 %v3330, %v3576
      %v3636 = vadd.f32 %v3333, %v3579
      %v3637 = vadd.f32 %v3336, %v3582
      %v3638 = vadd.f32 %v3339, %v3585
      %v3639 = vadd.f32 %v3342, %v3588
      %v3640 = vadd.f32 %v3345, %v3591
      %v3641 = vadd.f32 %v3348, %v3594
      %v3642 = vadd.f32 %v3351, %v3597
      %v3643 = vadd.f32 %v3354, %v3600
      %v3644 = vadd.f32 %v3357, %v3603
      %v3645 = vadd.f32 %v3360, %v3606
      %v3646 = vadd.f32 %v3363, %v3609
      %v3647 = vadd.f32 %v3366, %v3612
      %v3648 = vadd.f32 %v3369, %v3615
      %v3649 = vmul.f32 %v3617, %v1029
      %v3650 = vmul.f32 %v3618, %v1034
      %v3651 = vmul.f32 %v3619, %v1039
      %v3652 = vmul.f32 %v3620, %v1044
      %v3653 = vmul.f32 %v3621, %v1049
      %v3654 = vmul.f32 %v3622, %v1054
      %v3655 = vmul.f32 %v3623, %v1059
      %v3656 = vmul.f32 %v3624, %v1064
      %v3657 = vmul.f32 %v3625, %v1069
      %v3658 = vmul.f32 %v3626, %v1074
      %v3659 = vmul.f32 %v3627, %v1079
      %v3660 = vmul.f32 %v3628, %v1084
      %v3661 = vmul.f32 %v3629, %v1089
      %v3662 = vmul.f32 %v3630, %v1094
      %v3663 = vmul.f32 %v3631, %v1099
      %v3664 = vmul.f32 %v3632, %v1104
      %v3665 = vmul.f32 %v3633, %v1109
      %v3666 = vmul.f32 %v3634, %v1114
      %v3667 = vmul.f32 %v3635, %v1119
      %v3668 = vmul.f32 %v3636, %v1124
      %v3669 = vmul.f32 %v3637, %v1129
      %v3670 = vmul.f32 %v3638, %v1134
      %v3671 = vmul.f32 %v3639, %v1139
      %v3672 = vmul.f32 %v3640, %v1144
      %v3673 = vmul.f32 %v3641, %v1149
      %v3674 = vmul.f32 %v3642, %v1154
      %v3675 = vmul.f32 %v3643, %v1159
      %v3676 = vmul.f32 %v3644, %v1164
      %v3677 = vmul.f32 %v3645, %v1169
      %v3678 = vmul.f32 %v3646, %v1174
      %v3679 = vmul.f32 %v3647, %v1179
      %v3680 = vmul.f32 %v3648, %v1184
      %v3681 = vadd.f32 %v3649, 0.0
      %v3682 = vadd.f32 %v3650, 0.0
      %v3683 = vadd.f32 %v3651, 0.0
      %v3684 = vadd.f32 %v3652, 0.0
      %v3685 = vadd.f32 %v3653, 0.0
      %v3686 = vadd.f32 %v3654, 0.0
      %v3687 = vadd.f32 %v3655, 0.0
      %v3688 = vadd.f32 %v3656, 0.0
      %v3689 = vadd.f32 %v3657, 0.0
      %v3690 = vadd.f32 %v3658, 0.0
      %v3691 = vadd.f32 %v3659, 0.0
      %v3692 = vadd.f32 %v3660, 0.0
      %v3693 = vadd.f32 %v3661, 0.0
      %v3694 = vadd.f32 %v3662, 0.0
      %v3695 = vadd.f32 %v3663, 0.0
      %v3696 = vadd.f32 %v3664, 0.0
      %v3697 = vadd.f32 %v3665, 0.0
      %v3698 = vadd.f32 %v3666, 0.0
      %v3699 = vadd.f32 %v3667, 0.0
      %v3700 = vadd.f32 %v3668, 0.0
      %v3701 = vadd.f32 %v3669, 0.0
      %v3702 = vadd.f32 %v3670, 0.0
      %v3703 = vadd.f32 %v3671, 0.0
      %v3704 = vadd.f32 %v3672, 0.0
      %v3705 = vadd.f32 %v3673, 0.0
      %v3706 = vadd.f32 %v3674, 0.0
      %v3707 = vadd.f32 %v3675, 0.0
      %v3708 = vadd.f32 %v3676, 0.0
      %v3709 = vadd.f32 %v3677, 0.0
      %v3710 = vadd.f32 %v3678, 0.0
      %v3711 = vadd.f32 %v3679, 0.0
      %v3712 = vadd.f32 %v3680, 0.0
      %v3713 = vld [vmem:[#allocation2 + $0x8] sm:$0xff]
      %v3714 = vld [vmem:[#allocation2 + $0x10] sm:$0xff]
      %v3715 = vld [vmem:[#allocation2 + $0x18] sm:$0xff]
      %v3716 = vld [vmem:[#allocation2 + $0x20] sm:$0xff]
      %v3717 = vld [vmem:[#allocation2 + $0x28] sm:$0xff]
      %v3718 = vld [vmem:[#allocation2 + $0x30] sm:$0xff]
      %v3719 = vld [vmem:[#allocation2 + $0x38] sm:$0xff]
      %v3720 = vld [vmem:[#allocation2 + $0x40] sm:$0xff]
      %v3721 = vld [vmem:[#allocation2 + $0x48] sm:$0xff]
      %v3722 = vld [vmem:[#allocation2 + $0x50] sm:$0xff]
      %v3723 = vld [vmem:[#allocation2 + $0x58] sm:$0xff]
      %v3724 = vld [vmem:[#allocation2 + $0x60] sm:$0xff]
      %v3725 = vld [vmem:[#allocation2 + $0x68] sm:$0xff]
      %v3726 = vld [vmem:[#allocation2 + $0x70] sm:$0xff]
      %v3727 = vld [vmem:[#allocation2 + $0x78] sm:$0xff]
      %v3728 = vld [vmem:[#allocation2 + $0x80] sm:$0xff]
      %v3729 = vld [vmem:[#allocation2 + $0x88] sm:$0xff]
      %v3730 = vld [vmem:[#allocation2 + $0x90] sm:$0xff]
      %v3731 = vld [vmem:[#allocation2 + $0x98] sm:$0xff]
      %v3732 = vld [vmem:[#allocation2 + $0xa0] sm:$0xff]
      %v3733 = vld [vmem:[#allocation2 + $0xa8] sm:$0xff]
      %v3734 = vld [vmem:[#allocation2 + $0xb0] sm:$0xff]
      %v3735 = vld [vmem:[#allocation2 + $0xb8] sm:$0xff]
      %v3736 = vld [vmem:[#allocation2 + $0xc0] sm:$0xff]
      %v3737 = vld [vmem:[#allocation2 + $0xc8] sm:$0xff]
      %v3738 = vld [vmem:[#allocation2 + $0xd0] sm:$0xff]
      %v3739 = vld [vmem:[#allocation2 + $0xd8] sm:$0xff]
      %v3740 = vld [vmem:[#allocation2 + $0xe0] sm:$0xff]
      %v3741 = vld [vmem:[#allocation2 + $0xe8] sm:$0xff]
      %v3742 = vld [vmem:[#allocation2 + $0xf0] sm:$0xff]
      %v3743 = vld [vmem:[#allocation2 + $0xf8] sm:$0xff]
      %v3744 = vld [vmem:[#allocation2 + $0x100] sm:$0xff]
      %s3745 = scalar_lea.vmem %s3, 4
      %v3746 = vld [vmem:[%s3745] sm:$0xf]
      %v3747 = vld [vmem:[#allocation2 + $0x108] sm:$0xff]
      %v3748 = vld [vmem:[#allocation2 + $0x110] sm:$0xff]
      %s3749 = scalar_lea.vmem %s3, 16
      %v3750 = vld [vmem:[%s3749] sm:$0xf]
      %v3752 = vsel %vm412, %v3715, 0
      %v3755 = vsel %vm412, %v3716, 0
      %v3758 = vsel %vm412, %v3717, 0
      %v3761 = vsel %vm412, %v3718, 0
      %v3764 = vsel %vm412, %v3719, 0
      %v3767 = vsel %vm412, %v3720, 0
      %v3770 = vsel %vm412, %v3721, 0
      %v3773 = vsel %vm412, %v3722, 0
      %v3776 = vsel %vm412, %v3723, 0
      %v3779 = vsel %vm412, %v3724, 0
      %v3782 = vsel %vm412, %v3725, 0
      %v3785 = vsel %vm412, %v3726, 0
      %v3788 = vsel %vm412, %v3727, 0
      %v3791 = vsel %vm412, %v3728, 0
      %v3794 = vsel %vm412, %v3729, 0
      %v3797 = vsel %vm412, %v3730, 0
      %v3800 = vsel %vm412, %v3731, 0
      %v3803 = vsel %vm412, %v3732, 0
      %v3806 = vsel %vm412, %v3733, 0
      %v3809 = vsel %vm412, %v3734, 0
      %v3812 = vsel %vm412, %v3735, 0
      %v3815 = vsel %vm412, %v3736, 0
      %v3818 = vsel %vm412, %v3737, 0
      %v3821 = vsel %vm412, %v3738, 0
      %v3824 = vsel %vm412, %v3739, 0
      %v3827 = vsel %vm412, %v3740, 0
      %v3830 = vsel %vm412, %v3741, 0
      %v3833 = vsel %vm412, %v3742, 0
      %v3836 = vsel %vm412, %v3743, 0
      %v3839 = vsel %vm412, %v3744, 0
      %v3842 = vsel %vm412, %v3747, 0
      %v3845 = vsel %vm412, %v3748, 0
      %v3848 = vsel %vm509, %v3750, 0
      %3850 = vmatpush.msra.mxu0 0.0
      %3851 = vmatpush.msra.mxu0 0.0
      %3852 = vmatpush.msra.mxu0 0.0
      %3853 = vmatpush.msra.mxu0 0.0
      %3854 = vmatpush.msra.mxu0 0.0
      %3855 = vmatpush.msra.mxu0 0.0
      %3856 = vmatpush.msra.mxu0 0.0
      %3857 = vmatpush.msra.mxu0 0.0
      %3858 = vmatpush.msra.mxu0 0.0
      %3859 = vmatpush.msra.mxu0 0.0
      %3860 = vmatpush.msra.mxu0 0.0
      %3861 = vmatpush.msra.mxu0 0.0
      %3862 = vmatpush.msra.mxu0 0.0
      %3863 = vmatpush.msra.mxu0 0.0
      %3864 = vmatpush.msra.mxu0 0.0
      %3865 = vmatpush.msra.mxu0 %v3848
      %3866 = vmatmul.f32.gmra.mxu0 %v3752
      %v3867 = vpop.f32.mrf.mxu0
      %v3868 = vadd.f32 0.0, %v3867
      %3869 = vmatmul.f32.gmra.mxu0 %v3755
      %v3870 = vpop.f32.mrf.mxu0
      %v3871 = vadd.f32 0.0, %v3870
      %3872 = vmatmul.f32.gmra.mxu0 %v3758
      %v3873 = vpop.f32.mrf.mxu0
      %v3874 = vadd.f32 0.0, %v3873
      %3875 = vmatmul.f32.gmra.mxu0 %v3761
      %v3876 = vpop.f32.mrf.mxu0
      %v3877 = vadd.f32 0.0, %v3876
      %3878 = vmatmul.f32.gmra.mxu0 %v3764
      %v3879 = vpop.f32.mrf.mxu0
      %v3880 = vadd.f32 0.0, %v3879
      %3881 = vmatmul.f32.gmra.mxu0 %v3767
      %v3882 = vpop.f32.mrf.mxu0
      %v3883 = vadd.f32 0.0, %v3882
      %3884 = vmatmul.f32.gmra.mxu0 %v3770
      %v3885 = vpop.f32.mrf.mxu0
      %v3886 = vadd.f32 0.0, %v3885
      %3887 = vmatmul.f32.gmra.mxu0 %v3773
      %v3888 = vpop.f32.mrf.mxu0
      %v3889 = vadd.f32 0.0, %v3888
      %3890 = vmatmul.f32.gmra.mxu0 %v3776
      %v3891 = vpop.f32.mrf.mxu0
      %v3892 = vadd.f32 0.0, %v3891
      %3893 = vmatmul.f32.gmra.mxu0 %v3779
      %v3894 = vpop.f32.mrf.mxu0
      %v3895 = vadd.f32 0.0, %v3894
      %3896 = vmatmul.f32.gmra.mxu0 %v3782
      %v3897 = vpop.f32.mrf.mxu0
      %v3898 = vadd.f32 0.0, %v3897
      %3899 = vmatmul.f32.gmra.mxu0 %v3785
      %v3900 = vpop.f32.mrf.mxu0
      %v3901 = vadd.f32 0.0, %v3900
      %3902 = vmatmul.f32.gmra.mxu0 %v3788
      %v3903 = vpop.f32.mrf.mxu0
      %v3904 = vadd.f32 0.0, %v3903
      %3905 = vmatmul.f32.gmra.mxu0 %v3791
      %v3906 = vpop.f32.mrf.mxu0
      %v3907 = vadd.f32 0.0, %v3906
      %3908 = vmatmul.f32.gmra.mxu0 %v3794
      %v3909 = vpop.f32.mrf.mxu0
      %v3910 = vadd.f32 0.0, %v3909
      %3911 = vmatmul.f32.gmra.mxu0 %v3797
      %v3912 = vpop.f32.mrf.mxu0
      %v3913 = vadd.f32 0.0, %v3912
      %3914 = vmatmul.f32.gmra.mxu0 %v3800
      %v3915 = vpop.f32.mrf.mxu0
      %v3916 = vadd.f32 0.0, %v3915
      %3917 = vmatmul.f32.gmra.mxu0 %v3803
      %v3918 = vpop.f32.mrf.mxu0
      %v3919 = vadd.f32 0.0, %v3918
      %3920 = vmatmul.f32.gmra.mxu0 %v3806
      %v3921 = vpop.f32.mrf.mxu0
      %v3922 = vadd.f32 0.0, %v3921
      %3923 = vmatmul.f32.gmra.mxu0 %v3809
      %v3924 = vpop.f32.mrf.mxu0
      %v3925 = vadd.f32 0.0, %v3924
      %3926 = vmatmul.f32.gmra.mxu0 %v3812
      %v3927 = vpop.f32.mrf.mxu0
      %v3928 = vadd.f32 0.0, %v3927
      %3929 = vmatmul.f32.gmra.mxu0 %v3815
      %v3930 = vpop.f32.mrf.mxu0
      %v3931 = vadd.f32 0.0, %v3930
      %3932 = vmatmul.f32.gmra.mxu0 %v3818
      %v3933 = vpop.f32.mrf.mxu0
      %v3934 = vadd.f32 0.0, %v3933
      %3935 = vmatmul.f32.gmra.mxu0 %v3821
      %v3936 = vpop.f32.mrf.mxu0
      %v3937 = vadd.f32 0.0, %v3936
      %3938 = vmatmul.f32.gmra.mxu0 %v3824
      %v3939 = vpop.f32.mrf.mxu0
      %v3940 = vadd.f32 0.0, %v3939
      %3941 = vmatmul.f32.gmra.mxu0 %v3827
      %v3942 = vpop.f32.mrf.mxu0
      %v3943 = vadd.f32 0.0, %v3942
      %3944 = vmatmul.f32.gmra.mxu0 %v3830
      %v3945 = vpop.f32.mrf.mxu0
      %v3946 = vadd.f32 0.0, %v3945
      %3947 = vmatmul.f32.gmra.mxu0 %v3833
      %v3948 = vpop.f32.mrf.mxu0
      %v3949 = vadd.f32 0.0, %v3948
      %3950 = vmatmul.f32.gmra.mxu0 %v3836
      %v3951 = vpop.f32.mrf.mxu0
      %v3952 = vadd.f32 0.0, %v3951
      %3953 = vmatmul.f32.gmra.mxu0 %v3839
      %v3954 = vpop.f32.mrf.mxu0
      %v3955 = vadd.f32 0.0, %v3954
      %3956 = vmatmul.f32.gmra.mxu0 %v3842
      %v3957 = vpop.f32.mrf.mxu0
      %v3958 = vadd.f32 0.0, %v3957
      %3959 = vmatmul.f32.gmra.mxu0 %v3845
      %v3960 = vpop.f32.mrf.mxu0
      %v3961 = vadd.f32 0.0, %v3960
      %3962 = vdwg.mxu0
      %v3964 = vsel %vm412, %v3713, 0
      %v3967 = vsel %vm412, %v3714, 0
      %v3970 = vsel %vm509, %v3746, 0
      %3972 = vmatpush.msra.mxu0 0.0
      %3973 = vmatpush.msra.mxu0 0.0
      %3974 = vmatpush.msra.mxu0 0.0
      %3975 = vmatpush.msra.mxu0 0.0
      %3976 = vmatpush.msra.mxu0 0.0
      %3977 = vmatpush.msra.mxu0 0.0
      %3978 = vmatpush.msra.mxu0 0.0
      %3979 = vmatpush.msra.mxu0 0.0
      %3980 = vmatpush.msra.mxu0 0.0
      %3981 = vmatpush.msra.mxu0 0.0
      %3982 = vmatpush.msra.mxu0 0.0
      %3983 = vmatpush.msra.mxu0 0.0
      %3984 = vmatpush.msra.mxu0 0.0
      %3985 = vmatpush.msra.mxu0 0.0
      %3986 = vmatpush.msra.mxu0 0.0
      %3987 = vmatpush.msra.mxu0 %v3970
      %3988 = vmatmul.f32.gmra.mxu0 %v3964
      %v3989 = vpop.f32.mrf.mxu0
      %v3990 = vadd.f32 %v3868, %v3989
      %3991 = vmatmul.f32.gmra.mxu0 %v3967
      %v3992 = vpop.f32.mrf.mxu0
      %v3993 = vadd.f32 %v3871, %v3992
      %3994 = vmatmul.f32.gmra.mxu0 %v3752
      %v3995 = vpop.f32.mrf.mxu0
      %v3996 = vadd.f32 %v3874, %v3995
      %3997 = vmatmul.f32.gmra.mxu0 %v3755
      %v3998 = vpop.f32.mrf.mxu0
      %v3999 = vadd.f32 %v3877, %v3998
      %4000 = vmatmul.f32.gmra.mxu0 %v3758
      %v4001 = vpop.f32.mrf.mxu0
      %v4002 = vadd.f32 %v3880, %v4001
      %4003 = vmatmul.f32.gmra.mxu0 %v3761
      %v4004 = vpop.f32.mrf.mxu0
      %v4005 = vadd.f32 %v3883, %v4004
      %4006 = vmatmul.f32.gmra.mxu0 %v3764
      %v4007 = vpop.f32.mrf.mxu0
      %v4008 = vadd.f32 %v3886, %v4007
      %4009 = vmatmul.f32.gmra.mxu0 %v3767
      %v4010 = vpop.f32.mrf.mxu0
      %v4011 = vadd.f32 %v3889, %v4010
      %4012 = vmatmul.f32.gmra.mxu0 %v3770
      %v4013 = vpop.f32.mrf.mxu0
      %v4014 = vadd.f32 %v3892, %v4013
      %4015 = vmatmul.f32.gmra.mxu0 %v3773
      %v4016 = vpop.f32.mrf.mxu0
      %v4017 = vadd.f32 %v3895, %v4016
      %4018 = vmatmul.f32.gmra.mxu0 %v3776
      %v4019 = vpop.f32.mrf.mxu0
      %v4020 = vadd.f32 %v3898, %v4019
      %4021 = vmatmul.f32.gmra.mxu0 %v3779
      %v4022 = vpop.f32.mrf.mxu0
      %v4023 = vadd.f32 %v3901, %v4022
      %4024 = vmatmul.f32.gmra.mxu0 %v3782
      %v4025 = vpop.f32.mrf.mxu0
      %v4026 = vadd.f32 %v3904, %v4025
      %4027 = vmatmul.f32.gmra.mxu0 %v3785
      %v4028 = vpop.f32.mrf.mxu0
      %v4029 = vadd.f32 %v3907, %v4028
      %4030 = vmatmul.f32.gmra.mxu0 %v3788
      %v4031 = vpop.f32.mrf.mxu0
      %v4032 = vadd.f32 %v3910, %v4031
      %4033 = vmatmul.f32.gmra.mxu0 %v3791
      %v4034 = vpop.f32.mrf.mxu0
      %v4035 = vadd.f32 %v3913, %v4034
      %4036 = vmatmul.f32.gmra.mxu0 %v3794
      %v4037 = vpop.f32.mrf.mxu0
      %v4038 = vadd.f32 %v3916, %v4037
      %4039 = vmatmul.f32.gmra.mxu0 %v3797
      %v4040 = vpop.f32.mrf.mxu0
      %v4041 = vadd.f32 %v3919, %v4040
      %4042 = vmatmul.f32.gmra.mxu0 %v3800
      %v4043 = vpop.f32.mrf.mxu0
      %v4044 = vadd.f32 %v3922, %v4043
      %4045 = vmatmul.f32.gmra.mxu0 %v3803
      %v4046 = vpop.f32.mrf.mxu0
      %v4047 = vadd.f32 %v3925, %v4046
      %4048 = vmatmul.f32.gmra.mxu0 %v3806
      %v4049 = vpop.f32.mrf.mxu0
      %v4050 = vadd.f32 %v3928, %v4049
      %4051 = vmatmul.f32.gmra.mxu0 %v3809
      %v4052 = vpop.f32.mrf.mxu0
      %v4053 = vadd.f32 %v3931, %v4052
      %4054 = vmatmul.f32.gmra.mxu0 %v3812
      %v4055 = vpop.f32.mrf.mxu0
      %v4056 = vadd.f32 %v3934, %v4055
      %4057 = vmatmul.f32.gmra.mxu0 %v3815
      %v4058 = vpop.f32.mrf.mxu0
      %v4059 = vadd.f32 %v3937, %v4058
      %4060 = vmatmul.f32.gmra.mxu0 %v3818
      %v4061 = vpop.f32.mrf.mxu0
      %v4062 = vadd.f32 %v3940, %v4061
      %4063 = vmatmul.f32.gmra.mxu0 %v3821
      %v4064 = vpop.f32.mrf.mxu0
      %v4065 = vadd.f32 %v3943, %v4064
      %4066 = vmatmul.f32.gmra.mxu0 %v3824
      %v4067 = vpop.f32.mrf.mxu0
      %v4068 = vadd.f32 %v3946, %v4067
      %4069 = vmatmul.f32.gmra.mxu0 %v3827
      %v4070 = vpop.f32.mrf.mxu0
      %v4071 = vadd.f32 %v3949, %v4070
      %4072 = vmatmul.f32.gmra.mxu0 %v3830
      %v4073 = vpop.f32.mrf.mxu0
      %v4074 = vadd.f32 %v3952, %v4073
      %4075 = vmatmul.f32.gmra.mxu0 %v3833
      %v4076 = vpop.f32.mrf.mxu0
      %v4077 = vadd.f32 %v3955, %v4076
      %4078 = vmatmul.f32.gmra.mxu0 %v3836
      %v4079 = vpop.f32.mrf.mxu0
      %v4080 = vadd.f32 %v3958, %v4079
      %4081 = vmatmul.f32.gmra.mxu0 %v3839
      %v4082 = vpop.f32.mrf.mxu0
      %v4083 = vadd.f32 %v3961, %v4082
      %4084 = vdwg.mxu0
      %v4085 = vld [vmem:[#allocation2 + $0x28] sm:$0xff]
      %v4086 = vld [vmem:[#allocation2 + $0x30] sm:$0xff]
      %v4087 = vld [vmem:[#allocation2 + $0x38] sm:$0xff]
      %v4088 = vld [vmem:[#allocation2 + $0x40] sm:$0xff]
      %v4089 = vld [vmem:[#allocation2 + $0x48] sm:$0xff]
      %v4090 = vld [vmem:[#allocation2 + $0x50] sm:$0xff]
      %v4091 = vld [vmem:[#allocation2 + $0x58] sm:$0xff]
      %v4092 = vld [vmem:[#allocation2 + $0x60] sm:$0xff]
      %v4093 = vld [vmem:[#allocation2 + $0x68] sm:$0xff]
      %v4094 = vld [vmem:[#allocation2 + $0x70] sm:$0xff]
      %v4095 = vld [vmem:[#allocation2 + $0x78] sm:$0xff]
      %v4096 = vld [vmem:[#allocation2 + $0x80] sm:$0xff]
      %v4097 = vld [vmem:[#allocation2 + $0x88] sm:$0xff]
      %v4098 = vld [vmem:[#allocation2 + $0x90] sm:$0xff]
      %v4099 = vld [vmem:[#allocation2 + $0x98] sm:$0xff]
      %v4100 = vld [vmem:[#allocation2 + $0xa0] sm:$0xff]
      %v4101 = vld [vmem:[#allocation2 + $0xa8] sm:$0xff]
      %v4102 = vld [vmem:[#allocation2 + $0xb0] sm:$0xff]
      %v4103 = vld [vmem:[#allocation2 + $0xb8] sm:$0xff]
      %v4104 = vld [vmem:[#allocation2 + $0xc0] sm:$0xff]
      %v4105 = vld [vmem:[#allocation2 + $0xc8] sm:$0xff]
      %v4106 = vld [vmem:[#allocation2 + $0xd0] sm:$0xff]
      %v4107 = vld [vmem:[#allocation2 + $0xd8] sm:$0xff]
      %v4108 = vld [vmem:[#allocation2 + $0xe0] sm:$0xff]
      %v4109 = vld [vmem:[#allocation2 + $0xe8] sm:$0xff]
      %v4110 = vld [vmem:[#allocation2 + $0xf0] sm:$0xff]
      %v4111 = vld [vmem:[#allocation2 + $0xf8] sm:$0xff]
      %v4112 = vld [vmem:[#allocation2 + $0x100] sm:$0xff]
      %v4113 = vld [vmem:[#allocation2 + $0x108] sm:$0xff]
      %v4114 = vld [vmem:[#allocation2 + $0x110] sm:$0xff]
      %v4115 = vld [vmem:[#allocation2 + $0x118] sm:$0xff]
      %v4116 = vld [vmem:[#allocation2 + $0x120] sm:$0xff]
      %s4117 = scalar_lea.vmem %s3, 28
      %v4118 = vld [vmem:[%s4117] sm:$0xf]
      %v4120 = vsel %vm412, %v4085, 0
      %v4123 = vsel %vm412, %v4086, 0
      %v4126 = vsel %vm412, %v4087, 0
      %v4129 = vsel %vm412, %v4088, 0
      %v4132 = vsel %vm412, %v4089, 0
      %v4135 = vsel %vm412, %v4090, 0
      %v4138 = vsel %vm412, %v4091, 0
      %v4141 = vsel %vm412, %v4092, 0
      %v4144 = vsel %vm412, %v4093, 0
      %v4147 = vsel %vm412, %v4094, 0
      %v4150 = vsel %vm412, %v4095, 0
      %v4153 = vsel %vm412, %v4096, 0
      %v4156 = vsel %vm412, %v4097, 0
      %v4159 = vsel %vm412, %v4098, 0
      %v4162 = vsel %vm412, %v4099, 0
      %v4165 = vsel %vm412, %v4100, 0
      %v4168 = vsel %vm412, %v4101, 0
      %v4171 = vsel %vm412, %v4102, 0
      %v4174 = vsel %vm412, %v4103, 0
      %v4177 = vsel %vm412, %v4104, 0
      %v4180 = vsel %vm412, %v4105, 0
      %v4183 = vsel %vm412, %v4106, 0
      %v4186 = vsel %vm412, %v4107, 0
      %v4189 = vsel %vm412, %v4108, 0
      %v4192 = vsel %vm412, %v4109, 0
      %v4195 = vsel %vm412, %v4110, 0
      %v4198 = vsel %vm412, %v4111, 0
      %v4201 = vsel %vm412, %v4112, 0
      %v4204 = vsel %vm412, %v4113, 0
      %v4207 = vsel %vm412, %v4114, 0
      %v4210 = vsel %vm412, %v4115, 0
      %v4213 = vsel %vm412, %v4116, 0
      %v4216 = vsel %vm509, %v4118, 0
      %4218 = vmatpush.msra.mxu0 0.0
      %4219 = vmatpush.msra.mxu0 0.0
      %4220 = vmatpush.msra.mxu0 0.0
      %4221 = vmatpush.msra.mxu0 0.0
      %4222 = vmatpush.msra.mxu0 0.0
      %4223 = vmatpush.msra.mxu0 0.0
      %4224 = vmatpush.msra.mxu0 0.0
      %4225 = vmatpush.msra.mxu0 0.0
      %4226 = vmatpush.msra.mxu0 0.0
      %4227 = vmatpush.msra.mxu0 0.0
      %4228 = vmatpush.msra.mxu0 0.0
      %4229 = vmatpush.msra.mxu0 0.0
      %4230 = vmatpush.msra.mxu0 0.0
      %4231 = vmatpush.msra.mxu0 0.0
      %4232 = vmatpush.msra.mxu0 0.0
      %4233 = vmatpush.msra.mxu0 %v4216
      %4234 = vmatmul.f32.gmra.mxu0 %v4120
      %v4235 = vpop.f32.mrf.mxu0
      %v4236 = vadd.f32 0.0, %v4235
      %4237 = vmatmul.f32.gmra.mxu0 %v4123
      %v4238 = vpop.f32.mrf.mxu0
      %v4239 = vadd.f32 0.0, %v4238
      %4240 = vmatmul.f32.gmra.mxu0 %v4126
      %v4241 = vpop.f32.mrf.mxu0
      %v4242 = vadd.f32 0.0, %v4241
      %4243 = vmatmul.f32.gmra.mxu0 %v4129
      %v4244 = vpop.f32.mrf.mxu0
      %v4245 = vadd.f32 0.0, %v4244
      %4246 = vmatmul.f32.gmra.mxu0 %v4132
      %v4247 = vpop.f32.mrf.mxu0
      %v4248 = vadd.f32 0.0, %v4247
      %4249 = vmatmul.f32.gmra.mxu0 %v4135
      %v4250 = vpop.f32.mrf.mxu0
      %v4251 = vadd.f32 0.0, %v4250
      %4252 = vmatmul.f32.gmra.mxu0 %v4138
      %v4253 = vpop.f32.mrf.mxu0
      %v4254 = vadd.f32 0.0, %v4253
      %4255 = vmatmul.f32.gmra.mxu0 %v4141
      %v4256 = vpop.f32.mrf.mxu0
      %v4257 = vadd.f32 0.0, %v4256
      %4258 = vmatmul.f32.gmra.mxu0 %v4144
      %v4259 = vpop.f32.mrf.mxu0
      %v4260 = vadd.f32 0.0, %v4259
      %4261 = vmatmul.f32.gmra.mxu0 %v4147
      %v4262 = vpop.f32.mrf.mxu0
      %v4263 = vadd.f32 0.0, %v4262
      %4264 = vmatmul.f32.gmra.mxu0 %v4150
      %v4265 = vpop.f32.mrf.mxu0
      %v4266 = vadd.f32 0.0, %v4265
      %4267 = vmatmul.f32.gmra.mxu0 %v4153
      %v4268 = vpop.f32.mrf.mxu0
      %v4269 = vadd.f32 0.0, %v4268
      %4270 = vmatmul.f32.gmra.mxu0 %v4156
      %v4271 = vpop.f32.mrf.mxu0
      %v4272 = vadd.f32 0.0, %v4271
      %4273 = vmatmul.f32.gmra.mxu0 %v4159
      %v4274 = vpop.f32.mrf.mxu0
      %v4275 = vadd.f32 0.0, %v4274
      %4276 = vmatmul.f32.gmra.mxu0 %v4162
      %v4277 = vpop.f32.mrf.mxu0
      %v4278 = vadd.f32 0.0, %v4277
      %4279 = vmatmul.f32.gmra.mxu0 %v4165
      %v4280 = vpop.f32.mrf.mxu0
      %v4281 = vadd.f32 0.0, %v4280
      %4282 = vmatmul.f32.gmra.mxu0 %v4168
      %v4283 = vpop.f32.mrf.mxu0
      %v4284 = vadd.f32 0.0, %v4283
      %4285 = vmatmul.f32.gmra.mxu0 %v4171
      %v4286 = vpop.f32.mrf.mxu0
      %v4287 = vadd.f32 0.0, %v4286
      %4288 = vmatmul.f32.gmra.mxu0 %v4174
      %v4289 = vpop.f32.mrf.mxu0
      %v4290 = vadd.f32 0.0, %v4289
      %4291 = vmatmul.f32.gmra.mxu0 %v4177
      %v4292 = vpop.f32.mrf.mxu0
      %v4293 = vadd.f32 0.0, %v4292
      %4294 = vmatmul.f32.gmra.mxu0 %v4180
      %v4295 = vpop.f32.mrf.mxu0
      %v4296 = vadd.f32 0.0, %v4295
      %4297 = vmatmul.f32.gmra.mxu0 %v4183
      %v4298 = vpop.f32.mrf.mxu0
      %v4299 = vadd.f32 0.0, %v4298
      %4300 = vmatmul.f32.gmra.mxu0 %v4186
      %v4301 = vpop.f32.mrf.mxu0
      %v4302 = vadd.f32 0.0, %v4301
      %4303 = vmatmul.f32.gmra.mxu0 %v4189
      %v4304 = vpop.f32.mrf.mxu0
      %v4305 = vadd.f32 0.0, %v4304
      %4306 = vmatmul.f32.gmra.mxu0 %v4192
      %v4307 = vpop.f32.mrf.mxu0
      %v4308 = vadd.f32 0.0, %v4307
      %4309 = vmatmul.f32.gmra.mxu0 %v4195
      %v4310 = vpop.f32.mrf.mxu0
      %v4311 = vadd.f32 0.0, %v4310
      %4312 = vmatmul.f32.gmra.mxu0 %v4198
      %v4313 = vpop.f32.mrf.mxu0
      %v4314 = vadd.f32 0.0, %v4313
      %4315 = vmatmul.f32.gmra.mxu0 %v4201
      %v4316 = vpop.f32.mrf.mxu0
      %v4317 = vadd.f32 0.0, %v4316
      %4318 = vmatmul.f32.gmra.mxu0 %v4204
      %v4319 = vpop.f32.mrf.mxu0
      %v4320 = vadd.f32 0.0, %v4319
      %4321 = vmatmul.f32.gmra.mxu0 %v4207
      %v4322 = vpop.f32.mrf.mxu0
      %v4323 = vadd.f32 0.0, %v4322
      %4324 = vmatmul.f32.gmra.mxu0 %v4210
      %v4325 = vpop.f32.mrf.mxu0
      %v4326 = vadd.f32 0.0, %v4325
      %4327 = vmatmul.f32.gmra.mxu0 %v4213
      %v4328 = vpop.f32.mrf.mxu0
      %v4329 = vadd.f32 0.0, %v4328
      %4330 = vdwg.mxu0
      %v4331 = vadd.f32 %v3990, %v4236
      %v4332 = vadd.f32 %v3993, %v4239
      %v4333 = vadd.f32 %v3996, %v4242
      %v4334 = vadd.f32 %v3999, %v4245
      %v4335 = vadd.f32 %v4002, %v4248
      %v4336 = vadd.f32 %v4005, %v4251
      %v4337 = vadd.f32 %v4008, %v4254
      %v4338 = vadd.f32 %v4011, %v4257
      %v4339 = vadd.f32 %v4014, %v4260
      %v4340 = vadd.f32 %v4017, %v4263
      %v4341 = vadd.f32 %v4020, %v4266
      %v4342 = vadd.f32 %v4023, %v4269
      %v4343 = vadd.f32 %v4026, %v4272
      %v4344 = vadd.f32 %v4029, %v4275
      %v4345 = vadd.f32 %v4032, %v4278
      %v4346 = vadd.f32 %v4035, %v4281
      %v4347 = vadd.f32 %v4038, %v4284
      %v4348 = vadd.f32 %v4041, %v4287
      %v4349 = vadd.f32 %v4044, %v4290
      %v4350 = vadd.f32 %v4047, %v4293
      %v4351 = vadd.f32 %v4050, %v4296
      %v4352 = vadd.f32 %v4053, %v4299
      %v4353 = vadd.f32 %v4056, %v4302
      %v4354 = vadd.f32 %v4059, %v4305
      %v4355 = vadd.f32 %v4062, %v4308
      %v4356 = vadd.f32 %v4065, %v4311
      %v4357 = vadd.f32 %v4068, %v4314
      %v4358 = vadd.f32 %v4071, %v4317
      %v4359 = vadd.f32 %v4074, %v4320
      %v4360 = vadd.f32 %v4077, %v4323
      %v4361 = vadd.f32 %v4080, %v4326
      %v4362 = vadd.f32 %v4083, %v4329
      %v4363 = vadd.f32 %v3681, %v4331
      %v4364 = vadd.f32 %v3682, %v4332
      %v4365 = vadd.f32 %v3683, %v4333
      %v4366 = vadd.f32 %v3684, %v4334
      %v4367 = vadd.f32 %v3685, %v4335
      %v4368 = vadd.f32 %v3686, %v4336
      %v4369 = vadd.f32 %v3687, %v4337
      %v4370 = vadd.f32 %v3688, %v4338
      %v4371 = vadd.f32 %v3689, %v4339
      %v4372 = vadd.f32 %v3690, %v4340
      %v4373 = vadd.f32 %v3691, %v4341
      %v4374 = vadd.f32 %v3692, %v4342
      %v4375 = vadd.f32 %v3693, %v4343
      %v4376 = vadd.f32 %v3694, %v4344
      %v4377 = vadd.f32 %v3695, %v4345
      %v4378 = vadd.f32 %v3696, %v4346
      %v4379 = vadd.f32 %v3697, %v4347
      %v4380 = vadd.f32 %v3698, %v4348
      %v4381 = vadd.f32 %v3699, %v4349
      %v4382 = vadd.f32 %v3700, %v4350
      %v4383 = vadd.f32 %v3701, %v4351
      %v4384 = vadd.f32 %v3702, %v4352
      %v4385 = vadd.f32 %v3703, %v4353
      %v4386 = vadd.f32 %v3704, %v4354
      %v4387 = vadd.f32 %v3705, %v4355
      %v4388 = vadd.f32 %v3706, %v4356
      %v4389 = vadd.f32 %v3707, %v4357
      %v4390 = vadd.f32 %v3708, %v4358
      %v4391 = vadd.f32 %v3709, %v4359
      %v4392 = vadd.f32 %v3710, %v4360
      %v4393 = vadd.f32 %v3711, %v4361
      %v4394 = vadd.f32 %v3712, %v4362
      %v4395 = vld [vmem:[#allocation2 + $0x9] sm:$0xff]
      %v4396 = vld [vmem:[#allocation2 + $0x11] sm:$0xff]
      %v4397 = vld [vmem:[#allocation2 + $0x19] sm:$0xff]
      %v4398 = vld [vmem:[#allocation2 + $0x21] sm:$0xff]
      %v4399 = vld [vmem:[#allocation2 + $0x29] sm:$0xff]
      %v4400 = vld [vmem:[#allocation2 + $0x31] sm:$0xff]
      %v4401 = vld [vmem:[#allocation2 + $0x39] sm:$0xff]
      %v4402 = vld [vmem:[#allocation2 + $0x41] sm:$0xff]
      %v4403 = vld [vmem:[#allocation2 + $0x49] sm:$0xff]
      %v4404 = vld [vmem:[#allocation2 + $0x51] sm:$0xff]
      %v4405 = vld [vmem:[#allocation2 + $0x59] sm:$0xff]
      %v4406 = vld [vmem:[#allocation2 + $0x61] sm:$0xff]
      %v4407 = vld [vmem:[#allocation2 + $0x69] sm:$0xff]
      %v4408 = vld [vmem:[#allocation2 + $0x71] sm:$0xff]
      %v4409 = vld [vmem:[#allocation2 + $0x79] sm:$0xff]
      %v4410 = vld [vmem:[#allocation2 + $0x81] sm:$0xff]
      %v4411 = vld [vmem:[#allocation2 + $0x89] sm:$0xff]
      %v4412 = vld [vmem:[#allocation2 + $0x91] sm:$0xff]
      %v4413 = vld [vmem:[#allocation2 + $0x99] sm:$0xff]
      %v4414 = vld [vmem:[#allocation2 + $0xa1] sm:$0xff]
      %v4415 = vld [vmem:[#allocation2 + $0xa9] sm:$0xff]
      %v4416 = vld [vmem:[#allocation2 + $0xb1] sm:$0xff]
      %v4417 = vld [vmem:[#allocation2 + $0xb9] sm:$0xff]
      %v4418 = vld [vmem:[#allocation2 + $0xc1] sm:$0xff]
      %v4419 = vld [vmem:[#allocation2 + $0xc9] sm:$0xff]
      %v4420 = vld [vmem:[#allocation2 + $0xd1] sm:$0xff]
      %v4421 = vld [vmem:[#allocation2 + $0xd9] sm:$0xff]
      %v4422 = vld [vmem:[#allocation2 + $0xe1] sm:$0xff]
      %v4423 = vld [vmem:[#allocation2 + $0xe9] sm:$0xff]
      %v4424 = vld [vmem:[#allocation2 + $0xf1] sm:$0xff]
      %v4425 = vld [vmem:[#allocation2 + $0xf9] sm:$0xff]
      %v4426 = vld [vmem:[#allocation2 + $0x101] sm:$0xff]
      %s4427 = scalar_lea.vmem %s3, 8
      %v4428 = vld [vmem:[%s4427] sm:$0xf]
      %v4429 = vld [vmem:[#allocation2 + $0x109] sm:$0xff]
      %v4430 = vld [vmem:[#allocation2 + $0x111] sm:$0xff]
      %s4431 = scalar_lea.vmem %s3, 20
      %v4432 = vld [vmem:[%s4431] sm:$0xf]
      %v4434 = vsel %vm412, %v4397, 0
      %v4437 = vsel %vm412, %v4398, 0
      %v4440 = vsel %vm412, %v4399, 0
      %v4443 = vsel %vm412, %v4400, 0
      %v4446 = vsel %vm412, %v4401, 0
      %v4449 = vsel %vm412, %v4402, 0
      %v4452 = vsel %vm412, %v4403, 0
      %v4455 = vsel %vm412, %v4404, 0
      %v4458 = vsel %vm412, %v4405, 0
      %v4461 = vsel %vm412, %v4406, 0
      %v4464 = vsel %vm412, %v4407, 0
      %v4467 = vsel %vm412, %v4408, 0
      %v4470 = vsel %vm412, %v4409, 0
      %v4473 = vsel %vm412, %v4410, 0
      %v4476 = vsel %vm412, %v4411, 0
      %v4479 = vsel %vm412, %v4412, 0
      %v4482 = vsel %vm412, %v4413, 0
      %v4485 = vsel %vm412, %v4414, 0
      %v4488 = vsel %vm412, %v4415, 0
      %v4491 = vsel %vm412, %v4416, 0
      %v4494 = vsel %vm412, %v4417, 0
      %v4497 = vsel %vm412, %v4418, 0
      %v4500 = vsel %vm412, %v4419, 0
      %v4503 = vsel %vm412, %v4420, 0
      %v4506 = vsel %vm412, %v4421, 0
      %v4509 = vsel %vm412, %v4422, 0
      %v4512 = vsel %vm412, %v4423, 0
      %v4515 = vsel %vm412, %v4424, 0
      %v4518 = vsel %vm412, %v4425, 0
      %v4521 = vsel %vm412, %v4426, 0
      %v4524 = vsel %vm412, %v4429, 0
      %v4527 = vsel %vm412, %v4430, 0
      %v4530 = vsel %vm509, %v4432, 0
      %4532 = vmatpush.msra.mxu0 0.0
      %4533 = vmatpush.msra.mxu0 0.0
      %4534 = vmatpush.msra.mxu0 0.0
      %4535 = vmatpush.msra.mxu0 0.0
      %4536 = vmatpush.msra.mxu0 0.0
      %4537 = vmatpush.msra.mxu0 0.0
      %4538 = vmatpush.msra.mxu0 0.0
      %4539 = vmatpush.msra.mxu0 0.0
      %4540 = vmatpush.msra.mxu0 0.0
      %4541 = vmatpush.msra.mxu0 0.0
      %4542 = vmatpush.msra.mxu0 0.0
      %4543 = vmatpush.msra.mxu0 0.0
      %4544 = vmatpush.msra.mxu0 0.0
      %4545 = vmatpush.msra.mxu0 0.0
      %4546 = vmatpush.msra.mxu0 0.0
      %4547 = vmatpush.msra.mxu0 %v4530
      %4548 = vmatmul.f32.gmra.mxu0 %v4434
      %v4549 = vpop.f32.mrf.mxu0
      %v4550 = vadd.f32 0.0, %v4549
      %4551 = vmatmul.f32.gmra.mxu0 %v4437
      %v4552 = vpop.f32.mrf.mxu0
      %v4553 = vadd.f32 0.0, %v4552
      %4554 = vmatmul.f32.gmra.mxu0 %v4440
      %v4555 = vpop.f32.mrf.mxu0
      %v4556 = vadd.f32 0.0, %v4555
      %4557 = vmatmul.f32.gmra.mxu0 %v4443
      %v4558 = vpop.f32.mrf.mxu0
      %v4559 = vadd.f32 0.0, %v4558
      %4560 = vmatmul.f32.gmra.mxu0 %v4446
      %v4561 = vpop.f32.mrf.mxu0
      %v4562 = vadd.f32 0.0, %v4561
      %4563 = vmatmul.f32.gmra.mxu0 %v4449
      %v4564 = vpop.f32.mrf.mxu0
      %v4565 = vadd.f32 0.0, %v4564
      %4566 = vmatmul.f32.gmra.mxu0 %v4452
      %v4567 = vpop.f32.mrf.mxu0
      %v4568 = vadd.f32 0.0, %v4567
      %4569 = vmatmul.f32.gmra.mxu0 %v4455
      %v4570 = vpop.f32.mrf.mxu0
      %v4571 = vadd.f32 0.0, %v4570
      %4572 = vmatmul.f32.gmra.mxu0 %v4458
      %v4573 = vpop.f32.mrf.mxu0
      %v4574 = vadd.f32 0.0, %v4573
      %4575 = vmatmul.f32.gmra.mxu0 %v4461
      %v4576 = vpop.f32.mrf.mxu0
      %v4577 = vadd.f32 0.0, %v4576
      %4578 = vmatmul.f32.gmra.mxu0 %v4464
      %v4579 = vpop.f32.mrf.mxu0
      %v4580 = vadd.f32 0.0, %v4579
      %4581 = vmatmul.f32.gmra.mxu0 %v4467
      %v4582 = vpop.f32.mrf.mxu0
      %v4583 = vadd.f32 0.0, %v4582
      %4584 = vmatmul.f32.gmra.mxu0 %v4470
      %v4585 = vpop.f32.mrf.mxu0
      %v4586 = vadd.f32 0.0, %v4585
      %4587 = vmatmul.f32.gmra.mxu0 %v4473
      %v4588 = vpop.f32.mrf.mxu0
      %v4589 = vadd.f32 0.0, %v4588
      %4590 = vmatmul.f32.gmra.mxu0 %v4476
      %v4591 = vpop.f32.mrf.mxu0
      %v4592 = vadd.f32 0.0, %v4591
      %4593 = vmatmul.f32.gmra.mxu0 %v4479
      %v4594 = vpop.f32.mrf.mxu0
      %v4595 = vadd.f32 0.0, %v4594
      %4596 = vmatmul.f32.gmra.mxu0 %v4482
      %v4597 = vpop.f32.mrf.mxu0
      %v4598 = vadd.f32 0.0, %v4597
      %4599 = vmatmul.f32.gmra.mxu0 %v4485
      %v4600 = vpop.f32.mrf.mxu0
      %v4601 = vadd.f32 0.0, %v4600
      %4602 = vmatmul.f32.gmra.mxu0 %v4488
      %v4603 = vpop.f32.mrf.mxu0
      %v4604 = vadd.f32 0.0, %v4603
      %4605 = vmatmul.f32.gmra.mxu0 %v4491
      %v4606 = vpop.f32.mrf.mxu0
      %v4607 = vadd.f32 0.0, %v4606
      %4608 = vmatmul.f32.gmra.mxu0 %v4494
      %v4609 = vpop.f32.mrf.mxu0
      %v4610 = vadd.f32 0.0, %v4609
      %4611 = vmatmul.f32.gmra.mxu0 %v4497
      %v4612 = vpop.f32.mrf.mxu0
      %v4613 = vadd.f32 0.0, %v4612
      %4614 = vmatmul.f32.gmra.mxu0 %v4500
      %v4615 = vpop.f32.mrf.mxu0
      %v4616 = vadd.f32 0.0, %v4615
      %4617 = vmatmul.f32.gmra.mxu0 %v4503
      %v4618 = vpop.f32.mrf.mxu0
      %v4619 = vadd.f32 0.0, %v4618
      %4620 = vmatmul.f32.gmra.mxu0 %v4506
      %v4621 = vpop.f32.mrf.mxu0
      %v4622 = vadd.f32 0.0, %v4621
      %4623 = vmatmul.f32.gmra.mxu0 %v4509
      %v4624 = vpop.f32.mrf.mxu0
      %v4625 = vadd.f32 0.0, %v4624
      %4626 = vmatmul.f32.gmra.mxu0 %v4512
      %v4627 = vpop.f32.mrf.mxu0
      %v4628 = vadd.f32 0.0, %v4627
      %4629 = vmatmul.f32.gmra.mxu0 %v4515
      %v4630 = vpop.f32.mrf.mxu0
      %v4631 = vadd.f32 0.0, %v4630
      %4632 = vmatmul.f32.gmra.mxu0 %v4518
      %v4633 = vpop.f32.mrf.mxu0
      %v4634 = vadd.f32 0.0, %v4633
      %4635 = vmatmul.f32.gmra.mxu0 %v4521
      %v4636 = vpop.f32.mrf.mxu0
      %v4637 = vadd.f32 0.0, %v4636
      %4638 = vmatmul.f32.gmra.mxu0 %v4524
      %v4639 = vpop.f32.mrf.mxu0
      %v4640 = vadd.f32 0.0, %v4639
      %4641 = vmatmul.f32.gmra.mxu0 %v4527
      %v4642 = vpop.f32.mrf.mxu0
      %v4643 = vadd.f32 0.0, %v4642
      %4644 = vdwg.mxu0
      %v4646 = vsel %vm412, %v4395, 0
      %v4649 = vsel %vm412, %v4396, 0
      %v4652 = vsel %vm509, %v4428, 0
      %4654 = vmatpush.msra.mxu0 0.0
      %4655 = vmatpush.msra.mxu0 0.0
      %4656 = vmatpush.msra.mxu0 0.0
      %4657 = vmatpush.msra.mxu0 0.0
      %4658 = vmatpush.msra.mxu0 0.0
      %4659 = vmatpush.msra.mxu0 0.0
      %4660 = vmatpush.msra.mxu0 0.0
      %4661 = vmatpush.msra.mxu0 0.0
      %4662 = vmatpush.msra.mxu0 0.0
      %4663 = vmatpush.msra.mxu0 0.0
      %4664 = vmatpush.msra.mxu0 0.0
      %4665 = vmatpush.msra.mxu0 0.0
      %4666 = vmatpush.msra.mxu0 0.0
      %4667 = vmatpush.msra.mxu0 0.0
      %4668 = vmatpush.msra.mxu0 0.0
      %4669 = vmatpush.msra.mxu0 %v4652
      %4670 = vmatmul.f32.gmra.mxu0 %v4646
      %v4671 = vpop.f32.mrf.mxu0
      %v4672 = vadd.f32 %v4550, %v4671
      %4673 = vmatmul.f32.gmra.mxu0 %v4649
      %v4674 = vpop.f32.mrf.mxu0
      %v4675 = vadd.f32 %v4553, %v4674
      %4676 = vmatmul.f32.gmra.mxu0 %v4434
      %v4677 = vpop.f32.mrf.mxu0
      %v4678 = vadd.f32 %v4556, %v4677
      %4679 = vmatmul.f32.gmra.mxu0 %v4437
      %v4680 = vpop.f32.mrf.mxu0
      %v4681 = vadd.f32 %v4559, %v4680
      %4682 = vmatmul.f32.gmra.mxu0 %v4440
      %v4683 = vpop.f32.mrf.mxu0
      %v4684 = vadd.f32 %v4562, %v4683
      %4685 = vmatmul.f32.gmra.mxu0 %v4443
      %v4686 = vpop.f32.mrf.mxu0
      %v4687 = vadd.f32 %v4565, %v4686
      %4688 = vmatmul.f32.gmra.mxu0 %v4446
      %v4689 = vpop.f32.mrf.mxu0
      %v4690 = vadd.f32 %v4568, %v4689
      %4691 = vmatmul.f32.gmra.mxu0 %v4449
      %v4692 = vpop.f32.mrf.mxu0
      %v4693 = vadd.f32 %v4571, %v4692
      %4694 = vmatmul.f32.gmra.mxu0 %v4452
      %v4695 = vpop.f32.mrf.mxu0
      %v4696 = vadd.f32 %v4574, %v4695
      %4697 = vmatmul.f32.gmra.mxu0 %v4455
      %v4698 = vpop.f32.mrf.mxu0
      %v4699 = vadd.f32 %v4577, %v4698
      %4700 = vmatmul.f32.gmra.mxu0 %v4458
      %v4701 = vpop.f32.mrf.mxu0
      %v4702 = vadd.f32 %v4580, %v4701
      %4703 = vmatmul.f32.gmra.mxu0 %v4461
      %v4704 = vpop.f32.mrf.mxu0
      %v4705 = vadd.f32 %v4583, %v4704
      %4706 = vmatmul.f32.gmra.mxu0 %v4464
      %v4707 = vpop.f32.mrf.mxu0
      %v4708 = vadd.f32 %v4586, %v4707
      %4709 = vmatmul.f32.gmra.mxu0 %v4467
      %v4710 = vpop.f32.mrf.mxu0
      %v4711 = vadd.f32 %v4589, %v4710
      %4712 = vmatmul.f32.gmra.mxu0 %v4470
      %v4713 = vpop.f32.mrf.mxu0
      %v4714 = vadd.f32 %v4592, %v4713
      %4715 = vmatmul.f32.gmra.mxu0 %v4473
      %v4716 = vpop.f32.mrf.mxu0
      %v4717 = vadd.f32 %v4595, %v4716
      %4718 = vmatmul.f32.gmra.mxu0 %v4476
      %v4719 = vpop.f32.mrf.mxu0
      %v4720 = vadd.f32 %v4598, %v4719
      %4721 = vmatmul.f32.gmra.mxu0 %v4479
      %v4722 = vpop.f32.mrf.mxu0
      %v4723 = vadd.f32 %v4601, %v4722
      %4724 = vmatmul.f32.gmra.mxu0 %v4482
      %v4725 = vpop.f32.mrf.mxu0
      %v4726 = vadd.f32 %v4604, %v4725
      %4727 = vmatmul.f32.gmra.mxu0 %v4485
      %v4728 = vpop.f32.mrf.mxu0
      %v4729 = vadd.f32 %v4607, %v4728
      %4730 = vmatmul.f32.gmra.mxu0 %v4488
      %v4731 = vpop.f32.mrf.mxu0
      %v4732 = vadd.f32 %v4610, %v4731
      %4733 = vmatmul.f32.gmra.mxu0 %v4491
      %v4734 = vpop.f32.mrf.mxu0
      %v4735 = vadd.f32 %v4613, %v4734
      %4736 = vmatmul.f32.gmra.mxu0 %v4494
      %v4737 = vpop.f32.mrf.mxu0
      %v4738 = vadd.f32 %v4616, %v4737
      %4739 = vmatmul.f32.gmra.mxu0 %v4497
      %v4740 = vpop.f32.mrf.mxu0
      %v4741 = vadd.f32 %v4619, %v4740
      %4742 = vmatmul.f32.gmra.mxu0 %v4500
      %v4743 = vpop.f32.mrf.mxu0
      %v4744 = vadd.f32 %v4622, %v4743
      %4745 = vmatmul.f32.gmra.mxu0 %v4503
      %v4746 = vpop.f32.mrf.mxu0
      %v4747 = vadd.f32 %v4625, %v4746
      %4748 = vmatmul.f32.gmra.mxu0 %v4506
      %v4749 = vpop.f32.mrf.mxu0
      %v4750 = vadd.f32 %v4628, %v4749
      %4751 = vmatmul.f32.gmra.mxu0 %v4509
      %v4752 = vpop.f32.mrf.mxu0
      %v4753 = vadd.f32 %v4631, %v4752
      %4754 = vmatmul.f32.gmra.mxu0 %v4512
      %v4755 = vpop.f32.mrf.mxu0
      %v4756 = vadd.f32 %v4634, %v4755
      %4757 = vmatmul.f32.gmra.mxu0 %v4515
      %v4758 = vpop.f32.mrf.mxu0
      %v4759 = vadd.f32 %v4637, %v4758
      %4760 = vmatmul.f32.gmra.mxu0 %v4518
      %v4761 = vpop.f32.mrf.mxu0
      %v4762 = vadd.f32 %v4640, %v4761
      %4763 = vmatmul.f32.gmra.mxu0 %v4521
      %v4764 = vpop.f32.mrf.mxu0
      %v4765 = vadd.f32 %v4643, %v4764
      %4766 = vdwg.mxu0
      %v4767 = vld [vmem:[#allocation2 + $0x29] sm:$0xff]
      %v4768 = vld [vmem:[#allocation2 + $0x31] sm:$0xff]
      %v4769 = vld [vmem:[#allocation2 + $0x39] sm:$0xff]
      %v4770 = vld [vmem:[#allocation2 + $0x41] sm:$0xff]
      %v4771 = vld [vmem:[#allocation2 + $0x49] sm:$0xff]
      %v4772 = vld [vmem:[#allocation2 + $0x51] sm:$0xff]
      %v4773 = vld [vmem:[#allocation2 + $0x59] sm:$0xff]
      %v4774 = vld [vmem:[#allocation2 + $0x61] sm:$0xff]
      %v4775 = vld [vmem:[#allocation2 + $0x69] sm:$0xff]
      %v4776 = vld [vmem:[#allocation2 + $0x71] sm:$0xff]
      %v4777 = vld [vmem:[#allocation2 + $0x79] sm:$0xff]
      %v4778 = vld [vmem:[#allocation2 + $0x81] sm:$0xff]
      %v4779 = vld [vmem:[#allocation2 + $0x89] sm:$0xff]
      %v4780 = vld [vmem:[#allocation2 + $0x91] sm:$0xff]
      %v4781 = vld [vmem:[#allocation2 + $0x99] sm:$0xff]
      %v4782 = vld [vmem:[#allocation2 + $0xa1] sm:$0xff]
      %v4783 = vld [vmem:[#allocation2 + $0xa9] sm:$0xff]
      %v4784 = vld [vmem:[#allocation2 + $0xb1] sm:$0xff]
      %v4785 = vld [vmem:[#allocation2 + $0xb9] sm:$0xff]
      %v4786 = vld [vmem:[#allocation2 + $0xc1] sm:$0xff]
      %v4787 = vld [vmem:[#allocation2 + $0xc9] sm:$0xff]
      %v4788 = vld [vmem:[#allocation2 + $0xd1] sm:$0xff]
      %v4789 = vld [vmem:[#allocation2 + $0xd9] sm:$0xff]
      %v4790 = vld [vmem:[#allocation2 + $0xe1] sm:$0xff]
      %v4791 = vld [vmem:[#allocation2 + $0xe9] sm:$0xff]
      %v4792 = vld [vmem:[#allocation2 + $0xf1] sm:$0xff]
      %v4793 = vld [vmem:[#allocation2 + $0xf9] sm:$0xff]
      %v4794 = vld [vmem:[#allocation2 + $0x101] sm:$0xff]
      %v4795 = vld [vmem:[#allocation2 + $0x109] sm:$0xff]
      %v4796 = vld [vmem:[#allocation2 + $0x111] sm:$0xff]
      %v4797 = vld [vmem:[#allocation2 + $0x119] sm:$0xff]
      %v4798 = vld [vmem:[#allocation2 + $0x121] sm:$0xff]
      %s4799 = scalar_lea.vmem %s3, 32
      %v4800 = vld [vmem:[%s4799] sm:$0xf]
      %v4802 = vsel %vm412, %v4767, 0
      %v4805 = vsel %vm412, %v4768, 0
      %v4808 = vsel %vm412, %v4769, 0
      %v4811 = vsel %vm412, %v4770, 0
      %v4814 = vsel %vm412, %v4771, 0
      %v4817 = vsel %vm412, %v4772, 0
      %v4820 = vsel %vm412, %v4773, 0
      %v4823 = vsel %vm412, %v4774, 0
      %v4826 = vsel %vm412, %v4775, 0
      %v4829 = vsel %vm412, %v4776, 0
      %v4832 = vsel %vm412, %v4777, 0
      %v4835 = vsel %vm412, %v4778, 0
      %v4838 = vsel %vm412, %v4779, 0
      %v4841 = vsel %vm412, %v4780, 0
      %v4844 = vsel %vm412, %v4781, 0
      %v4847 = vsel %vm412, %v4782, 0
      %v4850 = vsel %vm412, %v4783, 0
      %v4853 = vsel %vm412, %v4784, 0
      %v4856 = vsel %vm412, %v4785, 0
      %v4859 = vsel %vm412, %v4786, 0
      %v4862 = vsel %vm412, %v4787, 0
      %v4865 = vsel %vm412, %v4788, 0
      %v4868 = vsel %vm412, %v4789, 0
      %v4871 = vsel %vm412, %v4790, 0
      %v4874 = vsel %vm412, %v4791, 0
      %v4877 = vsel %vm412, %v4792, 0
      %v4880 = vsel %vm412, %v4793, 0
      %v4883 = vsel %vm412, %v4794, 0
      %v4886 = vsel %vm412, %v4795, 0
      %v4889 = vsel %vm412, %v4796, 0
      %v4892 = vsel %vm412, %v4797, 0
      %v4895 = vsel %vm412, %v4798, 0
      %v4898 = vsel %vm509, %v4800, 0
      %4900 = vmatpush.msra.mxu0 0.0
      %4901 = vmatpush.msra.mxu0 0.0
      %4902 = vmatpush.msra.mxu0 0.0
      %4903 = vmatpush.msra.mxu0 0.0
      %4904 = vmatpush.msra.mxu0 0.0
      %4905 = vmatpush.msra.mxu0 0.0
      %4906 = vmatpush.msra.mxu0 0.0
      %4907 = vmatpush.msra.mxu0 0.0
      %4908 = vmatpush.msra.mxu0 0.0
      %4909 = vmatpush.msra.mxu0 0.0
      %4910 = vmatpush.msra.mxu0 0.0
      %4911 = vmatpush.msra.mxu0 0.0
      %4912 = vmatpush.msra.mxu0 0.0
      %4913 = vmatpush.msra.mxu0 0.0
      %4914 = vmatpush.msra.mxu0 0.0
      %4915 = vmatpush.msra.mxu0 %v4898
      %4916 = vmatmul.f32.gmra.mxu0 %v4802
      %v4917 = vpop.f32.mrf.mxu0
      %v4918 = vadd.f32 0.0, %v4917
      %4919 = vmatmul.f32.gmra.mxu0 %v4805
      %v4920 = vpop.f32.mrf.mxu0
      %v4921 = vadd.f32 0.0, %v4920
      %4922 = vmatmul.f32.gmra.mxu0 %v4808
      %v4923 = vpop.f32.mrf.mxu0
      %v4924 = vadd.f32 0.0, %v4923
      %4925 = vmatmul.f32.gmra.mxu0 %v4811
      %v4926 = vpop.f32.mrf.mxu0
      %v4927 = vadd.f32 0.0, %v4926
      %4928 = vmatmul.f32.gmra.mxu0 %v4814
      %v4929 = vpop.f32.mrf.mxu0
      %v4930 = vadd.f32 0.0, %v4929
      %4931 = vmatmul.f32.gmra.mxu0 %v4817
      %v4932 = vpop.f32.mrf.mxu0
      %v4933 = vadd.f32 0.0, %v4932
      %4934 = vmatmul.f32.gmra.mxu0 %v4820
      %v4935 = vpop.f32.mrf.mxu0
      %v4936 = vadd.f32 0.0, %v4935
      %4937 = vmatmul.f32.gmra.mxu0 %v4823
      %v4938 = vpop.f32.mrf.mxu0
      %v4939 = vadd.f32 0.0, %v4938
      %4940 = vmatmul.f32.gmra.mxu0 %v4826
      %v4941 = vpop.f32.mrf.mxu0
      %v4942 = vadd.f32 0.0, %v4941
      %4943 = vmatmul.f32.gmra.mxu0 %v4829
      %v4944 = vpop.f32.mrf.mxu0
      %v4945 = vadd.f32 0.0, %v4944
      %4946 = vmatmul.f32.gmra.mxu0 %v4832
      %v4947 = vpop.f32.mrf.mxu0
      %v4948 = vadd.f32 0.0, %v4947
      %4949 = vmatmul.f32.gmra.mxu0 %v4835
      %v4950 = vpop.f32.mrf.mxu0
      %v4951 = vadd.f32 0.0, %v4950
      %4952 = vmatmul.f32.gmra.mxu0 %v4838
      %v4953 = vpop.f32.mrf.mxu0
      %v4954 = vadd.f32 0.0, %v4953
      %4955 = vmatmul.f32.gmra.mxu0 %v4841
      %v4956 = vpop.f32.mrf.mxu0
      %v4957 = vadd.f32 0.0, %v4956
      %4958 = vmatmul.f32.gmra.mxu0 %v4844
      %v4959 = vpop.f32.mrf.mxu0
      %v4960 = vadd.f32 0.0, %v4959
      %4961 = vmatmul.f32.gmra.mxu0 %v4847
      %v4962 = vpop.f32.mrf.mxu0
      %v4963 = vadd.f32 0.0, %v4962
      %4964 = vmatmul.f32.gmra.mxu0 %v4850
      %v4965 = vpop.f32.mrf.mxu0
      %v4966 = vadd.f32 0.0, %v4965
      %4967 = vmatmul.f32.gmra.mxu0 %v4853
      %v4968 = vpop.f32.mrf.mxu0
      %v4969 = vadd.f32 0.0, %v4968
      %4970 = vmatmul.f32.gmra.mxu0 %v4856
      %v4971 = vpop.f32.mrf.mxu0
      %v4972 = vadd.f32 0.0, %v4971
      %4973 = vmatmul.f32.gmra.mxu0 %v4859
      %v4974 = vpop.f32.mrf.mxu0
      %v4975 = vadd.f32 0.0, %v4974
      %4976 = vmatmul.f32.gmra.mxu0 %v4862
      %v4977 = vpop.f32.mrf.mxu0
      %v4978 = vadd.f32 0.0, %v4977
      %4979 = vmatmul.f32.gmra.mxu0 %v4865
      %v4980 = vpop.f32.mrf.mxu0
      %v4981 = vadd.f32 0.0, %v4980
      %4982 = vmatmul.f32.gmra.mxu0 %v4868
      %v4983 = vpop.f32.mrf.mxu0
      %v4984 = vadd.f32 0.0, %v4983
      %4985 = vmatmul.f32.gmra.mxu0 %v4871
      %v4986 = vpop.f32.mrf.mxu0
      %v4987 = vadd.f32 0.0, %v4986
      %4988 = vmatmul.f32.gmra.mxu0 %v4874
      %v4989 = vpop.f32.mrf.mxu0
      %v4990 = vadd.f32 0.0, %v4989
      %4991 = vmatmul.f32.gmra.mxu0 %v4877
      %v4992 = vpop.f32.mrf.mxu0
      %v4993 = vadd.f32 0.0, %v4992
      %4994 = vmatmul.f32.gmra.mxu0 %v4880
      %v4995 = vpop.f32.mrf.mxu0
      %v4996 = vadd.f32 0.0, %v4995
      %4997 = vmatmul.f32.gmra.mxu0 %v4883
      %v4998 = vpop.f32.mrf.mxu0
      %v4999 = vadd.f32 0.0, %v4998
      %5000 = vmatmul.f32.gmra.mxu0 %v4886
      %v5001 = vpop.f32.mrf.mxu0
      %v5002 = vadd.f32 0.0, %v5001
      %5003 = vmatmul.f32.gmra.mxu0 %v4889
      %v5004 = vpop.f32.mrf.mxu0
      %v5005 = vadd.f32 0.0, %v5004
      %5006 = vmatmul.f32.gmra.mxu0 %v4892
      %v5007 = vpop.f32.mrf.mxu0
      %v5008 = vadd.f32 0.0, %v5007
      %5009 = vmatmul.f32.gmra.mxu0 %v4895
      %v5010 = vpop.f32.mrf.mxu0
      %v5011 = vadd.f32 0.0, %v5010
      %5012 = vdwg.mxu0
      %v5013 = vadd.f32 %v4672, %v4918
      %v5014 = vadd.f32 %v4675, %v4921
      %v5015 = vadd.f32 %v4678, %v4924
      %v5016 = vadd.f32 %v4681, %v4927
      %v5017 = vadd.f32 %v4684, %v4930
      %v5018 = vadd.f32 %v4687, %v4933
      %v5019 = vadd.f32 %v4690, %v4936
      %v5020 = vadd.f32 %v4693, %v4939
      %v5021 = vadd.f32 %v4696, %v4942
      %v5022 = vadd.f32 %v4699, %v4945
      %v5023 = vadd.f32 %v4702, %v4948
      %v5024 = vadd.f32 %v4705, %v4951
      %v5025 = vadd.f32 %v4708, %v4954
      %v5026 = vadd.f32 %v4711, %v4957
      %v5027 = vadd.f32 %v4714, %v4960
      %v5028 = vadd.f32 %v4717, %v4963
      %v5029 = vadd.f32 %v4720, %v4966
      %v5030 = vadd.f32 %v4723, %v4969
      %v5031 = vadd.f32 %v4726, %v4972
      %v5032 = vadd.f32 %v4729, %v4975
      %v5033 = vadd.f32 %v4732, %v4978
      %v5034 = vadd.f32 %v4735, %v4981
      %v5035 = vadd.f32 %v4738, %v4984
      %v5036 = vadd.f32 %v4741, %v4987
      %v5037 = vadd.f32 %v4744, %v4990
      %v5038 = vadd.f32 %v4747, %v4993
      %v5039 = vadd.f32 %v4750, %v4996
      %v5040 = vadd.f32 %v4753, %v4999
      %v5041 = vadd.f32 %v4756, %v5002
      %v5042 = vadd.f32 %v4759, %v5005
      %v5043 = vadd.f32 %v4762, %v5008
      %v5044 = vadd.f32 %v4765, %v5011
      %v5045 = vmul.f32 %v5013, %v2673
      %v5046 = vmul.f32 %v5014, %v2678
      %v5047 = vmul.f32 %v5015, %v2683
      %v5048 = vmul.f32 %v5016, %v2688
      %v5049 = vmul.f32 %v5017, %v2693
      %v5050 = vmul.f32 %v5018, %v2698
      %v5051 = vmul.f32 %v5019, %v2703
      %v5052 = vmul.f32 %v5020, %v2708
      %v5053 = vmul.f32 %v5021, %v2713
      %v5054 = vmul.f32 %v5022, %v2718
      %v5055 = vmul.f32 %v5023, %v2723
      %v5056 = vmul.f32 %v5024, %v2728
      %v5057 = vmul.f32 %v5025, %v2733
      %v5058 = vmul.f32 %v5026, %v2738
      %v5059 = vmul.f32 %v5027, %v2743
      %v5060 = vmul.f32 %v5028, %v2748
      %v5061 = vmul.f32 %v5029, %v2753
      %v5062 = vmul.f32 %v5030, %v2758
      %v5063 = vmul.f32 %v5031, %v2763
      %v5064 = vmul.f32 %v5032, %v2768
      %v5065 = vmul.f32 %v5033, %v2773
      %v5066 = vmul.f32 %v5034, %v2778
      %v5067 = vmul.f32 %v5035, %v2783
      %v5068 = vmul.f32 %v5036, %v2788
      %v5069 = vmul.f32 %v5037, %v2793
      %v5070 = vmul.f32 %v5038, %v2798
      %v5071 = vmul.f32 %v5039, %v2803
      %v5072 = vmul.f32 %v5040, %v2808
      %v5073 = vmul.f32 %v5041, %v2813
      %v5074 = vmul.f32 %v5042, %v2818
      %v5075 = vmul.f32 %v5043, %v2823
      %v5076 = vmul.f32 %v5044, %v2828
      %v5077 = vadd.f32 %v4363, %v5045
      %v5078 = vadd.f32 %v4364, %v5046
      %v5079 = vadd.f32 %v4365, %v5047
      %v5080 = vadd.f32 %v4366, %v5048
      %v5081 = vadd.f32 %v4367, %v5049
      %v5082 = vadd.f32 %v4368, %v5050
      %v5083 = vadd.f32 %v4369, %v5051
      %v5084 = vadd.f32 %v4370, %v5052
      %v5085 = vadd.f32 %v4371, %v5053
      %v5086 = vadd.f32 %v4372, %v5054
      %v5087 = vadd.f32 %v4373, %v5055
      %v5088 = vadd.f32 %v4374, %v5056
      %v5089 = vadd.f32 %v4375, %v5057
      %v5090 = vadd.f32 %v4376, %v5058
      %v5091 = vadd.f32 %v4377, %v5059
      %v5092 = vadd.f32 %v4378, %v5060
      %v5093 = vadd.f32 %v4379, %v5061
      %v5094 = vadd.f32 %v4380, %v5062
      %v5095 = vadd.f32 %v4381, %v5063
      %v5096 = vadd.f32 %v4382, %v5064
      %v5097 = vadd.f32 %v4383, %v5065
      %v5098 = vadd.f32 %v4384, %v5066
      %v5099 = vadd.f32 %v4385, %v5067
      %v5100 = vadd.f32 %v4386, %v5068
      %v5101 = vadd.f32 %v4387, %v5069
      %v5102 = vadd.f32 %v4388, %v5070
      %v5103 = vadd.f32 %v4389, %v5071
      %v5104 = vadd.f32 %v4390, %v5072
      %v5105 = vadd.f32 %v4391, %v5073
      %v5106 = vadd.f32 %v4392, %v5074
      %v5107 = vadd.f32 %v4393, %v5075
      %v5108 = vadd.f32 %v4394, %v5076
      %v5109 = vld [vmem:[%s4] sm:$0x1]
      %v5111 = vperm.slane %v5109, 0
      %v5113 = vadd.f32 %v5077, %v5111
      %v5114 = vadd.f32 %v5078, %v5111
      %v5115 = vadd.f32 %v5079, %v5111
      %v5116 = vadd.f32 %v5080, %v5111
      %v5117 = vadd.f32 %v5081, %v5111
      %v5118 = vadd.f32 %v5082, %v5111
      %v5119 = vadd.f32 %v5083, %v5111
      %v5120 = vadd.f32 %v5084, %v5111
      %v5121 = vadd.f32 %v5085, %v5111
      %v5122 = vadd.f32 %v5086, %v5111
      %v5123 = vadd.f32 %v5087, %v5111
      %v5124 = vadd.f32 %v5088, %v5111
      %v5125 = vadd.f32 %v5089, %v5111
      %v5126 = vadd.f32 %v5090, %v5111
      %v5127 = vadd.f32 %v5091, %v5111
      %v5128 = vadd.f32 %v5092, %v5111
      %v5129 = vadd.f32 %v5093, %v5111
      %v5130 = vadd.f32 %v5094, %v5111
      %v5131 = vadd.f32 %v5095, %v5111
      %v5132 = vadd.f32 %v5096, %v5111
      %v5133 = vadd.f32 %v5097, %v5111
      %v5134 = vadd.f32 %v5098, %v5111
      %v5135 = vadd.f32 %v5099, %v5111
      %v5136 = vadd.f32 %v5100, %v5111
      %v5137 = vadd.f32 %v5101, %v5111
      %v5138 = vadd.f32 %v5102, %v5111
      %v5139 = vadd.f32 %v5103, %v5111
      %v5140 = vadd.f32 %v5104, %v5111
      %v5141 = vadd.f32 %v5105, %v5111
      %v5142 = vadd.f32 %v5106, %v5111
      %v5143 = vadd.f32 %v5107, %v5111
      %v5144 = vadd.f32 %v5108, %v5111
      %v5145 = vadd.f32 %v5113, %v343
      %v5146 = vadd.f32 %v5114, %v344
      %v5147 = vadd.f32 %v5115, %v345
      %v5148 = vadd.f32 %v5116, %v346
      %v5149 = vadd.f32 %v5117, %v347
      %v5150 = vadd.f32 %v5118, %v348
      %v5151 = vadd.f32 %v5119, %v349
      %v5152 = vadd.f32 %v5120, %v350
      %v5153 = vadd.f32 %v5121, %v351
      %v5154 = vadd.f32 %v5122, %v352
      %v5155 = vadd.f32 %v5123, %v353
      %v5156 = vadd.f32 %v5124, %v354
      %v5157 = vadd.f32 %v5125, %v355
      %v5158 = vadd.f32 %v5126, %v356
      %v5159 = vadd.f32 %v5127, %v357
      %v5160 = vadd.f32 %v5128, %v358
      %v5161 = vadd.f32 %v5129, %v359
      %v5162 = vadd.f32 %v5130, %v360
      %v5163 = vadd.f32 %v5131, %v361
      %v5164 = vadd.f32 %v5132, %v362
      %v5165 = vadd.f32 %v5133, %v363
      %v5166 = vadd.f32 %v5134, %v364
      %v5167 = vadd.f32 %v5135, %v365
      %v5168 = vadd.f32 %v5136, %v366
      %v5169 = vadd.f32 %v5137, %v367
      %v5170 = vadd.f32 %v5138, %v368
      %v5171 = vadd.f32 %v5139, %v369
      %v5172 = vadd.f32 %v5140, %v370
      %v5173 = vadd.f32 %v5141, %v371
      %v5174 = vadd.f32 %v5142, %v372
      %v5175 = vadd.f32 %v5143, %v373
      %v5176 = vadd.f32 %v5144, %v374
      %v5177 = vmax.f32 %v5145, 0.0
      %v5178 = vmax.f32 %v5146, 0.0
      %v5179 = vmax.f32 %v5147, 0.0
      %v5180 = vmax.f32 %v5148, 0.0
      %v5181 = vmax.f32 %v5149, 0.0
      %v5182 = vmax.f32 %v5150, 0.0
      %v5183 = vmax.f32 %v5151, 0.0
      %v5184 = vmax.f32 %v5152, 0.0
      %v5185 = vmax.f32 %v5153, 0.0
      %v5186 = vmax.f32 %v5154, 0.0
      %v5187 = vmax.f32 %v5155, 0.0
      %v5188 = vmax.f32 %v5156, 0.0
      %v5189 = vmax.f32 %v5157, 0.0
      %v5190 = vmax.f32 %v5158, 0.0
      %v5191 = vmax.f32 %v5159, 0.0
      %v5192 = vmax.f32 %v5160, 0.0
      %v5193 = vmax.f32 %v5161, 0.0
      %v5194 = vmax.f32 %v5162, 0.0
      %v5195 = vmax.f32 %v5163, 0.0
      %v5196 = vmax.f32 %v5164, 0.0
      %v5197 = vmax.f32 %v5165, 0.0
      %v5198 = vmax.f32 %v5166, 0.0
      %v5199 = vmax.f32 %v5167, 0.0
      %v5200 = vmax.f32 %v5168, 0.0
      %v5201 = vmax.f32 %v5169, 0.0
      %v5202 = vmax.f32 %v5170, 0.0
      %v5203 = vmax.f32 %v5171, 0.0
      %v5204 = vmax.f32 %v5172, 0.0
      %v5205 = vmax.f32 %v5173, 0.0
      %v5206 = vmax.f32 %v5174, 0.0
      %v5207 = vmax.f32 %v5175, 0.0
      %v5208 = vmax.f32 %v5176, 0.0
      %5209 = vst.msk [vmem:[%s278] sm:$0xff] %vm412, %v5177
      %5210 = vst.msk [vmem:[%s278 + $0x8] sm:$0xff] %vm412, %v5178
      %5211 = vst.msk [vmem:[%s278 + $0x10] sm:$0xff] %vm412, %v5179
      %5212 = vst.msk [vmem:[%s278 + $0x18] sm:$0xff] %vm412, %v5180
      %5213 = vst.msk [vmem:[%s278 + $0x20] sm:$0xff] %vm412, %v5181
      %5214 = vst.msk [vmem:[%s278 + $0x28] sm:$0xff] %vm412, %v5182
      %5215 = vst.msk [vmem:[%s278 + $0x30] sm:$0xff] %vm412, %v5183
      %5216 = vst.msk [vmem:[%s278 + $0x38] sm:$0xff] %vm412, %v5184
      %5217 = vst.msk [vmem:[%s278 + $0x40] sm:$0xff] %vm412, %v5185
      %5218 = vst.msk [vmem:[%s278 + $0x48] sm:$0xff] %vm412, %v5186
      %5219 = vst.msk [vmem:[%s278 + $0x50] sm:$0xff] %vm412, %v5187
      %5220 = vst.msk [vmem:[%s278 + $0x58] sm:$0xff] %vm412, %v5188
      %5221 = vst.msk [vmem:[%s278 + $0x60] sm:$0xff] %vm412, %v5189
      %5222 = vst.msk [vmem:[%s278 + $0x68] sm:$0xff] %vm412, %v5190
      %5223 = vst.msk [vmem:[%s278 + $0x70] sm:$0xff] %vm412, %v5191
      %5224 = vst.msk [vmem:[%s278 + $0x78] sm:$0xff] %vm412, %v5192
      %5225 = vst.msk [vmem:[%s278 + $0x80] sm:$0xff] %vm412, %v5193
      %5226 = vst.msk [vmem:[%s278 + $0x88] sm:$0xff] %vm412, %v5194
      %5227 = vst.msk [vmem:[%s278 + $0x90] sm:$0xff] %vm412, %v5195
      %5228 = vst.msk [vmem:[%s278 + $0x98] sm:$0xff] %vm412, %v5196
      %5229 = vst.msk [vmem:[%s278 + $0xa0] sm:$0xff] %vm412, %v5197
      %5230 = vst.msk [vmem:[%s278 + $0xa8] sm:$0xff] %vm412, %v5198
      %5231 = vst.msk [vmem:[%s278 + $0xb0] sm:$0xff] %vm412, %v5199
      %5232 = vst.msk [vmem:[%s278 + $0xb8] sm:$0xff] %vm412, %v5200
      %5233 = vst.msk [vmem:[%s278 + $0xc0] sm:$0xff] %vm412, %v5201
      %5234 = vst.msk [vmem:[%s278 + $0xc8] sm:$0xff] %vm412, %v5202
      %5235 = vst.msk [vmem:[%s278 + $0xd0] sm:$0xff] %vm412, %v5203
      %5236 = vst.msk [vmem:[%s278 + $0xd8] sm:$0xff] %vm412, %v5204
      %5237 = vst.msk [vmem:[%s278 + $0xe0] sm:$0xff] %vm412, %v5205
      %5238 = vst.msk [vmem:[%s278 + $0xe8] sm:$0xff] %vm412, %v5206
      %5239 = vst.msk [vmem:[%s278 + $0xf0] sm:$0xff] %vm412, %v5207
      %5240 = vst.msk [vmem:[%s278 + $0xf8] sm:$0xff] %vm412, %v5208
      %p5241 = scmp.lt.s32.totalorder %s18, 1
      %s5242 = scalar_select %p5241, %s18, 1
      %s5243 = smul.addr %s5242, 32
      %s5244 = smul.addr %s5243, 8
      %s5245 = scalar_lea.vmem %s7, %s5244
      // Predicated region
      $region49: #{tpu_custom_call.1} parent=47 // pred_check
        %p5246 = pneg %p188
      $region50: #{tpu_custom_call.1} parent=47 // pred_check_branch
        %5248 = sbr.rel (%p5246) target = $region52
      $region51: #{tpu_custom_call.1} parent=47 // pred_region
        _
      $region52: #{tpu_custom_call.1} parent=47 // pred_fallthru
        _
    $region48: #{tpu_custom_call.1} parent=5 // pred_fallthru
      _
    %p5249 = scmp.le.s32.totalorder 2, %s13
    // Predicated region
    $region53: #{tpu_custom_call.1} parent=5 // pred_check
      %p5250 = pneg %p5249
    $region54: #{tpu_custom_call.1} parent=5 // pred_check_branch
      %5252 = sbr.rel (%p5250) target = $region56
    $region55: #{tpu_custom_call.1} parent=5 // pred_region
      %s5253 = ssub.s32 %s13, 2
      // Predicated region
      $region57: #{tpu_custom_call.1} parent=55 // pred_check
        %p5254 = pneg %p194
      $region58: #{tpu_custom_call.1} parent=55 // pred_check_branch
        %5256 = sbr.rel (%p5254) target = $region60
      $region59: #{tpu_custom_call.1} parent=55 // pred_region
        %p5257 = scmp.lt.s32.totalorder %s19, 1
        %s5258 = scalar_select %p5257, %s19, 1
        %s5259 = smul.addr %s5258, 32
        %s5260 = smul.addr %s5259, 8
        %s5261 = scalar_lea.vmem %s7, %s5260
      $region60: #{tpu_custom_call.1} parent=55 // pred_fallthru
        _
    $region56: #{tpu_custom_call.1} parent=5 // pred_fallthru
      _
  $region6: #{tpu_custom_call.1} parent=0 // loop_footer
    %s17 = sadd.s32 1, %s13
  $region7: #{tpu_custom_call.1} parent=0 // loop_footer_branch
    %12 = sbr.rel target = $region3
  $region8: #{tpu_custom_call.1} parent=0 // loop_exit
    _

</llo_original>
